<compile_context>
chip_gen: v5e
topology: v5e:2x2
jax: 0.10.0
libtpu: 0.0.40
codegen_flags: <defaults>
</compile_context>

<pallas_src>
import jax
import jax.numpy as jnp
from jax.experimental import pallas as pl
from jax.experimental.pallas import tpu as pltpu

_EPS = 1e-5  # nn.LayerNorm default


def _gelu_exact(x):
    # PyTorch nn.GELU() default (approximate='none')
    return 0.5 * x * (1.0 + jax.lax.erf(x * (1.0 / jnp.sqrt(2.0).astype(x.dtype))))


def _layernorm(x, g, b):
    mu = jnp.mean(x, axis=-1, keepdims=True)
    var = jnp.mean((x - mu) ** 2, axis=-1, keepdims=True)
    return (x - mu) * jax.lax.rsqrt(var + _EPS) * g + b


def _fov_kernel(patches_ref, cls_mask_ref, cls_ref, pos_ref,
                conv_w_ref, conv_b_ref,
                proj_w_ref, proj_b_ref,
                ln1_g_ref, ln1_b_ref,
                w1_ref, b1_ref, w2_ref, b2_ref,
                ln2_g_ref, ln2_b_ref,
                off_w_ref, off_b_ref, factor_ref,
                out_ref):
    # patches: [TM, Kp] bf16.  Rows at batch boundaries are zero placeholders
    # that the cls mask replaces below; trailing pad rows are sliced outside.
    patches = patches_ref[...]

    # Conv2d(3, dim, P, stride) == im2col matmul + bias (bf16 MXU, f32 acc).
    emb = jnp.dot(patches, conv_w_ref[...],
                  preferred_element_type=jnp.float32) + conv_b_ref[...]

    # Patch_.proj_out : Linear(dim, dim)
    proj = jnp.dot(emb.astype(jnp.bfloat16), proj_w_ref[...],
                   preferred_element_type=jnp.float32) + proj_b_ref[...]

    # Patch_.norm : LayerNorm(dim)   (f32 on the VPU)
    q_all = _layernorm(proj, ln1_g_ref[...], ln1_b_ref[...])            # [TM, dim]

    # cat([cls, q], dim=1) + postion   (cls rows <- cls token)
    m = cls_mask_ref[...]                                               # [TM, 1]
    q_ = q_all + (cls_ref[...] - q_all) * m + pos_ref[...]              # [TM, dim]

    # mlp: Linear(dim,4dim) -> GELU -> Linear(4dim,dim) -> LayerNorm, then .pow(2)
    h1 = jnp.dot(q_.astype(jnp.bfloat16), w1_ref[...],
                 preferred_element_type=jnp.float32) + b1_ref[...]
    h1 = _gelu_exact(h1)
    h2 = jnp.dot(h1.astype(jnp.bfloat16), w2_ref[...],
                 preferred_element_type=jnp.float32) + b2_ref[...]
    y = _layernorm(h2, ln2_g_ref[...], ln2_b_ref[...])
    y = y * y

    # offset head (lane-padded to 128): tanh(relu(Linear(dim, 4)(y) * fator))
    off = jnp.dot(y.astype(jnp.bfloat16), off_w_ref[...],
                  preferred_element_type=jnp.float32) + off_b_ref[...]
    out_ref[...] = jnp.tanh(jnp.maximum(off * factor_ref[...], 0.0))


def _extract_patches(x, patch, stride):
    """im2col for NCHW input -> [b, N, 3*P*P], (c, ph, pw) flattening."""
    b, c, h, w = x.shape
    oh = (h - patch) // stride + 1
    ow = (w - patch) // stride + 1
    rows = (jnp.arange(oh) * stride)[:, None] + jnp.arange(patch)[None, :]   # [oh, P]
    cols = (jnp.arange(ow) * stride)[:, None] + jnp.arange(patch)[None, :]   # [ow, P]
    # advanced indexing -> [b, c, oh, P, ow, P]
    xp = x[:, :, rows[:, :, None, None], cols[None, None, :, :]]
    # -> [b, oh, ow, c, P, P] -> [b, N, c*P*P]
    xp = jnp.transpose(xp, (0, 2, 4, 1, 3, 5))
    return xp.reshape(b, oh * ow, c * patch * patch)


def init_params(key, dim, patch):
    """Deterministic synthetic init (shapes follow the PyTorch module)."""
    K = 3 * patch * patch
    hid = 4 * dim
    ks = jax.random.split(key, 11)
    n = lambda k, shape, fan: jax.random.normal(k, shape, jnp.float32) / jnp.sqrt(fan)
    return dict(
        conv_w=n(ks[0], (dim, 3, patch, patch), K),
        conv_b=n(ks[1], (dim,), K),
        proj_w=n(ks[2], (dim, dim), dim),          # stored as [in, out]
        proj_b=n(ks[3], (dim,), dim),
        ln1_g=jnp.ones((dim,), jnp.float32),
        ln1_b=jnp.zeros((dim,), jnp.float32),
        w1=n(ks[4], (dim, hid), dim),
        b1=n(ks[5], (hid,), dim),
        w2=n(ks[6], (hid, dim), hid),
        b2=n(ks[7], (dim,), hid),
        ln2_g=jnp.ones((dim,), jnp.float32),
        ln2_b=jnp.zeros((dim,), jnp.float32),
        off_w=n(ks[8], (dim, 4), dim),
        off_b=n(ks[9], (4,), dim),
        cls=jnp.zeros((1, 1, dim), jnp.float32),        # torch.zeros in module
        postion=jnp.zeros((1, 1, 320), jnp.float32),    # hard-coded 320 => dim must be 320
        fator=jnp.full((4,), 0.1, jnp.float32),
        compensate=jax.random.normal(ks[10], (2,), jnp.float32),  # unused in forward
    )


def fov_forward(x, params, patch, stride):
    b, c, h, w = x.shape
    dim = params["conv_w"].shape[0]
    hid = 4 * dim
    bf16 = jnp.bfloat16

    patches = _extract_patches(x, patch, stride)                  # [b, N, K]
    N, K = patches.shape[1], patches.shape[2]
    S = N + 1
    rows = b * S

    # Row tiling: TM-row tiles (multiple of 8 sublanes), pad R to a whole
    # number of tiles so the grid pipelines the patch DMA for large inputs.
    TM = min(256, ((rows + 7) // 8) * 8)
    R = ((rows + TM - 1) // TM) * TM
    n_tiles = R // TM
    Kp = ((K + 127) // 128) * 128        # pad im2col contraction dim (192->256)
    OUT_L = 128                          # lane-dense offset-head width

    # Flattened token matrix: per batch, row 0 is a zero cls placeholder.
    flat = jnp.concatenate(
        [jnp.zeros((b, 1, K), jnp.float32), patches], axis=1).reshape(rows, K)
    flat = jnp.pad(flat, ((0, R - rows), (0, Kp - K))).astype(bf16)   # [R, Kp]

    # 1.0 on cls rows (row i*S of each batch), 0.0 elsewhere / on pad rows.
    ridx = jnp.arange(R)
    cls_mask = (((ridx % S) == 0) & (ridx < rows)).astype(jnp.float32)[:, None]

    conv_w = jnp.pad(params["conv_w"].reshape(dim, K).T,
                     ((0, Kp - K), (0, 0))).astype(bf16)          # [Kp, dim]
    off_w = jnp.pad(params["off_w"], ((0, 0), (0, OUT_L - 4))).astype(bf16)
    off_b = jnp.pad(params["off_b"], (0, OUT_L - 4)).reshape(1, OUT_L)
    fator = jnp.pad(params["fator"], (0, OUT_L - 4)).reshape(1, OUT_L)

    args = (
        flat,                                      # [R, Kp]   bf16  (row-tiled)
        cls_mask,                                  # [R, 1]    f32   (row-tiled)
        params["cls"].reshape(1, dim),
        params["postion"].reshape(1, dim),
        conv_w,                                    # [Kp, dim]   bf16
        params["conv_b"].reshape(1, dim),
        params["proj_w"].astype(bf16),             # [dim, dim]  bf16
        params["proj_b"].reshape(1, dim),
        params["ln1_g"].reshape(1, dim),
        params["ln1_b"].reshape(1, dim),
        params["w1"].astype(bf16),                 # [dim, 4*dim] bf16
        params["b1"].reshape(1, hid),
        params["w2"].astype(bf16),                 # [4*dim, dim] bf16
        params["b2"].reshape(1, dim),
        params["ln2_g"].reshape(1, dim),
        params["ln2_b"].reshape(1, dim),
        off_w,                                     # [dim, 128]  bf16
        off_b,                                     # [1, 128]
        fator,                                     # [1, 128]
    )

    def resident_spec(a):
        # Constant block index across the row grid -> weight stays in VMEM.
        nd = a.ndim
        return pl.BlockSpec(a.shape, lambda i, _nd=nd: (0,) * _nd)

    in_specs = (
        [pl.BlockSpec((TM, Kp), lambda i: (i, 0)),     # patches (row-tiled)
         pl.BlockSpec((TM, 1), lambda i: (i, 0))]      # cls mask (row-tiled)
        + [resident_spec(a) for a in args[2:]]
    )

    out = pl.pallas_call(
        _fov_kernel,
        out_shape=jax.ShapeDtypeStruct((R, OUT_L), jnp.float32),
        grid_spec=pltpu.PrefetchScalarGridSpec(
            num_scalar_prefetch=0,
            grid=(n_tiles,),
            in_specs=in_specs,
            out_specs=pl.BlockSpec((TM, OUT_L), lambda i: (i, 0)),
        ),
        compiler_params=pltpu.CompilerParams(
            dimension_semantics=("parallel",),
            vmem_limit_bytes=32 * 1024 * 1024),
    )(*args)

    out = out[:rows, :4].reshape(b, S, 4)

    # In-place row edits from the PyTorch forward (tiny [b, S, 4] glue).
    # NOTE: these index the SEQUENCE axis, matching offset[:, 2] etc. in torch.
    out = out.at[:, 2].set(jnp.round(out[:, 2] * h))
    out = out.at[:, 3].set(jnp.round(out[:, 3] * w))
    out = out.at[:, :2].set(jnp.mean(out[:, :2], axis=1, keepdims=True))
    return out


if __name__ == "__main__":
    # dim must be 320: the module hard-codes `postion` as [1, 1, 320].
    dim, patch, stride = 320, 8, 8
    b, h, w = 2, 16, 16

    key = jax.random.PRNGKey(0)
    kp, kx = jax.random.split(key)
    params = init_params(kp, dim, patch)
    x = jax.random.normal(kx, (b, 3, h, w), jnp.float32)

    out = fov_forward(x, params, patch, stride)
    out = jax.block_until_ready(out)
    S = ((h - patch) // stride + 1) * ((w - patch) // stride + 1) + 1
    assert out.shape == (b, S, 4)
    assert bool(jnp.all(jnp.isfinite(out)))
    print("KERNEL_OK")
</pallas_src>

<mosaic_0001>
module attributes {stable_mosaic.version = 11 : i64} {
  func.func @_fov_kernel(%arg0: i32, %arg1: memref<16x256xbf16, #tpu.memory_space<vmem>>, %arg2: memref<16x1xf32, #tpu.memory_space<vmem>>, %arg3: memref<1x320xf32, #tpu.memory_space<vmem>>, %arg4: memref<1x320xf32, #tpu.memory_space<vmem>>, %arg5: memref<256x320xbf16, #tpu.memory_space<vmem>>, %arg6: memref<1x320xf32, #tpu.memory_space<vmem>>, %arg7: memref<320x320xbf16, #tpu.memory_space<vmem>>, %arg8: memref<1x320xf32, #tpu.memory_space<vmem>>, %arg9: memref<1x320xf32, #tpu.memory_space<vmem>>, %arg10: memref<1x320xf32, #tpu.memory_space<vmem>>, %arg11: memref<320x1280xbf16, #tpu.memory_space<vmem>>, %arg12: memref<1x1280xf32, #tpu.memory_space<vmem>>, %arg13: memref<1280x320xbf16, #tpu.memory_space<vmem>>, %arg14: memref<1x320xf32, #tpu.memory_space<vmem>>, %arg15: memref<1x320xf32, #tpu.memory_space<vmem>>, %arg16: memref<1x320xf32, #tpu.memory_space<vmem>>, %arg17: memref<320x128xbf16, #tpu.memory_space<vmem>>, %arg18: memref<1x128xf32, #tpu.memory_space<vmem>>, %arg19: memref<1x128xf32, #tpu.memory_space<vmem>>, %arg20: memref<16x128xf32, #tpu.memory_space<vmem>>) attributes {dimension_semantics = [#tpu.dimension_semantics<parallel>], iteration_bounds = array<i64: 1>, scalar_prefetch = 0 : i64, scratch_operands = 0 : i64, tpu.core_type = #tpu.core_type<tc>, window_params = [{transform_indices = @transform_0, window_bounds = array<i64: 16, 256>}, {transform_indices = @transform_1, window_bounds = array<i64: 16, 1>}, {pipeline_mode = #tpu.pipeline_mode<synchronous>, transform_indices = @transform_2, window_bounds = array<i64: 1, 320>}, {pipeline_mode = #tpu.pipeline_mode<synchronous>, transform_indices = @transform_3, window_bounds = array<i64: 1, 320>}, {pipeline_mode = #tpu.pipeline_mode<synchronous>, transform_indices = @transform_4, window_bounds = array<i64: 256, 320>}, {pipeline_mode = #tpu.pipeline_mode<synchronous>, transform_indices = @transform_5, window_bounds = array<i64: 1, 320>}, {pipeline_mode = #tpu.pipeline_mode<synchronous>, transform_indices = @transform_6, window_bounds = array<i64: 320, 320>}, {pipeline_mode = #tpu.pipeline_mode<synchronous>, transform_indices = @transform_7, window_bounds = array<i64: 1, 320>}, {pipeline_mode = #tpu.pipeline_mode<synchronous>, transform_indices = @transform_8, window_bounds = array<i64: 1, 320>}, {pipeline_mode = #tpu.pipeline_mode<synchronous>, transform_indices = @transform_9, window_bounds = array<i64: 1, 320>}, {pipeline_mode = #tpu.pipeline_mode<synchronous>, transform_indices = @transform_10, window_bounds = array<i64: 320, 1280>}, {pipeline_mode = #tpu.pipeline_mode<synchronous>, transform_indices = @transform_11, window_bounds = array<i64: 1, 1280>}, {pipeline_mode = #tpu.pipeline_mode<synchronous>, transform_indices = @transform_12, window_bounds = array<i64: 1280, 320>}, {pipeline_mode = #tpu.pipeline_mode<synchronous>, transform_indices = @transform_13, window_bounds = array<i64: 1, 320>}, {pipeline_mode = #tpu.pipeline_mode<synchronous>, transform_indices = @transform_14, window_bounds = array<i64: 1, 320>}, {pipeline_mode = #tpu.pipeline_mode<synchronous>, transform_indices = @transform_15, window_bounds = array<i64: 1, 320>}, {pipeline_mode = #tpu.pipeline_mode<synchronous>, transform_indices = @transform_16, window_bounds = array<i64: 320, 128>}, {pipeline_mode = #tpu.pipeline_mode<synchronous>, transform_indices = @transform_17, window_bounds = array<i64: 1, 128>}, {pipeline_mode = #tpu.pipeline_mode<synchronous>, transform_indices = @transform_18, window_bounds = array<i64: 1, 128>}, {transform_indices = @transform_19, window_bounds = array<i64: 16, 128>}]} {
    %c0 = arith.constant 0 : index
    %c0_0 = arith.constant 0 : index
    %0 = vector.load %arg1[%c0, %c0_0] : memref<16x256xbf16, #tpu.memory_space<vmem>>, vector<16x256xbf16>
    %c0_1 = arith.constant 0 : index
    %c0_2 = arith.constant 0 : index
    %1 = vector.load %arg5[%c0_1, %c0_2] : memref<256x320xbf16, #tpu.memory_space<vmem>>, vector<256x320xbf16>
    %cst = arith.constant dense<0.000000e+00> : vector<16x320xf32>
    %2 = tpu.matmul %0, %1, %cst {dimension_numbers = #tpu.dot_dimension_numbers<[1], [0], [0], [1], [0, 0, 1, 1], [], []>} : vector<16x256xbf16>, vector<256x320xbf16>, vector<16x320xf32> -> vector<16x320xf32>
    %c0_3 = arith.constant 0 : index
    %c0_4 = arith.constant 0 : index
    %3 = vector.load %arg6[%c0_3, %c0_4] : memref<1x320xf32, #tpu.memory_space<vmem>>, vector<1x320xf32>
    %4 = vector.broadcast %3 : vector<1x320xf32> to vector<16x320xf32>
    %5 = arith.addf %2, %4 : vector<16x320xf32>
    %6 = arith.truncf %5 : vector<16x320xf32> to vector<16x320xbf16>
    %c0_5 = arith.constant 0 : index
    %c0_6 = arith.constant 0 : index
    %7 = vector.load %arg7[%c0_5, %c0_6] : memref<320x320xbf16, #tpu.memory_space<vmem>>, vector<320x320xbf16>
    %cst_7 = arith.constant dense<0.000000e+00> : vector<16x320xf32>
    %8 = tpu.matmul %6, %7, %cst_7 {dimension_numbers = #tpu.dot_dimension_numbers<[1], [0], [0], [1], [0, 0, 1, 1], [], []>} : vector<16x320xbf16>, vector<320x320xbf16>, vector<16x320xf32> -> vector<16x320xf32>
    %c0_8 = arith.constant 0 : index
    %c0_9 = arith.constant 0 : index
    %9 = vector.load %arg8[%c0_8, %c0_9] : memref<1x320xf32, #tpu.memory_space<vmem>>, vector<1x320xf32>
    %10 = vector.broadcast %9 : vector<1x320xf32> to vector<16x320xf32>
    %11 = arith.addf %8, %10 : vector<16x320xf32>
    %c0_10 = arith.constant 0 : index
    %c0_11 = arith.constant 0 : index
    %12 = vector.load %arg9[%c0_10, %c0_11] : memref<1x320xf32, #tpu.memory_space<vmem>>, vector<1x320xf32>
    %c0_12 = arith.constant 0 : index
    %c0_13 = arith.constant 0 : index
    %13 = vector.load %arg10[%c0_12, %c0_13] : memref<1x320xf32, #tpu.memory_space<vmem>>, vector<1x320xf32>
    %cst_14 = arith.constant dense<0.000000e+00> : vector<16xf32>
    %14 = vector.multi_reduction <add>, %11, %cst_14 [1] : vector<16x320xf32> to vector<16xf32>
    %15 = vector.shape_cast %14 : vector<16xf32> to vector<16x1xf32>
    %cst_15 = arith.constant 3.200000e+02 : f32
    %16 = vector.broadcast %cst_15 : f32 to vector<16x1xf32>
    %17 = arith.divf %15, %16 : vector<16x1xf32>
    %18 = vector.broadcast %17 : vector<16x1xf32> to vector<16x320xf32>
    %19 = arith.subf %11, %18 : vector<16x320xf32>
    %20 = arith.mulf %19, %19 : vector<16x320xf32>
    %cst_16 = arith.constant dense<0.000000e+00> : vector<16xf32>
    %21 = vector.multi_reduction <add>, %20, %cst_16 [1] : vector<16x320xf32> to vector<16xf32>
    %22 = vector.shape_cast %21 : vector<16xf32> to vector<16x1xf32>
    %cst_17 = arith.constant 3.200000e+02 : f32
    %23 = vector.broadcast %cst_17 : f32 to vector<16x1xf32>
    %24 = arith.divf %22, %23 : vector<16x1xf32>
    %25 = vector.broadcast %17 : vector<16x1xf32> to vector<16x320xf32>
    %26 = arith.subf %11, %25 : vector<16x320xf32>
    %cst_18 = arith.constant 9.99999974E-6 : f32
    %27 = vector.broadcast %cst_18 : f32 to vector<16x1xf32>
    %28 = arith.addf %24, %27 : vector<16x1xf32>
    %29 = math.rsqrt %28 : vector<16x1xf32>
    %30 = vector.broadcast %29 : vector<16x1xf32> to vector<16x320xf32>
    %31 = arith.mulf %26, %30 : vector<16x320xf32>
    %32 = vector.broadcast %12 : vector<1x320xf32> to vector<16x320xf32>
    %33 = arith.mulf %31, %32 : vector<16x320xf32>
    %34 = vector.broadcast %13 : vector<1x320xf32> to vector<16x320xf32>
    %35 = arith.addf %33, %34 : vector<16x320xf32>
    %c0_19 = arith.constant 0 : index
    %c0_20 = arith.constant 0 : index
    %36 = vector.load %arg2[%c0_19, %c0_20] : memref<16x1xf32, #tpu.memory_space<vmem>>, vector<16x1xf32>
    %c0_21 = arith.constant 0 : index
    %c0_22 = arith.constant 0 : index
    %37 = vector.load %arg3[%c0_21, %c0_22] : memref<1x320xf32, #tpu.memory_space<vmem>>, vector<1x320xf32>
    %38 = vector.broadcast %37 : vector<1x320xf32> to vector<16x320xf32>
    %39 = arith.subf %38, %35 : vector<16x320xf32>
    %40 = vector.broadcast %36 : vector<16x1xf32> to vector<16x320xf32>
    %41 = arith.mulf %39, %40 : vector<16x320xf32>
    %42 = arith.addf %35, %41 : vector<16x320xf32>
    %c0_23 = arith.constant 0 : index
    %c0_24 = arith.constant 0 : index
    %43 = vector.load %arg4[%c0_23, %c0_24] : memref<1x320xf32, #tpu.memory_space<vmem>>, vector<1x320xf32>
    %44 = vector.broadcast %43 : vector<1x320xf32> to vector<16x320xf32>
    %45 = arith.addf %42, %44 : vector<16x320xf32>
    %46 = arith.truncf %45 : vector<16x320xf32> to vector<16x320xbf16>
    %c0_25 = arith.constant 0 : index
    %c0_26 = arith.constant 0 : index
    %47 = vector.load %arg11[%c0_25, %c0_26] : memref<320x1280xbf16, #tpu.memory_space<vmem>>, vector<320x1280xbf16>
    %cst_27 = arith.constant dense<0.000000e+00> : vector<16x1280xf32>
    %48 = tpu.matmul %46, %47, %cst_27 {dimension_numbers = #tpu.dot_dimension_numbers<[1], [0], [0], [1], [0, 0, 1, 1], [], []>} : vector<16x320xbf16>, vector<320x1280xbf16>, vector<16x1280xf32> -> vector<16x1280xf32>
    %c0_28 = arith.constant 0 : index
    %c0_29 = arith.constant 0 : index
    %49 = vector.load %arg12[%c0_28, %c0_29] : memref<1x1280xf32, #tpu.memory_space<vmem>>, vector<1x1280xf32>
    %50 = vector.broadcast %49 : vector<1x1280xf32> to vector<16x1280xf32>
    %51 = arith.addf %48, %50 : vector<16x1280xf32>
    %cst_30 = arith.constant 5.000000e-01 : f32
    %52 = vector.broadcast %cst_30 : f32 to vector<16x1280xf32>
    %53 = arith.mulf %52, %51 : vector<16x1280xf32>
    %cst_31 = arith.constant 2.000000e+00 : f32
    %54 = math.sqrt %cst_31 : f32
    %cst_32 = arith.constant 1.000000e+00 : f32
    %55 = arith.divf %cst_32, %54 : f32
    %56 = vector.broadcast %55 : f32 to vector<16x1280xf32>
    %57 = arith.mulf %51, %56 : vector<16x1280xf32>
    %58 = math.erf %57 : vector<16x1280xf32>
    %cst_33 = arith.constant 1.000000e+00 : f32
    %59 = vector.broadcast %cst_33 : f32 to vector<16x1280xf32>
    %60 = arith.addf %59, %58 : vector<16x1280xf32>
    %61 = arith.mulf %53, %60 : vector<16x1280xf32>
    %62 = arith.truncf %61 : vector<16x1280xf32> to vector<16x1280xbf16>
    %c0_34 = arith.constant 0 : index
    %c0_35 = arith.constant 0 : index
    %63 = vector.load %arg13[%c0_34, %c0_35] : memref<1280x320xbf16, #tpu.memory_space<vmem>>, vector<1280x320xbf16>
    %cst_36 = arith.constant dense<0.000000e+00> : vector<16x320xf32>
    %64 = tpu.matmul %62, %63, %cst_36 {dimension_numbers = #tpu.dot_dimension_numbers<[1], [0], [0], [1], [0, 0, 1, 1], [], []>} : vector<16x1280xbf16>, vector<1280x320xbf16>, vector<16x320xf32> -> vector<16x320xf32>
    %c0_37 = arith.constant 0 : index
    %c0_38 = arith.constant 0 : index
    %65 = vector.load %arg14[%c0_37, %c0_38] : memref<1x320xf32, #tpu.memory_space<vmem>>, vector<1x320xf32>
    %66 = vector.broadcast %65 : vector<1x320xf32> to vector<16x320xf32>
    %67 = arith.addf %64, %66 : vector<16x320xf32>
    %c0_39 = arith.constant 0 : index
    %c0_40 = arith.constant 0 : index
    %68 = vector.load %arg15[%c0_39, %c0_40] : memref<1x320xf32, #tpu.memory_space<vmem>>, vector<1x320xf32>
    %c0_41 = arith.constant 0 : index
    %c0_42 = arith.constant 0 : index
    %69 = vector.load %arg16[%c0_41, %c0_42] : memref<1x320xf32, #tpu.memory_space<vmem>>, vector<1x320xf32>
    %cst_43 = arith.constant dense<0.000000e+00> : vector<16xf32>
    %70 = vector.multi_reduction <add>, %67, %cst_43 [1] : vector<16x320xf32> to vector<16xf32>
    %71 = vector.shape_cast %70 : vector<16xf32> to vector<16x1xf32>
    %cst_44 = arith.constant 3.200000e+02 : f32
    %72 = vector.broadcast %cst_44 : f32 to vector<16x1xf32>
    %73 = arith.divf %71, %72 : vector<16x1xf32>
    %74 = vector.broadcast %73 : vector<16x1xf32> to vector<16x320xf32>
    %75 = arith.subf %67, %74 : vector<16x320xf32>
    %76 = arith.mulf %75, %75 : vector<16x320xf32>
    %cst_45 = arith.constant dense<0.000000e+00> : vector<16xf32>
    %77 = vector.multi_reduction <add>, %76, %cst_45 [1] : vector<16x320xf32> to vector<16xf32>
    %78 = vector.shape_cast %77 : vector<16xf32> to vector<16x1xf32>
    %cst_46 = arith.constant 3.200000e+02 : f32
    %79 = vector.broadcast %cst_46 : f32 to vector<16x1xf32>
    %80 = arith.divf %78, %79 : vector<16x1xf32>
    %81 = vector.broadcast %73 : vector<16x1xf32> to vector<16x320xf32>
    %82 = arith.subf %67, %81 : vector<16x320xf32>
    %cst_47 = arith.constant 9.99999974E-6 : f32
    %83 = vector.broadcast %cst_47 : f32 to vector<16x1xf32>
    %84 = arith.addf %80, %83 : vector<16x1xf32>
    %85 = math.rsqrt %84 : vector<16x1xf32>
    %86 = vector.broadcast %85 : vector<16x1xf32> to vector<16x320xf32>
    %87 = arith.mulf %82, %86 : vector<16x320xf32>
    %88 = vector.broadcast %68 : vector<1x320xf32> to vector<16x320xf32>
    %89 = arith.mulf %87, %88 : vector<16x320xf32>
    %90 = vector.broadcast %69 : vector<1x320xf32> to vector<16x320xf32>
    %91 = arith.addf %89, %90 : vector<16x320xf32>
    %92 = arith.mulf %91, %91 : vector<16x320xf32>
    %93 = arith.truncf %92 : vector<16x320xf32> to vector<16x320xbf16>
    %c0_48 = arith.constant 0 : index
    %c0_49 = arith.constant 0 : index
    %94 = vector.load %arg17[%c0_48, %c0_49] : memref<320x128xbf16, #tpu.memory_space<vmem>>, vector<320x128xbf16>
    %cst_50 = arith.constant dense<0.000000e+00> : vector<16x128xf32>
    %95 = tpu.matmul %93, %94, %cst_50 {dimension_numbers = #tpu.dot_dimension_numbers<[1], [0], [0], [1], [0, 0, 1, 1], [], []>} : vector<16x320xbf16>, vector<320x128xbf16>, vector<16x128xf32> -> vector<16x128xf32>
    %c0_51 = arith.constant 0 : index
    %c0_52 = arith.constant 0 : index
    %96 = vector.load %arg18[%c0_51, %c0_52] : memref<1x128xf32, #tpu.memory_space<vmem>>, vector<1x128xf32>
    %97 = vector.broadcast %96 : vector<1x128xf32> to vector<16x128xf32>
    %98 = arith.addf %95, %97 : vector<16x128xf32>
    %c0_53 = arith.constant 0 : index
    %c0_54 = arith.constant 0 : index
    %99 = vector.load %arg19[%c0_53, %c0_54] : memref<1x128xf32, #tpu.memory_space<vmem>>, vector<1x128xf32>
    %100 = vector.broadcast %99 : vector<1x128xf32> to vector<16x128xf32>
    %101 = arith.mulf %98, %100 : vector<16x128xf32>
    %cst_55 = arith.constant 0.000000e+00 : f32
    %102 = vector.broadcast %cst_55 : f32 to vector<16x128xf32>
    %103 = arith.maximumf %101, %102 : vector<16x128xf32>
    %104 = math.tanh %103 : vector<16x128xf32>
    %c0_56 = arith.constant 0 : index
    %c0_57 = arith.constant 0 : index
    %105 = vector.load %arg20[%c0_56, %c0_57] : memref<16x128xf32, #tpu.memory_space<vmem>>, vector<16x128xf32>
    tpu.vector_store %arg20[%c0_56, %c0_57], %104 {strides = array<i32>} : memref<16x128xf32, #tpu.memory_space<vmem>>, vector<16x128xf32>,
    return
  }
  func.func @transform_0(%arg0: i32) -> (i32, i32) {
    %c0_i32 = arith.constant 0 : i32
    %c0_i32_0 = arith.constant 0 : i32
    return %arg0, %c0_i32 : i32, i32
  }
  func.func @transform_1(%arg0: i32) -> (i32, i32) {
    %c0_i32 = arith.constant 0 : i32
    %c0_i32_0 = arith.constant 0 : i32
    return %arg0, %c0_i32 : i32, i32
  }
  func.func @transform_2(%arg0: i32) -> (i32, i32) {
    %c0_i32 = arith.constant 0 : i32
    %c0_i32_0 = arith.constant 0 : i32
    %c0_i32_1 = arith.constant 0 : i32
    return %c0_i32, %c0_i32_0 : i32, i32
  }
  func.func @transform_3(%arg0: i32) -> (i32, i32) {
    %c0_i32 = arith.constant 0 : i32
    %c0_i32_0 = arith.constant 0 : i32
    %c0_i32_1 = arith.constant 0 : i32
    return %c0_i32, %c0_i32_0 : i32, i32
  }
  func.func @transform_4(%arg0: i32) -> (i32, i32) {
    %c0_i32 = arith.constant 0 : i32
    %c0_i32_0 = arith.constant 0 : i32
    %c0_i32_1 = arith.constant 0 : i32
    return %c0_i32, %c0_i32_0 : i32, i32
  }
  func.func @transform_5(%arg0: i32) -> (i32, i32) {
    %c0_i32 = arith.constant 0 : i32
    %c0_i32_0 = arith.constant 0 : i32
    %c0_i32_1 = arith.constant 0 : i32
    return %c0_i32, %c0_i32_0 : i32, i32
  }
  func.func @transform_6(%arg0: i32) -> (i32, i32) {
    %c0_i32 = arith.constant 0 : i32
    %c0_i32_0 = arith.constant 0 : i32
    %c0_i32_1 = arith.constant 0 : i32
    return %c0_i32, %c0_i32_0 : i32, i32
  }
  func.func @transform_7(%arg0: i32) -> (i32, i32) {
    %c0_i32 = arith.constant 0 : i32
    %c0_i32_0 = arith.constant 0 : i32
    %c0_i32_1 = arith.constant 0 : i32
    return %c0_i32, %c0_i32_0 : i32, i32
  }
  func.func @transform_8(%arg0: i32) -> (i32, i32) {
    %c0_i32 = arith.constant 0 : i32
    %c0_i32_0 = arith.constant 0 : i32
    %c0_i32_1 = arith.constant 0 : i32
    return %c0_i32, %c0_i32_0 : i32, i32
  }
  func.func @transform_9(%arg0: i32) -> (i32, i32) {
    %c0_i32 = arith.constant 0 : i32
    %c0_i32_0 = arith.constant 0 : i32
    %c0_i32_1 = arith.constant 0 : i32
    return %c0_i32, %c0_i32_0 : i32, i32
  }
  func.func @transform_10(%arg0: i32) -> (i32, i32) {
    %c0_i32 = arith.constant 0 : i32
    %c0_i32_0 = arith.constant 0 : i32
    %c0_i32_1 = arith.constant 0 : i32
    return %c0_i32, %c0_i32_0 : i32, i32
  }
  func.func @transform_11(%arg0: i32) -> (i32, i32) {
    %c0_i32 = arith.constant 0 : i32
    %c0_i32_0 = arith.constant 0 : i32
    %c0_i32_1 = arith.constant 0 : i32
    return %c0_i32, %c0_i32_0 : i32, i32
  }
  func.func @transform_12(%arg0: i32) -> (i32, i32) {
    %c0_i32 = arith.constant 0 : i32
    %c0_i32_0 = arith.constant 0 : i32
    %c0_i32_1 = arith.constant 0 : i32
    return %c0_i32, %c0_i32_0 : i32, i32
  }
  func.func @transform_13(%arg0: i32) -> (i32, i32) {
    %c0_i32 = arith.constant 0 : i32
    %c0_i32_0 = arith.constant 0 : i32
    %c0_i32_1 = arith.constant 0 : i32
    return %c0_i32, %c0_i32_0 : i32, i32
  }
  func.func @transform_14(%arg0: i32) -> (i32, i32) {
    %c0_i32 = arith.constant 0 : i32
    %c0_i32_0 = arith.constant 0 : i32
    %c0_i32_1 = arith.constant 0 : i32
    return %c0_i32, %c0_i32_0 : i32, i32
  }
  func.func @transform_15(%arg0: i32) -> (i32, i32) {
    %c0_i32 = arith.constant 0 : i32
    %c0_i32_0 = arith.constant 0 : i32
    %c0_i32_1 = arith.constant 0 : i32
    return %c0_i32, %c0_i32_0 : i32, i32
  }
  func.func @transform_16(%arg0: i32) -> (i32, i32) {
    %c0_i32 = arith.constant 0 : i32
    %c0_i32_0 = arith.constant 0 : i32
    %c0_i32_1 = arith.constant 0 : i32
    return %c0_i32, %c0_i32_0 : i32, i32
  }
  func.func @transform_17(%arg0: i32) -> (i32, i32) {
    %c0_i32 = arith.constant 0 : i32
    %c0_i32_0 = arith.constant 0 : i32
    %c0_i32_1 = arith.constant 0 : i32
    return %c0_i32, %c0_i32_0 : i32, i32
  }
  func.func @transform_18(%arg0: i32) -> (i32, i32) {
    %c0_i32 = arith.constant 0 : i32
    %c0_i32_0 = arith.constant 0 : i32
    %c0_i32_1 = arith.constant 0 : i32
    return %c0_i32, %c0_i32_0 : i32, i32
  }
  func.func @transform_19(%arg0: i32) -> (i32, i32) {
    %c0_i32 = arith.constant 0 : i32
    %c0_i32_0 = arith.constant 0 : i32
    return %arg0, %c0_i32 : i32, i32
  }
}

</mosaic_0001>

<llo_original>
// kernel: tpu_custom_call.1
$region0: #{tpu_custom_call.1}
  #allocation0 [shape = 'u32[]', space=smem, size = 0x4, offset = 0x4, fixed_abs, tag = 'smem constant byte address 0x4 - core index']
  #allocation1 [shape = 'u32[72,128]{1,0:T(1,128)}', space=vmem, size = 0x9000, scoped, tag = 'internal scratch']
  %s0 = inlined_call_operand.vmem [shape: bf16[16,256], index: 0, kind: input, shape index: {}]
  %s1 = inlined_call_operand.vmem [shape: f32[16,1], index: 1, kind: input, shape index: {}]
  %s2 = inlined_call_operand.vmem [shape: f32[1,320], index: 2, kind: input, shape index: {}]
  %s3 = inlined_call_operand.vmem [shape: f32[1,320], index: 3, kind: input, shape index: {}]
  %s4 = inlined_call_operand.vmem [shape: bf16[256,320], index: 4, kind: input, shape index: {}]
  %s5 = inlined_call_operand.vmem [shape: f32[1,320], index: 5, kind: input, shape index: {}]
  %s6 = inlined_call_operand.vmem [shape: bf16[320,320], index: 6, kind: input, shape index: {}]
  %s7 = inlined_call_operand.vmem [shape: f32[1,320], index: 7, kind: input, shape index: {}]
  %s8 = inlined_call_operand.vmem [shape: f32[1,320], index: 8, kind: input, shape index: {}]
  %s9 = inlined_call_operand.vmem [shape: f32[1,320], index: 9, kind: input, shape index: {}]
  %s10 = inlined_call_operand.vmem [shape: bf16[320,1280], index: 10, kind: input, shape index: {}]
  %s11 = inlined_call_operand.vmem [shape: f32[1,1280], index: 11, kind: input, shape index: {}]
  %s12 = inlined_call_operand.vmem [shape: bf16[1280,320], index: 12, kind: input, shape index: {}]
  %s13 = inlined_call_operand.vmem [shape: f32[1,320], index: 13, kind: input, shape index: {}]
  %s14 = inlined_call_operand.vmem [shape: f32[1,320], index: 14, kind: input, shape index: {}]
  %s15 = inlined_call_operand.vmem [shape: f32[1,320], index: 15, kind: input, shape index: {}]
  %s16 = inlined_call_operand.vmem [shape: bf16[320,128], index: 16, kind: input, shape index: {}]
  %s17 = inlined_call_operand.vmem [shape: f32[1,128], index: 17, kind: input, shape index: {}]
  %s18 = inlined_call_operand.vmem [shape: f32[1,128], index: 18, kind: input, shape index: {}]
  %s19 = inlined_call_operand.hbm [shape: f32[16,128], index: 19, kind: output, shape index: {}]
  %s20 = sld [smem:[#allocation0]]
  $region86: #{tpu_custom_call.1} parent=0
    _
  %s22 = ssub.s32 1, %s20
  %s23 = scalar_select 0, %s22, %s20
  $region1: #{tpu_custom_call.1} parent=0
    #allocation2 [shape = 'u8[8192]{0}', space=vmem, size = 0x2000, scoped, tag = 'output window, operand 0, single buffered']
    #allocation3 [shape = 's32[1]{0}', space=sflag, size = 0x4, scoped, tag = 'scoped memory for tpu_custom_call.1']
    %24 = vsyncpa [#allocation3], 0
    // Predicated region
    $region2: #{tpu_custom_call.1} parent=1 // pred_check
      _
    $region3: #{tpu_custom_call.1} parent=1 // pred_check_branch
      %26 = sbr.rel (0) target = $region5
    $region4: #{tpu_custom_call.1} parent=1 // pred_region
      _
    $region5: #{tpu_custom_call.1} parent=1 // pred_fallthru
      _
    // Predicated region
    $region6: #{tpu_custom_call.1} parent=1 // pred_check
      _
    $region7: #{tpu_custom_call.1} parent=1 // pred_check_branch
      %28 = sbr.rel (0) target = $region9
    $region8: #{tpu_custom_call.1} parent=1 // pred_region
      _
    $region9: #{tpu_custom_call.1} parent=1 // pred_fallthru
      _
    // Predicated region
    $region10: #{tpu_custom_call.1} parent=1 // pred_check
      _
    $region11: #{tpu_custom_call.1} parent=1 // pred_check_branch
      %30 = sbr.rel (0) target = $region13
    $region12: #{tpu_custom_call.1} parent=1 // pred_region
      _
    $region13: #{tpu_custom_call.1} parent=1 // pred_fallthru
      _
    // Predicated region
    $region14: #{tpu_custom_call.1} parent=1 // pred_check
      _
    $region15: #{tpu_custom_call.1} parent=1 // pred_check_branch
      %32 = sbr.rel (0) target = $region17
    $region16: #{tpu_custom_call.1} parent=1 // pred_region
      _
    $region17: #{tpu_custom_call.1} parent=1 // pred_fallthru
      _
    // Predicated region
    $region18: #{tpu_custom_call.1} parent=1 // pred_check
      _
    $region19: #{tpu_custom_call.1} parent=1 // pred_check_branch
      %34 = sbr.rel (0) target = $region21
    $region20: #{tpu_custom_call.1} parent=1 // pred_region
      _
    $region21: #{tpu_custom_call.1} parent=1 // pred_fallthru
      _
    // Predicated region
    $region22: #{tpu_custom_call.1} parent=1 // pred_check
      _
    $region23: #{tpu_custom_call.1} parent=1 // pred_check_branch
      %36 = sbr.rel (0) target = $region25
    $region24: #{tpu_custom_call.1} parent=1 // pred_region
      _
    $region25: #{tpu_custom_call.1} parent=1 // pred_fallthru
      _
    // Predicated region
    $region26: #{tpu_custom_call.1} parent=1 // pred_check
      _
    $region27: #{tpu_custom_call.1} parent=1 // pred_check_branch
      %38 = sbr.rel (0) target = $region29
    $region28: #{tpu_custom_call.1} parent=1 // pred_region
      _
    $region29: #{tpu_custom_call.1} parent=1 // pred_fallthru
      _
    // Predicated region
    $region30: #{tpu_custom_call.1} parent=1 // pred_check
      _
    $region31: #{tpu_custom_call.1} parent=1 // pred_check_branch
      %40 = sbr.rel (0) target = $region33
    $region32: #{tpu_custom_call.1} parent=1 // pred_region
      _
    $region33: #{tpu_custom_call.1} parent=1 // pred_fallthru
      _
    // Predicated region
    $region34: #{tpu_custom_call.1} parent=1 // pred_check
      _
    $region35: #{tpu_custom_call.1} parent=1 // pred_check_branch
      %42 = sbr.rel (0) target = $region37
    $region36: #{tpu_custom_call.1} parent=1 // pred_region
      _
    $region37: #{tpu_custom_call.1} parent=1 // pred_fallthru
      _
    // Predicated region
    $region38: #{tpu_custom_call.1} parent=1 // pred_check
      _
    $region39: #{tpu_custom_call.1} parent=1 // pred_check_branch
      %44 = sbr.rel (0) target = $region41
    $region40: #{tpu_custom_call.1} parent=1 // pred_region
      _
    $region41: #{tpu_custom_call.1} parent=1 // pred_fallthru
      _
    // Predicated region
    $region42: #{tpu_custom_call.1} parent=1 // pred_check
      _
    $region43: #{tpu_custom_call.1} parent=1 // pred_check_branch
      %46 = sbr.rel (0) target = $region45
    $region44: #{tpu_custom_call.1} parent=1 // pred_region
      _
    $region45: #{tpu_custom_call.1} parent=1 // pred_fallthru
      _
    // Predicated region
    $region46: #{tpu_custom_call.1} parent=1 // pred_check
      _
    $region47: #{tpu_custom_call.1} parent=1 // pred_check_branch
      %48 = sbr.rel (0) target = $region49
    $region48: #{tpu_custom_call.1} parent=1 // pred_region
      _
    $region49: #{tpu_custom_call.1} parent=1 // pred_fallthru
      _
    // Predicated region
    $region50: #{tpu_custom_call.1} parent=1 // pred_check
      _
    $region51: #{tpu_custom_call.1} parent=1 // pred_check_branch
      %50 = sbr.rel (0) target = $region53
    $region52: #{tpu_custom_call.1} parent=1 // pred_region
      _
    $region53: #{tpu_custom_call.1} parent=1 // pred_fallthru
      _
    // Predicated region
    $region54: #{tpu_custom_call.1} parent=1 // pred_check
      _
    $region55: #{tpu_custom_call.1} parent=1 // pred_check_branch
      %52 = sbr.rel (0) target = $region57
    $region56: #{tpu_custom_call.1} parent=1 // pred_region
      _
    $region57: #{tpu_custom_call.1} parent=1 // pred_fallthru
      _
    // Predicated region
    $region58: #{tpu_custom_call.1} parent=1 // pred_check
      _
    $region59: #{tpu_custom_call.1} parent=1 // pred_check_branch
      %54 = sbr.rel (0) target = $region61
    $region60: #{tpu_custom_call.1} parent=1 // pred_region
      _
    $region61: #{tpu_custom_call.1} parent=1 // pred_fallthru
      _
    // Predicated region
    $region62: #{tpu_custom_call.1} parent=1 // pred_check
      _
    $region63: #{tpu_custom_call.1} parent=1 // pred_check_branch
      %56 = sbr.rel (0) target = $region65
    $region64: #{tpu_custom_call.1} parent=1 // pred_region
      _
    $region65: #{tpu_custom_call.1} parent=1 // pred_fallthru
      _
    // Predicated region
    $region66: #{tpu_custom_call.1} parent=1 // pred_check
      _
    $region67: #{tpu_custom_call.1} parent=1 // pred_check_branch
      %58 = sbr.rel (0) target = $region69
    $region68: #{tpu_custom_call.1} parent=1 // pred_region
      _
    $region69: #{tpu_custom_call.1} parent=1 // pred_fallthru
      _
    // Predicated region
    $region70: #{tpu_custom_call.1} parent=1 // pred_check
      _
    $region71: #{tpu_custom_call.1} parent=1 // pred_check_branch
      %60 = sbr.rel (0) target = $region73
    $region72: #{tpu_custom_call.1} parent=1 // pred_region
      _
    $region73: #{tpu_custom_call.1} parent=1 // pred_fallthru
      _
    // Predicated region
    $region74: #{tpu_custom_call.1} parent=1 // pred_check
      _
    $region75: #{tpu_custom_call.1} parent=1 // pred_check_branch
      %62 = sbr.rel (0) target = $region77
    $region76: #{tpu_custom_call.1} parent=1 // pred_region
      _
    $region77: #{tpu_custom_call.1} parent=1 // pred_fallthru
      _
    %v64 = vld [vmem:[%s0] sm:$0xff]
    %v65 = vld [vmem:[%s0 + $0x8] sm:$0xff]
    %v66 = vld [vmem:[%s4] sm:$0xff]
    %v67 = vld [vmem:[%s4 + $0x8] sm:$0xf]
    %v68 = vld [vmem:[%s4 + $0xc] sm:$0xff]
    %v69 = vld [vmem:[%s4 + $0x14] sm:$0xf]
    %v70 = vld [vmem:[%s4 + $0x18] sm:$0xff]
    %v71 = vld [vmem:[%s4 + $0x20] sm:$0xf]
    %v72 = vld [vmem:[%s4 + $0x24] sm:$0xff]
    %v73 = vld [vmem:[%s4 + $0x2c] sm:$0xf]
    %v74 = vld [vmem:[%s4 + $0x30] sm:$0xff]
    %v75 = vld [vmem:[%s4 + $0x38] sm:$0xf]
    %v76 = vld [vmem:[%s4 + $0x3c] sm:$0xff]
    %v77 = vld [vmem:[%s4 + $0x44] sm:$0xf]
    %v78 = vld [vmem:[%s4 + $0x48] sm:$0xff]
    %v79 = vld [vmem:[%s4 + $0x50] sm:$0xf]
    %v80 = vld [vmem:[%s4 + $0x54] sm:$0xff]
    %v81 = vld [vmem:[%s4 + $0x5c] sm:$0xf]
    %v82 = vld [vmem:[%s4 + $0x60] sm:$0xff]
    %v83 = vld [vmem:[%s4 + $0x68] sm:$0xf]
    %v84 = vld [vmem:[%s4 + $0x6c] sm:$0xff]
    %v85 = vld [vmem:[%s4 + $0x74] sm:$0xf]
    %v86 = vld [vmem:[%s4 + $0x78] sm:$0xff]
    %v87 = vld [vmem:[%s4 + $0x80] sm:$0xf]
    %v88 = vld [vmem:[%s4 + $0x84] sm:$0xff]
    %v89 = vld [vmem:[%s4 + $0x8c] sm:$0xf]
    %v90 = vld [vmem:[%s4 + $0x90] sm:$0xff]
    %v91 = vld [vmem:[%s4 + $0x98] sm:$0xf]
    %v92 = vld [vmem:[%s4 + $0x9c] sm:$0xff]
    %v93 = vld [vmem:[%s4 + $0xa4] sm:$0xf]
    %v94 = vld [vmem:[%s4 + $0xa8] sm:$0xff]
    %v95 = vld [vmem:[%s4 + $0xb0] sm:$0xf]
    %v96 = vld [vmem:[%s4 + $0xb4] sm:$0xff]
    %v97 = vld [vmem:[%s4 + $0xbc] sm:$0xf]
    %v98 = vld [vmem:[%s4 + $0xc0] sm:$0xff]
    %v99 = vld [vmem:[%s4 + $0xc8] sm:$0xf]
    %v100 = vld [vmem:[%s4 + $0xcc] sm:$0xff]
    %v101 = vld [vmem:[%s4 + $0xd4] sm:$0xf]
    %v102 = vld [vmem:[%s4 + $0xd8] sm:$0xff]
    %v103 = vld [vmem:[%s4 + $0xe0] sm:$0xf]
    %v104 = vld [vmem:[%s4 + $0xe4] sm:$0xff]
    %v105 = vld [vmem:[%s4 + $0xec] sm:$0xf]
    %v106 = vld [vmem:[%s4 + $0xf0] sm:$0xff]
    %v107 = vld [vmem:[%s4 + $0xf8] sm:$0xf]
    %v108 = vld [vmem:[%s4 + $0xfc] sm:$0xff]
    %v109 = vld [vmem:[%s4 + $0x104] sm:$0xf]
    %v110 = vld [vmem:[%s4 + $0x108] sm:$0xff]
    %v111 = vld [vmem:[%s4 + $0x110] sm:$0xf]
    %v112 = vld [vmem:[%s4 + $0x114] sm:$0xff]
    %v113 = vld [vmem:[%s4 + $0x11c] sm:$0xf]
    %v114 = vld [vmem:[%s4 + $0x120] sm:$0xff]
    %v115 = vld [vmem:[%s4 + $0x128] sm:$0xf]
    %v116 = vld [vmem:[%s4 + $0x12c] sm:$0xff]
    %v117 = vld [vmem:[%s4 + $0x134] sm:$0xf]
    %v118 = vld [vmem:[%s4 + $0x138] sm:$0xff]
    %v119 = vld [vmem:[%s4 + $0x140] sm:$0xf]
    %v120 = vld [vmem:[%s4 + $0x144] sm:$0xff]
    %v121 = vld [vmem:[%s4 + $0x14c] sm:$0xf]
    %v122 = vld [vmem:[%s4 + $0x150] sm:$0xff]
    %v123 = vld [vmem:[%s4 + $0x158] sm:$0xf]
    %v124 = vld [vmem:[%s4 + $0x15c] sm:$0xff]
    %v125 = vld [vmem:[%s4 + $0x164] sm:$0xf]
    %v126 = vld [vmem:[%s4 + $0x168] sm:$0xff]
    %v127 = vld [vmem:[%s4 + $0x170] sm:$0xf]
    %v128 = vld [vmem:[%s4 + $0x174] sm:$0xff]
    %v129 = vld [vmem:[%s4 + $0x17c] sm:$0xf]
    %v130 = vld [vmem:[%s5] sm:$0x7]
    %v132 = vperm.slane %v130, 0
    %v133 = vperm.slane %v130, 1
    %v134 = vperm.slane %v130, 2
    %v140 = vunpack.c.l.b16 %v64
    %v141 = vunpack.c.h.b16 %v64
    %v142 = vunpack.c.l.b16 %v65
    %v143 = vunpack.c.h.b16 %v65
    %v144 = vpack.c.b16 %v142, %v140
    %v145 = vpack.c.b16 %v143, %v141
    %v212 = vunpack.c.l.b16 %v66
    %v213 = vunpack.c.h.b16 %v66
    %v214 = vunpack.c.l.b16 %v67
    %v215 = vunpack.c.l.b16 %v68
    %v216 = vunpack.c.h.b16 %v68
    %v217 = vunpack.c.l.b16 %v69
    %v218 = vunpack.c.l.b16 %v70
    %v219 = vunpack.c.h.b16 %v70
    %v220 = vunpack.c.l.b16 %v71
    %v221 = vunpack.c.l.b16 %v72
    %v222 = vunpack.c.h.b16 %v72
    %v223 = vunpack.c.l.b16 %v73
    %v224 = vunpack.c.l.b16 %v74
    %v225 = vunpack.c.h.b16 %v74
    %v226 = vunpack.c.l.b16 %v75
    %v227 = vunpack.c.l.b16 %v76
    %v228 = vunpack.c.h.b16 %v76
    %v229 = vunpack.c.l.b16 %v77
    %v230 = vunpack.c.l.b16 %v78
    %v231 = vunpack.c.h.b16 %v78
    %v232 = vunpack.c.l.b16 %v79
    %v233 = vunpack.c.l.b16 %v80
    %v234 = vunpack.c.h.b16 %v80
    %v235 = vunpack.c.l.b16 %v81
    %v236 = vunpack.c.l.b16 %v82
    %v237 = vunpack.c.h.b16 %v82
    %v238 = vunpack.c.l.b16 %v83
    %v239 = vunpack.c.l.b16 %v84
    %v240 = vunpack.c.h.b16 %v84
    %v241 = vunpack.c.l.b16 %v85
    %v242 = vunpack.c.l.b16 %v86
    %v243 = vunpack.c.h.b16 %v86
    %v244 = vunpack.c.l.b16 %v87
    %v245 = vunpack.c.l.b16 %v88
    %v246 = vunpack.c.h.b16 %v88
    %v247 = vunpack.c.l.b16 %v89
    %v248 = vunpack.c.l.b16 %v90
    %v249 = vunpack.c.h.b16 %v90
    %v250 = vunpack.c.l.b16 %v91
    %v251 = vunpack.c.l.b16 %v92
    %v252 = vunpack.c.h.b16 %v92
    %v253 = vunpack.c.l.b16 %v93
    %v254 = vunpack.c.l.b16 %v94
    %v255 = vunpack.c.h.b16 %v94
    %v256 = vunpack.c.l.b16 %v95
    %v257 = vunpack.c.l.b16 %v96
    %v258 = vunpack.c.h.b16 %v96
    %v259 = vunpack.c.l.b16 %v97
    %v260 = vunpack.c.l.b16 %v98
    %v261 = vunpack.c.h.b16 %v98
    %v262 = vunpack.c.l.b16 %v99
    %v263 = vunpack.c.l.b16 %v100
    %v264 = vunpack.c.h.b16 %v100
    %v265 = vunpack.c.l.b16 %v101
    %v266 = vunpack.c.l.b16 %v102
    %v267 = vunpack.c.h.b16 %v102
    %v268 = vunpack.c.l.b16 %v103
    %v269 = vunpack.c.l.b16 %v104
    %v270 = vunpack.c.h.b16 %v104
    %v271 = vunpack.c.l.b16 %v105
    %v272 = vunpack.c.l.b16 %v106
    %v273 = vunpack.c.h.b16 %v106
    %v274 = vunpack.c.l.b16 %v107
    %v275 = vunpack.c.l.b16 %v108
    %v276 = vunpack.c.h.b16 %v108
    %v277 = vunpack.c.l.b16 %v109
    %v278 = vunpack.c.l.b16 %v110
    %v279 = vunpack.c.h.b16 %v110
    %v280 = vunpack.c.l.b16 %v111
    %v281 = vunpack.c.l.b16 %v112
    %v282 = vunpack.c.h.b16 %v112
    %v283 = vunpack.c.l.b16 %v113
    %v284 = vunpack.c.l.b16 %v114
    %v285 = vunpack.c.h.b16 %v114
    %v286 = vunpack.c.l.b16 %v115
    %v287 = vunpack.c.l.b16 %v116
    %v288 = vunpack.c.h.b16 %v116
    %v289 = vunpack.c.l.b16 %v117
    %v290 = vunpack.c.l.b16 %v118
    %v291 = vunpack.c.h.b16 %v118
    %v292 = vunpack.c.l.b16 %v119
    %v293 = vunpack.c.l.b16 %v120
    %v294 = vunpack.c.h.b16 %v120
    %v295 = vunpack.c.l.b16 %v121
    %v296 = vunpack.c.l.b16 %v122
    %v297 = vunpack.c.h.b16 %v122
    %v298 = vunpack.c.l.b16 %v123
    %v299 = vunpack.c.l.b16 %v124
    %v300 = vunpack.c.h.b16 %v124
    %v301 = vunpack.c.l.b16 %v125
    %v302 = vunpack.c.l.b16 %v126
    %v303 = vunpack.c.h.b16 %v126
    %v304 = vunpack.c.l.b16 %v127
    %v305 = vunpack.c.l.b16 %v128
    %v306 = vunpack.c.h.b16 %v128
    %v307 = vunpack.c.l.b16 %v129
    %v308 = vpack.c.b16 %v215, %v212
    %v309 = vpack.c.b16 %v216, %v213
    %v310 = vpack.c.b16 %v217, %v214
    %v311 = vpack.c.b16 %v221, %v218
    %v312 = vpack.c.b16 %v222, %v219
    %v313 = vpack.c.b16 %v223, %v220
    %v314 = vpack.c.b16 %v227, %v224
    %v315 = vpack.c.b16 %v228, %v225
    %v316 = vpack.c.b16 %v229, %v226
    %v317 = vpack.c.b16 %v233, %v230
    %v318 = vpack.c.b16 %v234, %v231
    %v319 = vpack.c.b16 %v235, %v232
    %v320 = vpack.c.b16 %v239, %v236
    %v321 = vpack.c.b16 %v240, %v237
    %v322 = vpack.c.b16 %v241, %v238
    %v323 = vpack.c.b16 %v245, %v242
    %v324 = vpack.c.b16 %v246, %v243
    %v325 = vpack.c.b16 %v247, %v244
    %v326 = vpack.c.b16 %v251, %v248
    %v327 = vpack.c.b16 %v252, %v249
    %v328 = vpack.c.b16 %v253, %v250
    %v329 = vpack.c.b16 %v257, %v254
    %v330 = vpack.c.b16 %v258, %v255
    %v331 = vpack.c.b16 %v259, %v256
    %v332 = vpack.c.b16 %v263, %v260
    %v333 = vpack.c.b16 %v264, %v261
    %v334 = vpack.c.b16 %v265, %v262
    %v335 = vpack.c.b16 %v269, %v266
    %v336 = vpack.c.b16 %v270, %v267
    %v337 = vpack.c.b16 %v271, %v268
    %v338 = vpack.c.b16 %v275, %v272
    %v339 = vpack.c.b16 %v276, %v273
    %v340 = vpack.c.b16 %v277, %v274
    %v341 = vpack.c.b16 %v281, %v278
    %v342 = vpack.c.b16 %v282, %v279
    %v343 = vpack.c.b16 %v283, %v280
    %v344 = vpack.c.b16 %v287, %v284
    %v345 = vpack.c.b16 %v288, %v285
    %v346 = vpack.c.b16 %v289, %v286
    %v347 = vpack.c.b16 %v293, %v290
    %v348 = vpack.c.b16 %v294, %v291
    %v349 = vpack.c.b16 %v295, %v292
    %v350 = vpack.c.b16 %v299, %v296
    %v351 = vpack.c.b16 %v300, %v297
    %v352 = vpack.c.b16 %v301, %v298
    %v353 = vpack.c.b16 %v305, %v302
    %v354 = vpack.c.b16 %v306, %v303
    %v355 = vpack.c.b16 %v307, %v304
    %404 = vmatpush.bf16.msra.mxu0 %v329
    %405 = vmatpush.bf16.msra.mxu0 %v326
    %406 = vmatpush.bf16.msra.mxu0 %v323
    %407 = vmatpush.bf16.msra.mxu0 %v320
    %408 = vmatpush.bf16.msra.mxu0 %v317
    %409 = vmatpush.bf16.msra.mxu0 %v314
    %410 = vmatpush.bf16.msra.mxu0 %v311
    %411 = vmatpush.bf16.msra.mxu0 %v308
    %412 = vmatmul.bf16.gmra.mxu0 %v144
    %v413 = vpop.f32.mrf.mxu0
    %v414 = vadd.f32 %v132, %v413
    %v415 = vpop.f32.mrf.mxu0
    %v416 = vadd.f32 %v132, %v415
    %417 = vdwg.mxu0
    %418 = vmatpush.bf16.msra.mxu0 %v353
    %419 = vmatpush.bf16.msra.mxu0 %v350
    %420 = vmatpush.bf16.msra.mxu0 %v347
    %421 = vmatpush.bf16.msra.mxu0 %v344
    %422 = vmatpush.bf16.msra.mxu0 %v341
    %423 = vmatpush.bf16.msra.mxu0 %v338
    %424 = vmatpush.bf16.msra.mxu0 %v335
    %425 = vmatpush.bf16.msra.mxu0 %v332
    %426 = vmatmul.bf16.gmra.mxu0 %v145
    %v427 = vpop.f32.mrf.mxu0
    %v428 = vadd.f32 %v414, %v427
    %v429 = vpop.f32.mrf.mxu0
    %v430 = vadd.f32 %v416, %v429
    %431 = vdwg.mxu0
    %432 = vmatpush.bf16.msra.mxu0 %v330
    %433 = vmatpush.bf16.msra.mxu0 %v327
    %434 = vmatpush.bf16.msra.mxu0 %v324
    %435 = vmatpush.bf16.msra.mxu0 %v321
    %436 = vmatpush.bf16.msra.mxu0 %v318
    %437 = vmatpush.bf16.msra.mxu0 %v315
    %438 = vmatpush.bf16.msra.mxu0 %v312
    %439 = vmatpush.bf16.msra.mxu0 %v309
    %440 = vmatmul.bf16.gmra.mxu0 %v144
    %v441 = vpop.f32.mrf.mxu0
    %v442 = vadd.f32 %v133, %v441
    %v443 = vpop.f32.mrf.mxu0
    %v444 = vadd.f32 %v133, %v443
    %445 = vdwg.mxu0
    %446 = vmatpush.bf16.msra.mxu0 %v354
    %447 = vmatpush.bf16.msra.mxu0 %v351
    %448 = vmatpush.bf16.msra.mxu0 %v348
    %449 = vmatpush.bf16.msra.mxu0 %v345
    %450 = vmatpush.bf16.msra.mxu0 %v342
    %451 = vmatpush.bf16.msra.mxu0 %v339
    %452 = vmatpush.bf16.msra.mxu0 %v336
    %453 = vmatpush.bf16.msra.mxu0 %v333
    %454 = vmatmul.bf16.gmra.mxu0 %v145
    %v455 = vpop.f32.mrf.mxu0
    %v456 = vadd.f32 %v442, %v455
    %v457 = vpop.f32.mrf.mxu0
    %v458 = vadd.f32 %v444, %v457
    %459 = vdwg.mxu0
    %460 = vmatpush.bf16.msra.mxu0 %v331
    %461 = vmatpush.bf16.msra.mxu0 %v328
    %462 = vmatpush.bf16.msra.mxu0 %v325
    %463 = vmatpush.bf16.msra.mxu0 %v322
    %464 = vmatpush.bf16.msra.mxu0 %v319
    %465 = vmatpush.bf16.msra.mxu0 %v316
    %466 = vmatpush.bf16.msra.mxu0 %v313
    %467 = vmatpush.bf16.msra.mxu0 %v310
    %468 = vmatmul.bf16.gmra.mxu0 %v144
    %v469 = vpop.f32.mrf.mxu0
    %v470 = vadd.f32 %v134, %v469
    %v471 = vpop.f32.mrf.mxu0
    %v472 = vadd.f32 %v134, %v471
    %473 = vdwg.mxu0
    %474 = vmatpush.bf16.msra.mxu0 %v355
    %475 = vmatpush.bf16.msra.mxu0 %v352
    %476 = vmatpush.bf16.msra.mxu0 %v349
    %477 = vmatpush.bf16.msra.mxu0 %v346
    %478 = vmatpush.bf16.msra.mxu0 %v343
    %479 = vmatpush.bf16.msra.mxu0 %v340
    %480 = vmatpush.bf16.msra.mxu0 %v337
    %481 = vmatpush.bf16.msra.mxu0 %v334
    %482 = vmatmul.bf16.gmra.mxu0 %v145
    %v483 = vpop.f32.mrf.mxu0
    %v484 = vadd.f32 %v470, %v483
    %v485 = vpop.f32.mrf.mxu0
    %v486 = vadd.f32 %v472, %v485
    %487 = vdwg.mxu0
    %v488 = vpack.c.bf16 %v430, %v428
    %v489 = vpack.c.bf16 %v458, %v456
    %v490 = vpack.c.bf16 %v486, %v484
    %v491 = vld [vmem:[%s6] sm:$0xff]
    %v492 = vld [vmem:[%s6 + $0x8] sm:$0xf]
    %v493 = vld [vmem:[%s6 + $0xc] sm:$0xff]
    %v494 = vld [vmem:[%s6 + $0x14] sm:$0xf]
    %v495 = vld [vmem:[%s6 + $0x18] sm:$0xff]
    %v496 = vld [vmem:[%s6 + $0x20] sm:$0xf]
    %v497 = vld [vmem:[%s6 + $0x24] sm:$0xff]
    %v498 = vld [vmem:[%s6 + $0x2c] sm:$0xf]
    %v499 = vld [vmem:[%s6 + $0x30] sm:$0xff]
    %v500 = vld [vmem:[%s6 + $0x38] sm:$0xf]
    %v501 = vld [vmem:[%s6 + $0x3c] sm:$0xff]
    %v502 = vld [vmem:[%s6 + $0x44] sm:$0xf]
    %v503 = vld [vmem:[%s6 + $0x48] sm:$0xff]
    %v504 = vld [vmem:[%s6 + $0x50] sm:$0xf]
    %v505 = vld [vmem:[%s6 + $0x54] sm:$0xff]
    %v506 = vld [vmem:[%s6 + $0x5c] sm:$0xf]
    %v507 = vld [vmem:[%s6 + $0x60] sm:$0xff]
    %v508 = vld [vmem:[%s6 + $0x68] sm:$0xf]
    %v509 = vld [vmem:[%s6 + $0x6c] sm:$0xff]
    %v510 = vld [vmem:[%s6 + $0x74] sm:$0xf]
    %v511 = vld [vmem:[%s6 + $0x78] sm:$0xff]
    %v512 = vld [vmem:[%s6 + $0x80] sm:$0xf]
    %v513 = vld [vmem:[%s6 + $0x84] sm:$0xff]
    %v514 = vld [vmem:[%s6 + $0x8c] sm:$0xf]
    %v515 = vld [vmem:[%s6 + $0x90] sm:$0xff]
    %v516 = vld [vmem:[%s6 + $0x98] sm:$0xf]
    %v517 = vld [vmem:[%s6 + $0x9c] sm:$0xff]
    %v518 = vld [vmem:[%s6 + $0xa4] sm:$0xf]
    %v519 = vld [vmem:[%s6 + $0xa8] sm:$0xff]
    %v520 = vld [vmem:[%s6 + $0xb0] sm:$0xf]
    %v521 = vld [vmem:[%s6 + $0xb4] sm:$0xff]
    %v522 = vld [vmem:[%s6 + $0xbc] sm:$0xf]
    %v523 = vld [vmem:[%s6 + $0xc0] sm:$0xff]
    %v524 = vld [vmem:[%s6 + $0xc8] sm:$0xf]
    %v525 = vld [vmem:[%s6 + $0xcc] sm:$0xff]
    %v526 = vld [vmem:[%s6 + $0xd4] sm:$0xf]
    %v527 = vld [vmem:[%s6 + $0xd8] sm:$0xff]
    %v528 = vld [vmem:[%s6 + $0xe0] sm:$0xf]
    %v529 = vld [vmem:[%s6 + $0xe4] sm:$0xff]
    %v530 = vld [vmem:[%s6 + $0xec] sm:$0xf]
    %v531 = vld [vmem:[%s6 + $0xf0] sm:$0xff]
    %v532 = vld [vmem:[%s6 + $0xf8] sm:$0xf]
    %v533 = vld [vmem:[%s6 + $0xfc] sm:$0xff]
    %v534 = vld [vmem:[%s6 + $0x104] sm:$0xf]
    %v535 = vld [vmem:[%s6 + $0x108] sm:$0xff]
    %v536 = vld [vmem:[%s6 + $0x110] sm:$0xf]
    %v537 = vld [vmem:[%s6 + $0x114] sm:$0xff]
    %v538 = vld [vmem:[%s6 + $0x11c] sm:$0xf]
    %v539 = vld [vmem:[%s6 + $0x120] sm:$0xff]
    %v540 = vld [vmem:[%s6 + $0x128] sm:$0xf]
    %v541 = vld [vmem:[%s6 + $0x12c] sm:$0xff]
    %v542 = vld [vmem:[%s6 + $0x134] sm:$0xf]
    %v543 = vld [vmem:[%s6 + $0x138] sm:$0xff]
    %v544 = vld [vmem:[%s6 + $0x140] sm:$0xf]
    %v545 = vld [vmem:[%s6 + $0x144] sm:$0xff]
    %v546 = vld [vmem:[%s6 + $0x14c] sm:$0xf]
    %v547 = vld [vmem:[%s6 + $0x150] sm:$0xff]
    %v548 = vld [vmem:[%s6 + $0x158] sm:$0xf]
    %v549 = vld [vmem:[%s6 + $0x15c] sm:$0xff]
    %v550 = vld [vmem:[%s6 + $0x164] sm:$0xf]
    %v551 = vld [vmem:[%s6 + $0x168] sm:$0xff]
    %v552 = vld [vmem:[%s6 + $0x170] sm:$0xf]
    %v553 = vld [vmem:[%s6 + $0x174] sm:$0xff]
    %v554 = vld [vmem:[%s6 + $0x17c] sm:$0xf]
    %v555 = vld [vmem:[%s6 + $0x180] sm:$0xff]
    %v556 = vld [vmem:[%s6 + $0x188] sm:$0xf]
    %v557 = vld [vmem:[%s6 + $0x18c] sm:$0xff]
    %v558 = vld [vmem:[%s6 + $0x194] sm:$0xf]
    %v559 = vld [vmem:[%s6 + $0x198] sm:$0xff]
    %v560 = vld [vmem:[%s6 + $0x1a0] sm:$0xf]
    %v561 = vld [vmem:[%s6 + $0x1a4] sm:$0xff]
    %v562 = vld [vmem:[%s6 + $0x1ac] sm:$0xf]
    %v563 = vld [vmem:[%s6 + $0x1b0] sm:$0xff]
    %v564 = vld [vmem:[%s6 + $0x1b8] sm:$0xf]
    %v565 = vld [vmem:[%s6 + $0x1bc] sm:$0xff]
    %v566 = vld [vmem:[%s6 + $0x1c4] sm:$0xf]
    %v567 = vld [vmem:[%s6 + $0x1c8] sm:$0xff]
    %v568 = vld [vmem:[%s6 + $0x1d0] sm:$0xf]
    %v569 = vld [vmem:[%s6 + $0x1d4] sm:$0xff]
    %v570 = vld [vmem:[%s6 + $0x1dc] sm:$0xf]
    %v571 = vld [vmem:[%s7] sm:$0x7]
    %v573 = vperm.slane %v571, 0
    %v574 = vperm.slane %v571, 1
    %v575 = vperm.slane %v571, 2
    %v659 = vunpack.c.l.b16 %v491
    %v660 = vunpack.c.h.b16 %v491
    %v661 = vunpack.c.l.b16 %v492
    %v662 = vunpack.c.l.b16 %v493
    %v663 = vunpack.c.h.b16 %v493
    %v664 = vunpack.c.l.b16 %v494
    %v665 = vunpack.c.l.b16 %v495
    %v666 = vunpack.c.h.b16 %v495
    %v667 = vunpack.c.l.b16 %v496
    %v668 = vunpack.c.l.b16 %v497
    %v669 = vunpack.c.h.b16 %v497
    %v670 = vunpack.c.l.b16 %v498
    %v671 = vunpack.c.l.b16 %v499
    %v672 = vunpack.c.h.b16 %v499
    %v673 = vunpack.c.l.b16 %v500
    %v674 = vunpack.c.l.b16 %v501
    %v675 = vunpack.c.h.b16 %v501
    %v676 = vunpack.c.l.b16 %v502
    %v677 = vunpack.c.l.b16 %v503
    %v678 = vunpack.c.h.b16 %v503
    %v679 = vunpack.c.l.b16 %v504
    %v680 = vunpack.c.l.b16 %v505
    %v681 = vunpack.c.h.b16 %v505
    %v682 = vunpack.c.l.b16 %v506
    %v683 = vunpack.c.l.b16 %v507
    %v684 = vunpack.c.h.b16 %v507
    %v685 = vunpack.c.l.b16 %v508
    %v686 = vunpack.c.l.b16 %v509
    %v687 = vunpack.c.h.b16 %v509
    %v688 = vunpack.c.l.b16 %v510
    %v689 = vunpack.c.l.b16 %v511
    %v690 = vunpack.c.h.b16 %v511
    %v691 = vunpack.c.l.b16 %v512
    %v692 = vunpack.c.l.b16 %v513
    %v693 = vunpack.c.h.b16 %v513
    %v694 = vunpack.c.l.b16 %v514
    %v695 = vunpack.c.l.b16 %v515
    %v696 = vunpack.c.h.b16 %v515
    %v697 = vunpack.c.l.b16 %v516
    %v698 = vunpack.c.l.b16 %v517
    %v699 = vunpack.c.h.b16 %v517
    %v700 = vunpack.c.l.b16 %v518
    %v701 = vunpack.c.l.b16 %v519
    %v702 = vunpack.c.h.b16 %v519
    %v703 = vunpack.c.l.b16 %v520
    %v704 = vunpack.c.l.b16 %v521
    %v705 = vunpack.c.h.b16 %v521
    %v706 = vunpack.c.l.b16 %v522
    %v707 = vunpack.c.l.b16 %v523
    %v708 = vunpack.c.h.b16 %v523
    %v709 = vunpack.c.l.b16 %v524
    %v710 = vunpack.c.l.b16 %v525
    %v711 = vunpack.c.h.b16 %v525
    %v712 = vunpack.c.l.b16 %v526
    %v713 = vunpack.c.l.b16 %v527
    %v714 = vunpack.c.h.b16 %v527
    %v715 = vunpack.c.l.b16 %v528
    %v716 = vunpack.c.l.b16 %v529
    %v717 = vunpack.c.h.b16 %v529
    %v718 = vunpack.c.l.b16 %v530
    %v719 = vunpack.c.l.b16 %v531
    %v720 = vunpack.c.h.b16 %v531
    %v721 = vunpack.c.l.b16 %v532
    %v722 = vunpack.c.l.b16 %v533
    %v723 = vunpack.c.h.b16 %v533
    %v724 = vunpack.c.l.b16 %v534
    %v725 = vunpack.c.l.b16 %v535
    %v726 = vunpack.c.h.b16 %v535
    %v727 = vunpack.c.l.b16 %v536
    %v728 = vunpack.c.l.b16 %v537
    %v729 = vunpack.c.h.b16 %v537
    %v730 = vunpack.c.l.b16 %v538
    %v731 = vunpack.c.l.b16 %v539
    %v732 = vunpack.c.h.b16 %v539
    %v733 = vunpack.c.l.b16 %v540
    %v734 = vunpack.c.l.b16 %v541
    %v735 = vunpack.c.h.b16 %v541
    %v736 = vunpack.c.l.b16 %v542
    %v737 = vunpack.c.l.b16 %v543
    %v738 = vunpack.c.h.b16 %v543
    %v739 = vunpack.c.l.b16 %v544
    %v740 = vunpack.c.l.b16 %v545
    %v741 = vunpack.c.h.b16 %v545
    %v742 = vunpack.c.l.b16 %v546
    %v743 = vunpack.c.l.b16 %v547
    %v744 = vunpack.c.h.b16 %v547
    %v745 = vunpack.c.l.b16 %v548
    %v746 = vunpack.c.l.b16 %v549
    %v747 = vunpack.c.h.b16 %v549
    %v748 = vunpack.c.l.b16 %v550
    %v749 = vunpack.c.l.b16 %v551
    %v750 = vunpack.c.h.b16 %v551
    %v751 = vunpack.c.l.b16 %v552
    %v752 = vunpack.c.l.b16 %v553
    %v753 = vunpack.c.h.b16 %v553
    %v754 = vunpack.c.l.b16 %v554
    %v755 = vunpack.c.l.b16 %v555
    %v756 = vunpack.c.h.b16 %v555
    %v757 = vunpack.c.l.b16 %v556
    %v758 = vunpack.c.l.b16 %v557
    %v759 = vunpack.c.h.b16 %v557
    %v760 = vunpack.c.l.b16 %v558
    %v761 = vunpack.c.l.b16 %v559
    %v762 = vunpack.c.h.b16 %v559
    %v763 = vunpack.c.l.b16 %v560
    %v764 = vunpack.c.l.b16 %v561
    %v765 = vunpack.c.h.b16 %v561
    %v766 = vunpack.c.l.b16 %v562
    %v767 = vunpack.c.l.b16 %v563
    %v768 = vunpack.c.h.b16 %v563
    %v769 = vunpack.c.l.b16 %v564
    %v770 = vunpack.c.l.b16 %v565
    %v771 = vunpack.c.h.b16 %v565
    %v772 = vunpack.c.l.b16 %v566
    %v773 = vunpack.c.l.b16 %v567
    %v774 = vunpack.c.h.b16 %v567
    %v775 = vunpack.c.l.b16 %v568
    %v776 = vunpack.c.l.b16 %v569
    %v777 = vunpack.c.h.b16 %v569
    %v778 = vunpack.c.l.b16 %v570
    %v779 = vpack.c.b16 %v662, %v659
    %v780 = vpack.c.b16 %v663, %v660
    %v781 = vpack.c.b16 %v664, %v661
    %v782 = vpack.c.b16 %v668, %v665
    %v783 = vpack.c.b16 %v669, %v666
    %v784 = vpack.c.b16 %v670, %v667
    %v785 = vpack.c.b16 %v674, %v671
    %v786 = vpack.c.b16 %v675, %v672
    %v787 = vpack.c.b16 %v676, %v673
    %v788 = vpack.c.b16 %v680, %v677
    %v789 = vpack.c.b16 %v681, %v678
    %v790 = vpack.c.b16 %v682, %v679
    %v791 = vpack.c.b16 %v686, %v683
    %v792 = vpack.c.b16 %v687, %v684
    %v793 = vpack.c.b16 %v688, %v685
    %v794 = vpack.c.b16 %v692, %v689
    %v795 = vpack.c.b16 %v693, %v690
    %v796 = vpack.c.b16 %v694, %v691
    %v797 = vpack.c.b16 %v698, %v695
    %v798 = vpack.c.b16 %v699, %v696
    %v799 = vpack.c.b16 %v700, %v697
    %v800 = vpack.c.b16 %v704, %v701
    %v801 = vpack.c.b16 %v705, %v702
    %v802 = vpack.c.b16 %v706, %v703
    %v803 = vpack.c.b16 %v710, %v707
    %v804 = vpack.c.b16 %v711, %v708
    %v805 = vpack.c.b16 %v712, %v709
    %v806 = vpack.c.b16 %v716, %v713
    %v807 = vpack.c.b16 %v717, %v714
    %v808 = vpack.c.b16 %v718, %v715
    %v809 = vpack.c.b16 %v722, %v719
    %v810 = vpack.c.b16 %v723, %v720
    %v811 = vpack.c.b16 %v724, %v721
    %v812 = vpack.c.b16 %v728, %v725
    %v813 = vpack.c.b16 %v729, %v726
    %v814 = vpack.c.b16 %v730, %v727
    %v815 = vpack.c.b16 %v734, %v731
    %v816 = vpack.c.b16 %v735, %v732
    %v817 = vpack.c.b16 %v736, %v733
    %v818 = vpack.c.b16 %v740, %v737
    %v819 = vpack.c.b16 %v741, %v738
    %v820 = vpack.c.b16 %v742, %v739
    %v821 = vpack.c.b16 %v746, %v743
    %v822 = vpack.c.b16 %v747, %v744
    %v823 = vpack.c.b16 %v748, %v745
    %v824 = vpack.c.b16 %v752, %v749
    %v825 = vpack.c.b16 %v753, %v750
    %v826 = vpack.c.b16 %v754, %v751
    %v827 = vpack.c.b16 %v758, %v755
    %v828 = vpack.c.b16 %v759, %v756
    %v829 = vpack.c.b16 %v760, %v757
    %v830 = vpack.c.b16 %v764, %v761
    %v831 = vpack.c.b16 %v765, %v762
    %v832 = vpack.c.b16 %v766, %v763
    %v833 = vpack.c.b16 %v770, %v767
    %v834 = vpack.c.b16 %v771, %v768
    %v835 = vpack.c.b16 %v772, %v769
    %v836 = vpack.c.b16 %v776, %v773
    %v837 = vpack.c.b16 %v777, %v774
    %v838 = vpack.c.b16 %v778, %v775
    %vm899 = vcmask 523264
    %v901 = vsel %vm899, %v490, 0
    %903 = vmatpush.bf16.msra.mxu0 %v800
    %904 = vmatpush.bf16.msra.mxu0 %v797
    %905 = vmatpush.bf16.msra.mxu0 %v794
    %906 = vmatpush.bf16.msra.mxu0 %v791
    %907 = vmatpush.bf16.msra.mxu0 %v788
    %908 = vmatpush.bf16.msra.mxu0 %v785
    %909 = vmatpush.bf16.msra.mxu0 %v782
    %910 = vmatpush.bf16.msra.mxu0 %v779
    %911 = vmatmul.bf16.gmra.mxu0 %v488
    %v912 = vpop.f32.mrf.mxu0
    %v913 = vadd.f32 %v573, %v912
    %v914 = vpop.f32.mrf.mxu0
    %v915 = vadd.f32 %v573, %v914
    %916 = vdwg.mxu0
    %917 = vmatpush.bf16.msra.mxu0 %v824
    %918 = vmatpush.bf16.msra.mxu0 %v821
    %919 = vmatpush.bf16.msra.mxu0 %v818
    %920 = vmatpush.bf16.msra.mxu0 %v815
    %921 = vmatpush.bf16.msra.mxu0 %v812
    %922 = vmatpush.bf16.msra.mxu0 %v809
    %923 = vmatpush.bf16.msra.mxu0 %v806
    %924 = vmatpush.bf16.msra.mxu0 %v803
    %925 = vmatmul.bf16.gmra.mxu0 %v489
    %v926 = vpop.f32.mrf.mxu0
    %v927 = vadd.f32 %v913, %v926
    %v928 = vpop.f32.mrf.mxu0
    %v929 = vadd.f32 %v915, %v928
    %930 = vdwg.mxu0
    %931 = vmatpush.bf16.msra.mxu0 0
    %932 = vmatpush.bf16.msra.mxu0 0
    %933 = vmatpush.bf16.msra.mxu0 0
    %934 = vmatpush.bf16.msra.mxu0 0
    %935 = vmatpush.bf16.msra.mxu0 %v836
    %936 = vmatpush.bf16.msra.mxu0 %v833
    %937 = vmatpush.bf16.msra.mxu0 %v830
    %938 = vmatpush.bf16.msra.mxu0 %v827
    %939 = vmatmul.bf16.gmra.mxu0 %v901
    %v940 = vpop.f32.mrf.mxu0
    %v941 = vadd.f32 %v927, %v940
    %v942 = vpop.f32.mrf.mxu0
    %v943 = vadd.f32 %v929, %v942
    %944 = vdwg.mxu0
    %945 = vmatpush.bf16.msra.mxu0 %v801
    %946 = vmatpush.bf16.msra.mxu0 %v798
    %947 = vmatpush.bf16.msra.mxu0 %v795
    %948 = vmatpush.bf16.msra.mxu0 %v792
    %949 = vmatpush.bf16.msra.mxu0 %v789
    %950 = vmatpush.bf16.msra.mxu0 %v786
    %951 = vmatpush.bf16.msra.mxu0 %v783
    %952 = vmatpush.bf16.msra.mxu0 %v780
    %953 = vmatmul.bf16.gmra.mxu0 %v488
    %v954 = vpop.f32.mrf.mxu0
    %v955 = vadd.f32 %v574, %v954
    %v956 = vpop.f32.mrf.mxu0
    %v957 = vadd.f32 %v574, %v956
    %958 = vdwg.mxu0
    %959 = vmatpush.bf16.msra.mxu0 %v825
    %960 = vmatpush.bf16.msra.mxu0 %v822
    %961 = vmatpush.bf16.msra.mxu0 %v819
    %962 = vmatpush.bf16.msra.mxu0 %v816
    %963 = vmatpush.bf16.msra.mxu0 %v813
    %964 = vmatpush.bf16.msra.mxu0 %v810
    %965 = vmatpush.bf16.msra.mxu0 %v807
    %966 = vmatpush.bf16.msra.mxu0 %v804
    %967 = vmatmul.bf16.gmra.mxu0 %v489
    %v968 = vpop.f32.mrf.mxu0
    %v969 = vadd.f32 %v955, %v968
    %v970 = vpop.f32.mrf.mxu0
    %v971 = vadd.f32 %v957, %v970
    %972 = vdwg.mxu0
    %973 = vmatpush.bf16.msra.mxu0 0
    %974 = vmatpush.bf16.msra.mxu0 0
    %975 = vmatpush.bf16.msra.mxu0 0
    %976 = vmatpush.bf16.msra.mxu0 0
    %977 = vmatpush.bf16.msra.mxu0 %v837
    %978 = vmatpush.bf16.msra.mxu0 %v834
    %979 = vmatpush.bf16.msra.mxu0 %v831
    %980 = vmatpush.bf16.msra.mxu0 %v828
    %981 = vmatmul.bf16.gmra.mxu0 %v901
    %v982 = vpop.f32.mrf.mxu0
    %v983 = vadd.f32 %v969, %v982
    %v984 = vpop.f32.mrf.mxu0
    %v985 = vadd.f32 %v971, %v984
    %986 = vdwg.mxu0
    %987 = vmatpush.bf16.msra.mxu0 %v802
    %988 = vmatpush.bf16.msra.mxu0 %v799
    %989 = vmatpush.bf16.msra.mxu0 %v796
    %990 = vmatpush.bf16.msra.mxu0 %v793
    %991 = vmatpush.bf16.msra.mxu0 %v790
    %992 = vmatpush.bf16.msra.mxu0 %v787
    %993 = vmatpush.bf16.msra.mxu0 %v784
    %994 = vmatpush.bf16.msra.mxu0 %v781
    %995 = vmatmul.bf16.gmra.mxu0 %v488
    %v996 = vpop.f32.mrf.mxu0
    %v997 = vadd.f32 %v575, %v996
    %v998 = vpop.f32.mrf.mxu0
    %v999 = vadd.f32 %v575, %v998
    %1000 = vdwg.mxu0
    %1001 = vmatpush.bf16.msra.mxu0 %v826
    %1002 = vmatpush.bf16.msra.mxu0 %v823
    %1003 = vmatpush.bf16.msra.mxu0 %v820
    %1004 = vmatpush.bf16.msra.mxu0 %v817
    %1005 = vmatpush.bf16.msra.mxu0 %v814
    %1006 = vmatpush.bf16.msra.mxu0 %v811
    %1007 = vmatpush.bf16.msra.mxu0 %v808
    %1008 = vmatpush.bf16.msra.mxu0 %v805
    %1009 = vmatmul.bf16.gmra.mxu0 %v489
    %v1010 = vpop.f32.mrf.mxu0
    %v1011 = vadd.f32 %v997, %v1010
    %v1012 = vpop.f32.mrf.mxu0
    %v1013 = vadd.f32 %v999, %v1012
    %1014 = vdwg.mxu0
    %1015 = vmatpush.bf16.msra.mxu0 0
    %1016 = vmatpush.bf16.msra.mxu0 0
    %1017 = vmatpush.bf16.msra.mxu0 0
    %1018 = vmatpush.bf16.msra.mxu0 0
    %1019 = vmatpush.bf16.msra.mxu0 %v838
    %1020 = vmatpush.bf16.msra.mxu0 %v835
    %1021 = vmatpush.bf16.msra.mxu0 %v832
    %1022 = vmatpush.bf16.msra.mxu0 %v829
    %1023 = vmatmul.bf16.gmra.mxu0 %v901
    %v1024 = vpop.f32.mrf.mxu0
    %v1025 = vadd.f32 %v1011, %v1024
    %v1026 = vpop.f32.mrf.mxu0
    %v1027 = vadd.f32 %v1013, %v1026
    %1028 = vdwg.mxu0
    %v1029 = vld [vmem:[%s8] sm:$0x7]
    %v1030 = vld [vmem:[%s9] sm:$0x7]
    %v1031 = vadd.f32 %v941, %v983
    %v1032 = vsel %vm899, %v1025, 0.0
    %v1033 = vadd.f32 %v1031, %v1032
    %1034 = vadd.xlane.f32.xlu0 %v1033
    %v1035 = vpop.xlane.xlu0 %1034
    %v1036 = vadd.f32 %v943, %v985
    %v1037 = vsel %vm899, %v1027, 0.0
    %v1038 = vadd.f32 %v1036, %v1037
    %1039 = vadd.xlane.f32.xlu0 %v1038
    %v1040 = vpop.xlane.xlu0 %1039
    %v1041 = vrcp.pop 320.0
    %v1042 = vmul.f32 320.0, %v1041
    %v1043 = vsub.f32 1.0, %v1042
    %v1044 = vmul.f32 %v1041, %v1043
    %v1045 = vadd.f32 %v1041, %v1044
    %vm1046 = vweird.f32 %v1041
    %v1047 = vsel %vm1046, %v1041, %v1045
    %v1048 = vmul.f32 %v1035, %v1047
    %v1049 = vmul.f32 %v1040, %v1047
    %v1050 = vsub.f32 %v941, %v1048
    %v1051 = vsub.f32 %v983, %v1048
    %v1052 = vsub.f32 %v1025, %v1048
    %v1053 = vsub.f32 %v943, %v1049
    %v1054 = vsub.f32 %v985, %v1049
    %v1055 = vsub.f32 %v1027, %v1049
    %v1056 = vmul.f32 %v1050, %v1050
    %v1057 = vmul.f32 %v1051, %v1051
    %v1058 = vmul.f32 %v1052, %v1052
    %v1059 = vmul.f32 %v1053, %v1053
    %v1060 = vmul.f32 %v1054, %v1054
    %v1061 = vmul.f32 %v1055, %v1055
    %v1062 = vadd.f32 %v1056, %v1057
    %v1063 = vsel %vm899, %v1058, 0.0
    %v1064 = vadd.f32 %v1062, %v1063
    %1065 = vadd.xlane.f32.xlu0 %v1064
    %v1066 = vpop.xlane.xlu0 %1065
    %v1067 = vadd.f32 %v1059, %v1060
    %v1068 = vsel %vm899, %v1061, 0.0
    %v1069 = vadd.f32 %v1067, %v1068
    %1070 = vadd.xlane.f32.xlu0 %v1069
    %v1071 = vpop.xlane.xlu0 %1070
    %v1072 = vmul.f32 %v1066, %v1047
    %v1073 = vmul.f32 %v1071, %v1047
    %v1074 = vadd.f32 %v1072, 1e-05
    %v1075 = vadd.f32 %v1073, 1e-05
    %v1076 = vrsqrt.pop %v1074
    %v1077 = vmul.f32 %v1076, %v1074
    %v1078 = vmul.f32 %v1077, %v1076
    %v1079 = vmul.f32 0.5, %v1078
    %v1080 = vsub.f32 1.5, %v1079
    %v1081 = vmul.f32 %v1076, %v1080
    %vm1082 = vweird.f32 %v1074
    %vm1083 = vweird.f32 %v1076
    %vm1084 = vmor %vm1082, %vm1083
    %v1085 = vsel %vm1084, %v1076, %v1081
    %v1086 = vrsqrt.pop %v1075
    %v1087 = vmul.f32 %v1086, %v1075
    %v1088 = vmul.f32 %v1087, %v1086
    %v1089 = vmul.f32 0.5, %v1088
    %v1090 = vsub.f32 1.5, %v1089
    %v1091 = vmul.f32 %v1086, %v1090
    %vm1092 = vweird.f32 %v1075
    %vm1093 = vweird.f32 %v1086
    %vm1094 = vmor %vm1092, %vm1093
    %v1095 = vsel %vm1094, %v1086, %v1091
    %v1096 = vmul.f32 %v1050, %v1085
    %v1097 = vmul.f32 %v1051, %v1085
    %v1098 = vmul.f32 %v1052, %v1085
    %v1099 = vmul.f32 %v1053, %v1095
    %v1100 = vmul.f32 %v1054, %v1095
    %v1101 = vmul.f32 %v1055, %v1095
    %v1103 = vperm.slane %v1029, 0
    %v1104 = vperm.slane %v1029, 1
    %v1105 = vperm.slane %v1029, 2
    %v1109 = vmul.f32 %v1096, %v1103
    %v1110 = vmul.f32 %v1097, %v1104
    %v1111 = vmul.f32 %v1098, %v1105
    %v1112 = vmul.f32 %v1099, %v1103
    %v1113 = vmul.f32 %v1100, %v1104
    %v1114 = vmul.f32 %v1101, %v1105
    %v1116 = vperm.slane %v1030, 0
    %v1117 = vperm.slane %v1030, 1
    %v1118 = vperm.slane %v1030, 2
    %v1122 = vadd.f32 %v1109, %v1116
    %v1123 = vadd.f32 %v1110, %v1117
    %v1124 = vadd.f32 %v1111, %v1118
    %v1125 = vadd.f32 %v1112, %v1116
    %v1126 = vadd.f32 %v1113, %v1117
    %v1127 = vadd.f32 %v1114, %v1118
    %v1128 = vld [vmem:[%s1] sm:$0xff]
    %v1129 = vld [vmem:[%s1 + $0x8] sm:$0xff]
    %v1130 = vld [vmem:[%s2] sm:$0x7]
    %v1132 = vperm.slane %v1130, 0
    %v1133 = vperm.slane %v1130, 1
    %v1134 = vperm.slane %v1130, 2
    %v1138 = vsub.f32 %v1132, %v1122
    %v1139 = vsub.f32 %v1133, %v1123
    %v1140 = vsub.f32 %v1134, %v1124
    %v1141 = vsub.f32 %v1132, %v1125
    %v1142 = vsub.f32 %v1133, %v1126
    %v1143 = vsub.f32 %v1134, %v1127
    %1145 = vset.pattern.permute.xlu0 0
    %1146 = vperm.xlu0 %1145, %v1128
    %v1147 = vpop.permute.xlu0 %1146
    %1150 = vset.pattern.permute.xlu0 0
    %1151 = vperm.xlu0 %1150, %v1129
    %v1152 = vpop.permute.xlu0 %1151
    %v1154 = vmul.f32 %v1138, %v1147
    %v1155 = vmul.f32 %v1139, %v1147
    %v1156 = vmul.f32 %v1140, %v1147
    %v1157 = vmul.f32 %v1141, %v1152
    %v1158 = vmul.f32 %v1142, %v1152
    %v1159 = vmul.f32 %v1143, %v1152
    %v1160 = vadd.f32 %v1122, %v1154
    %v1161 = vadd.f32 %v1123, %v1155
    %v1162 = vadd.f32 %v1124, %v1156
    %v1163 = vadd.f32 %v1125, %v1157
    %v1164 = vadd.f32 %v1126, %v1158
    %v1165 = vadd.f32 %v1127, %v1159
    %v1166 = vld [vmem:[%s3] sm:$0x7]
    %v1168 = vperm.slane %v1166, 0
    %v1169 = vperm.slane %v1166, 1
    %v1170 = vperm.slane %v1166, 2
    %v1174 = vadd.f32 %v1160, %v1168
    %v1175 = vadd.f32 %v1161, %v1169
    %v1176 = vadd.f32 %v1162, %v1170
    %v1177 = vadd.f32 %v1163, %v1168
    %v1178 = vadd.f32 %v1164, %v1169
    %v1179 = vadd.f32 %v1165, %v1170
    %v1180 = vpack.c.bf16 %v1177, %v1174
    %v1181 = vpack.c.bf16 %v1178, %v1175
    %v1182 = vpack.c.bf16 %v1179, %v1176
    %v1183 = vld [vmem:[%s10] sm:$0xff]
    %v1184 = vld [vmem:[%s10 + $0x8] sm:$0xff]
    %v1185 = vld [vmem:[%s10 + $0x10] sm:$0xff]
    %v1186 = vld [vmem:[%s10 + $0x18] sm:$0xff]
    %v1187 = vld [vmem:[%s10 + $0x20] sm:$0xff]
    %v1188 = vld [vmem:[%s10 + $0x28] sm:$0xff]
    %v1189 = vld [vmem:[%s10 + $0x30] sm:$0xff]
    %v1190 = vld [vmem:[%s10 + $0x38] sm:$0xff]
    %v1191 = vld [vmem:[%s10 + $0x40] sm:$0xff]
    %v1192 = vld [vmem:[%s10 + $0x48] sm:$0xff]
    %v1193 = vld [vmem:[%s10 + $0x50] sm:$0xff]
    %v1194 = vld [vmem:[%s10 + $0x58] sm:$0xff]
    %v1195 = vld [vmem:[%s10 + $0x60] sm:$0xff]
    %v1196 = vld [vmem:[%s10 + $0x68] sm:$0xff]
    %v1197 = vld [vmem:[%s10 + $0x70] sm:$0xff]
    %v1198 = vld [vmem:[%s10 + $0x78] sm:$0xff]
    %v1199 = vld [vmem:[%s10 + $0x80] sm:$0xff]
    %v1200 = vld [vmem:[%s10 + $0x88] sm:$0xff]
    %v1201 = vld [vmem:[%s10 + $0x90] sm:$0xff]
    %v1202 = vld [vmem:[%s10 + $0x98] sm:$0xff]
    %v1203 = vld [vmem:[%s10 + $0xa0] sm:$0xff]
    %v1204 = vld [vmem:[%s10 + $0xa8] sm:$0xff]
    %v1205 = vld [vmem:[%s10 + $0xb0] sm:$0xff]
    %v1206 = vld [vmem:[%s10 + $0xb8] sm:$0xff]
    %v1207 = vld [vmem:[%s10 + $0xc0] sm:$0xff]
    %v1208 = vld [vmem:[%s10 + $0xc8] sm:$0xff]
    %v1209 = vld [vmem:[%s10 + $0xd0] sm:$0xff]
    %v1210 = vld [vmem:[%s10 + $0xd8] sm:$0xff]
    %v1211 = vld [vmem:[%s10 + $0xe0] sm:$0xff]
    %v1212 = vld [vmem:[%s10 + $0xe8] sm:$0xff]
    %v1213 = vld [vmem:[%s10 + $0xf0] sm:$0xff]
    %v1214 = vld [vmem:[%s10 + $0xf8] sm:$0xff]
    %v1215 = vld [vmem:[%s10 + $0x100] sm:$0xff]
    %v1216 = vld [vmem:[%s10 + $0x108] sm:$0xff]
    %v1217 = vld [vmem:[%s10 + $0x110] sm:$0xff]
    %v1218 = vld [vmem:[%s10 + $0x118] sm:$0xff]
    %v1219 = vld [vmem:[%s10 + $0x120] sm:$0xff]
    %v1220 = vld [vmem:[%s10 + $0x128] sm:$0xff]
    %v1221 = vld [vmem:[%s10 + $0x130] sm:$0xff]
    %v1222 = vld [vmem:[%s10 + $0x138] sm:$0xff]
    %v1223 = vld [vmem:[%s10 + $0x140] sm:$0xff]
    %v1224 = vld [vmem:[%s10 + $0x148] sm:$0xff]
    %v1225 = vld [vmem:[%s10 + $0x150] sm:$0xff]
    %v1226 = vld [vmem:[%s10 + $0x158] sm:$0xff]
    %v1227 = vld [vmem:[%s10 + $0x160] sm:$0xff]
    %v1228 = vld [vmem:[%s10 + $0x168] sm:$0xff]
    %v1229 = vld [vmem:[%s10 + $0x170] sm:$0xff]
    %v1230 = vld [vmem:[%s10 + $0x178] sm:$0xff]
    %v1231 = vld [vmem:[%s10 + $0x180] sm:$0xff]
    %v1232 = vld [vmem:[%s10 + $0x188] sm:$0xff]
    %v1233 = vld [vmem:[%s10 + $0x190] sm:$0xff]
    %v1234 = vld [vmem:[%s10 + $0x198] sm:$0xff]
    %v1235 = vld [vmem:[%s10 + $0x1a0] sm:$0xff]
    %v1236 = vld [vmem:[%s10 + $0x1a8] sm:$0xff]
    %v1237 = vld [vmem:[%s10 + $0x1b0] sm:$0xff]
    %v1238 = vld [vmem:[%s10 + $0x1b8] sm:$0xff]
    %v1239 = vld [vmem:[%s10 + $0x1c0] sm:$0xff]
    %v1240 = vld [vmem:[%s10 + $0x1c8] sm:$0xff]
    %v1241 = vld [vmem:[%s10 + $0x1d0] sm:$0xff]
    %v1242 = vld [vmem:[%s10 + $0x1d8] sm:$0xff]
    %v1243 = vld [vmem:[%s10 + $0x1e0] sm:$0xff]
    %v1244 = vld [vmem:[%s10 + $0x1e8] sm:$0xff]
    %v1245 = vld [vmem:[%s10 + $0x1f0] sm:$0xff]
    %v1246 = vld [vmem:[%s10 + $0x1f8] sm:$0xff]
    %v1247 = vld [vmem:[%s10 + $0x200] sm:$0xff]
    %v1248 = vld [vmem:[%s10 + $0x208] sm:$0xff]
    %v1249 = vld [vmem:[%s10 + $0x210] sm:$0xff]
    %v1250 = vld [vmem:[%s10 + $0x218] sm:$0xff]
    %v1251 = vld [vmem:[%s10 + $0x220] sm:$0xff]
    %v1252 = vld [vmem:[%s10 + $0x228] sm:$0xff]
    %v1253 = vld [vmem:[%s10 + $0x230] sm:$0xff]
    %v1254 = vld [vmem:[%s10 + $0x238] sm:$0xff]
    %v1255 = vld [vmem:[%s10 + $0x240] sm:$0xff]
    %v1256 = vld [vmem:[%s10 + $0x248] sm:$0xff]
    %v1257 = vld [vmem:[%s10 + $0x250] sm:$0xff]
    %v1258 = vld [vmem:[%s10 + $0x258] sm:$0xff]
    %v1259 = vld [vmem:[%s10 + $0x260] sm:$0xff]
    %v1260 = vld [vmem:[%s10 + $0x268] sm:$0xff]
    %v1261 = vld [vmem:[%s10 + $0x270] sm:$0xff]
    %v1262 = vld [vmem:[%s10 + $0x278] sm:$0xff]
    %v1263 = vld [vmem:[%s10 + $0x280] sm:$0xff]
    %v1264 = vld [vmem:[%s10 + $0x288] sm:$0xff]
    %v1265 = vld [vmem:[%s10 + $0x290] sm:$0xff]
    %v1266 = vld [vmem:[%s10 + $0x298] sm:$0xff]
    %v1267 = vld [vmem:[%s10 + $0x2a0] sm:$0xff]
    %v1268 = vld [vmem:[%s10 + $0x2a8] sm:$0xff]
    %v1269 = vld [vmem:[%s10 + $0x2b0] sm:$0xff]
    %v1270 = vld [vmem:[%s10 + $0x2b8] sm:$0xff]
    %v1271 = vld [vmem:[%s10 + $0x2c0] sm:$0xff]
    %v1272 = vld [vmem:[%s10 + $0x2c8] sm:$0xff]
    %v1273 = vld [vmem:[%s10 + $0x2d0] sm:$0xff]
    %v1274 = vld [vmem:[%s10 + $0x2d8] sm:$0xff]
    %v1275 = vld [vmem:[%s10 + $0x2e0] sm:$0xff]
    %v1276 = vld [vmem:[%s10 + $0x2e8] sm:$0xff]
    %v1277 = vld [vmem:[%s10 + $0x2f0] sm:$0xff]
    %v1278 = vld [vmem:[%s10 + $0x2f8] sm:$0xff]
    %v1279 = vld [vmem:[%s10 + $0x300] sm:$0xff]
    %v1280 = vld [vmem:[%s10 + $0x308] sm:$0xff]
    %v1281 = vld [vmem:[%s10 + $0x310] sm:$0xff]
    %v1282 = vld [vmem:[%s10 + $0x318] sm:$0xff]
    %v1283 = vld [vmem:[%s10 + $0x320] sm:$0xff]
    %v1284 = vld [vmem:[%s10 + $0x328] sm:$0xff]
    %v1285 = vld [vmem:[%s10 + $0x330] sm:$0xff]
    %v1286 = vld [vmem:[%s10 + $0x338] sm:$0xff]
    %v1287 = vld [vmem:[%s10 + $0x340] sm:$0xff]
    %v1288 = vld [vmem:[%s10 + $0x348] sm:$0xff]
    %v1289 = vld [vmem:[%s10 + $0x350] sm:$0xff]
    %v1290 = vld [vmem:[%s10 + $0x358] sm:$0xff]
    %v1291 = vld [vmem:[%s10 + $0x360] sm:$0xff]
    %v1292 = vld [vmem:[%s10 + $0x368] sm:$0xff]
    %v1293 = vld [vmem:[%s10 + $0x370] sm:$0xff]
    %v1294 = vld [vmem:[%s10 + $0x378] sm:$0xff]
    %v1295 = vld [vmem:[%s10 + $0x380] sm:$0xff]
    %v1296 = vld [vmem:[%s10 + $0x388] sm:$0xff]
    %v1297 = vld [vmem:[%s10 + $0x390] sm:$0xff]
    %v1298 = vld [vmem:[%s10 + $0x398] sm:$0xff]
    %v1299 = vld [vmem:[%s10 + $0x3a0] sm:$0xff]
    %v1300 = vld [vmem:[%s10 + $0x3a8] sm:$0xff]
    %v1301 = vld [vmem:[%s10 + $0x3b0] sm:$0xff]
    %v1302 = vld [vmem:[%s10 + $0x3b8] sm:$0xff]
    %v1303 = vld [vmem:[%s10 + $0x3c0] sm:$0xff]
    %v1304 = vld [vmem:[%s10 + $0x3c8] sm:$0xff]
    %v1305 = vld [vmem:[%s10 + $0x3d0] sm:$0xff]
    %v1306 = vld [vmem:[%s10 + $0x3d8] sm:$0xff]
    %v1307 = vld [vmem:[%s10 + $0x3e0] sm:$0xff]
    %v1308 = vld [vmem:[%s10 + $0x3e8] sm:$0xff]
    %v1309 = vld [vmem:[%s10 + $0x3f0] sm:$0xff]
    %v1310 = vld [vmem:[%s10 + $0x3f8] sm:$0xff]
    %v1311 = vld [vmem:[%s10 + $0x400] sm:$0xff]
    %v1312 = vld [vmem:[%s10 + $0x408] sm:$0xff]
    %v1313 = vld [vmem:[%s10 + $0x410] sm:$0xff]
    %v1314 = vld [vmem:[%s10 + $0x418] sm:$0xff]
    %v1315 = vld [vmem:[%s10 + $0x420] sm:$0xff]
    %v1316 = vld [vmem:[%s10 + $0x428] sm:$0xff]
    %v1317 = vld [vmem:[%s10 + $0x430] sm:$0xff]
    %v1318 = vld [vmem:[%s10 + $0x438] sm:$0xff]
    %v1319 = vld [vmem:[%s10 + $0x440] sm:$0xff]
    %v1320 = vld [vmem:[%s10 + $0x448] sm:$0xff]
    %v1321 = vld [vmem:[%s10 + $0x450] sm:$0xff]
    %v1322 = vld [vmem:[%s10 + $0x458] sm:$0xff]
    %v1323 = vld [vmem:[%s10 + $0x460] sm:$0xff]
    %v1324 = vld [vmem:[%s10 + $0x468] sm:$0xff]
    %v1325 = vld [vmem:[%s10 + $0x470] sm:$0xff]
    %v1326 = vld [vmem:[%s10 + $0x478] sm:$0xff]
    %v1327 = vld [vmem:[%s10 + $0x480] sm:$0xff]
    %v1328 = vld [vmem:[%s10 + $0x488] sm:$0xff]
    %v1329 = vld [vmem:[%s10 + $0x490] sm:$0xff]
    %v1330 = vld [vmem:[%s10 + $0x498] sm:$0xff]
    %v1331 = vld [vmem:[%s10 + $0x4a0] sm:$0xff]
    %v1332 = vld [vmem:[%s10 + $0x4a8] sm:$0xff]
    %v1333 = vld [vmem:[%s10 + $0x4b0] sm:$0xff]
    %v1334 = vld [vmem:[%s10 + $0x4b8] sm:$0xff]
    %v1335 = vld [vmem:[%s10 + $0x4c0] sm:$0xff]
    %v1336 = vld [vmem:[%s10 + $0x4c8] sm:$0xff]
    %v1337 = vld [vmem:[%s10 + $0x4d0] sm:$0xff]
    %v1338 = vld [vmem:[%s10 + $0x4d8] sm:$0xff]
    %v1339 = vld [vmem:[%s10 + $0x4e0] sm:$0xff]
    %v1340 = vld [vmem:[%s10 + $0x4e8] sm:$0xff]
    %v1341 = vld [vmem:[%s10 + $0x4f0] sm:$0xff]
    %v1342 = vld [vmem:[%s10 + $0x4f8] sm:$0xff]
    %v1343 = vld [vmem:[%s10 + $0x500] sm:$0xff]
    %v1344 = vld [vmem:[%s10 + $0x508] sm:$0xff]
    %v1345 = vld [vmem:[%s10 + $0x510] sm:$0xff]
    %v1346 = vld [vmem:[%s10 + $0x518] sm:$0xff]
    %v1347 = vld [vmem:[%s10 + $0x520] sm:$0xff]
    %v1348 = vld [vmem:[%s10 + $0x528] sm:$0xff]
    %v1349 = vld [vmem:[%s10 + $0x530] sm:$0xff]
    %v1350 = vld [vmem:[%s10 + $0x538] sm:$0xff]
    %v1351 = vld [vmem:[%s10 + $0x540] sm:$0xff]
    %v1352 = vld [vmem:[%s10 + $0x548] sm:$0xff]
    %v1353 = vld [vmem:[%s10 + $0x550] sm:$0xff]
    %v1354 = vld [vmem:[%s10 + $0x558] sm:$0xff]
    %v1355 = vld [vmem:[%s10 + $0x560] sm:$0xff]
    %v1356 = vld [vmem:[%s10 + $0x568] sm:$0xff]
    %v1357 = vld [vmem:[%s10 + $0x570] sm:$0xff]
    %v1358 = vld [vmem:[%s10 + $0x578] sm:$0xff]
    %v1359 = vld [vmem:[%s10 + $0x580] sm:$0xff]
    %v1360 = vld [vmem:[%s10 + $0x588] sm:$0xff]
    %v1361 = vld [vmem:[%s10 + $0x590] sm:$0xff]
    %v1362 = vld [vmem:[%s10 + $0x598] sm:$0xff]
    %v1363 = vld [vmem:[%s10 + $0x5a0] sm:$0xff]
    %v1364 = vld [vmem:[%s10 + $0x5a8] sm:$0xff]
    %v1365 = vld [vmem:[%s10 + $0x5b0] sm:$0xff]
    %v1366 = vld [vmem:[%s10 + $0x5b8] sm:$0xff]
    %v1367 = vld [vmem:[%s10 + $0x5c0] sm:$0xff]
    %v1368 = vld [vmem:[%s10 + $0x5c8] sm:$0xff]
    %v1369 = vld [vmem:[%s10 + $0x5d0] sm:$0xff]
    %v1370 = vld [vmem:[%s10 + $0x5d8] sm:$0xff]
    %v1371 = vld [vmem:[%s10 + $0x5e0] sm:$0xff]
    %v1372 = vld [vmem:[%s10 + $0x5e8] sm:$0xff]
    %v1373 = vld [vmem:[%s10 + $0x5f0] sm:$0xff]
    %v1374 = vld [vmem:[%s10 + $0x5f8] sm:$0xff]
    %v1375 = vld [vmem:[%s10 + $0x600] sm:$0xff]
    %v1376 = vld [vmem:[%s10 + $0x608] sm:$0xff]
    %v1377 = vld [vmem:[%s10 + $0x610] sm:$0xff]
    %v1378 = vld [vmem:[%s10 + $0x618] sm:$0xff]
    %v1379 = vld [vmem:[%s10 + $0x620] sm:$0xff]
    %v1380 = vld [vmem:[%s10 + $0x628] sm:$0xff]
    %v1381 = vld [vmem:[%s10 + $0x630] sm:$0xff]
    %v1382 = vld [vmem:[%s10 + $0x638] sm:$0xff]
    %v1383 = vld [vmem:[%s11] sm:$0xff]
    %v1384 = vld [vmem:[%s11 + $0x8] sm:$0x3]
    %v1387 = vperm.slane %v1383, 0
    %v1388 = vperm.slane %v1383, 1
    %v1389 = vperm.slane %v1383, 2
    %v1390 = vperm.slane %v1383, 3
    %v1391 = vperm.slane %v1383, 4
    %v1392 = vperm.slane %v1383, 5
    %v1393 = vperm.slane %v1383, 6
    %v1394 = vperm.slane %v1383, 7
    %v1395 = vperm.slane %v1384, 0
    %v1396 = vperm.slane %v1384, 1
    %v1607 = vunpack.c.l.b16 %v1183
    %v1608 = vunpack.c.h.b16 %v1183
    %v1609 = vunpack.c.l.b16 %v1184
    %v1610 = vunpack.c.h.b16 %v1184
    %v1611 = vunpack.c.l.b16 %v1185
    %v1612 = vunpack.c.h.b16 %v1185
    %v1613 = vunpack.c.l.b16 %v1186
    %v1614 = vunpack.c.h.b16 %v1186
    %v1615 = vunpack.c.l.b16 %v1187
    %v1616 = vunpack.c.h.b16 %v1187
    %v1617 = vunpack.c.l.b16 %v1188
    %v1618 = vunpack.c.h.b16 %v1188
    %v1619 = vunpack.c.l.b16 %v1189
    %v1620 = vunpack.c.h.b16 %v1189
    %v1621 = vunpack.c.l.b16 %v1190
    %v1622 = vunpack.c.h.b16 %v1190
    %v1623 = vunpack.c.l.b16 %v1191
    %v1624 = vunpack.c.h.b16 %v1191
    %v1625 = vunpack.c.l.b16 %v1192
    %v1626 = vunpack.c.h.b16 %v1192
    %v1627 = vunpack.c.l.b16 %v1193
    %v1628 = vunpack.c.h.b16 %v1193
    %v1629 = vunpack.c.l.b16 %v1194
    %v1630 = vunpack.c.h.b16 %v1194
    %v1631 = vunpack.c.l.b16 %v1195
    %v1632 = vunpack.c.h.b16 %v1195
    %v1633 = vunpack.c.l.b16 %v1196
    %v1634 = vunpack.c.h.b16 %v1196
    %v1635 = vunpack.c.l.b16 %v1197
    %v1636 = vunpack.c.h.b16 %v1197
    %v1637 = vunpack.c.l.b16 %v1198
    %v1638 = vunpack.c.h.b16 %v1198
    %v1639 = vunpack.c.l.b16 %v1199
    %v1640 = vunpack.c.h.b16 %v1199
    %v1641 = vunpack.c.l.b16 %v1200
    %v1642 = vunpack.c.h.b16 %v1200
    %v1643 = vunpack.c.l.b16 %v1201
    %v1644 = vunpack.c.h.b16 %v1201
    %v1645 = vunpack.c.l.b16 %v1202
    %v1646 = vunpack.c.h.b16 %v1202
    %v1647 = vunpack.c.l.b16 %v1203
    %v1648 = vunpack.c.h.b16 %v1203
    %v1649 = vunpack.c.l.b16 %v1204
    %v1650 = vunpack.c.h.b16 %v1204
    %v1651 = vunpack.c.l.b16 %v1205
    %v1652 = vunpack.c.h.b16 %v1205
    %v1653 = vunpack.c.l.b16 %v1206
    %v1654 = vunpack.c.h.b16 %v1206
    %v1655 = vunpack.c.l.b16 %v1207
    %v1656 = vunpack.c.h.b16 %v1207
    %v1657 = vunpack.c.l.b16 %v1208
    %v1658 = vunpack.c.h.b16 %v1208
    %v1659 = vunpack.c.l.b16 %v1209
    %v1660 = vunpack.c.h.b16 %v1209
    %v1661 = vunpack.c.l.b16 %v1210
    %v1662 = vunpack.c.h.b16 %v1210
    %v1663 = vunpack.c.l.b16 %v1211
    %v1664 = vunpack.c.h.b16 %v1211
    %v1665 = vunpack.c.l.b16 %v1212
    %v1666 = vunpack.c.h.b16 %v1212
    %v1667 = vunpack.c.l.b16 %v1213
    %v1668 = vunpack.c.h.b16 %v1213
    %v1669 = vunpack.c.l.b16 %v1214
    %v1670 = vunpack.c.h.b16 %v1214
    %v1671 = vunpack.c.l.b16 %v1215
    %v1672 = vunpack.c.h.b16 %v1215
    %v1673 = vunpack.c.l.b16 %v1216
    %v1674 = vunpack.c.h.b16 %v1216
    %v1675 = vunpack.c.l.b16 %v1217
    %v1676 = vunpack.c.h.b16 %v1217
    %v1677 = vunpack.c.l.b16 %v1218
    %v1678 = vunpack.c.h.b16 %v1218
    %v1679 = vunpack.c.l.b16 %v1219
    %v1680 = vunpack.c.h.b16 %v1219
    %v1681 = vunpack.c.l.b16 %v1220
    %v1682 = vunpack.c.h.b16 %v1220
    %v1683 = vunpack.c.l.b16 %v1221
    %v1684 = vunpack.c.h.b16 %v1221
    %v1685 = vunpack.c.l.b16 %v1222
    %v1686 = vunpack.c.h.b16 %v1222
    %v1687 = vunpack.c.l.b16 %v1223
    %v1688 = vunpack.c.h.b16 %v1223
    %v1689 = vunpack.c.l.b16 %v1224
    %v1690 = vunpack.c.h.b16 %v1224
    %v1691 = vunpack.c.l.b16 %v1225
    %v1692 = vunpack.c.h.b16 %v1225
    %v1693 = vunpack.c.l.b16 %v1226
    %v1694 = vunpack.c.h.b16 %v1226
    %v1695 = vunpack.c.l.b16 %v1227
    %v1696 = vunpack.c.h.b16 %v1227
    %v1697 = vunpack.c.l.b16 %v1228
    %v1698 = vunpack.c.h.b16 %v1228
    %v1699 = vunpack.c.l.b16 %v1229
    %v1700 = vunpack.c.h.b16 %v1229
    %v1701 = vunpack.c.l.b16 %v1230
    %v1702 = vunpack.c.h.b16 %v1230
    %v1703 = vunpack.c.l.b16 %v1231
    %v1704 = vunpack.c.h.b16 %v1231
    %v1705 = vunpack.c.l.b16 %v1232
    %v1706 = vunpack.c.h.b16 %v1232
    %v1707 = vunpack.c.l.b16 %v1233
    %v1708 = vunpack.c.h.b16 %v1233
    %v1709 = vunpack.c.l.b16 %v1234
    %v1710 = vunpack.c.h.b16 %v1234
    %v1711 = vunpack.c.l.b16 %v1235
    %v1712 = vunpack.c.h.b16 %v1235
    %v1713 = vunpack.c.l.b16 %v1236
    %v1714 = vunpack.c.h.b16 %v1236
    %v1715 = vunpack.c.l.b16 %v1237
    %v1716 = vunpack.c.h.b16 %v1237
    %v1717 = vunpack.c.l.b16 %v1238
    %v1718 = vunpack.c.h.b16 %v1238
    %v1719 = vunpack.c.l.b16 %v1239
    %v1720 = vunpack.c.h.b16 %v1239
    %v1721 = vunpack.c.l.b16 %v1240
    %v1722 = vunpack.c.h.b16 %v1240
    %v1723 = vunpack.c.l.b16 %v1241
    %v1724 = vunpack.c.h.b16 %v1241
    %v1725 = vunpack.c.l.b16 %v1242
    %v1726 = vunpack.c.h.b16 %v1242
    %v1727 = vunpack.c.l.b16 %v1243
    %v1728 = vunpack.c.h.b16 %v1243
    %v1729 = vunpack.c.l.b16 %v1244
    %v1730 = vunpack.c.h.b16 %v1244
    %v1731 = vunpack.c.l.b16 %v1245
    %v1732 = vunpack.c.h.b16 %v1245
    %v1733 = vunpack.c.l.b16 %v1246
    %v1734 = vunpack.c.h.b16 %v1246
    %v1735 = vunpack.c.l.b16 %v1247
    %v1736 = vunpack.c.h.b16 %v1247
    %v1737 = vunpack.c.l.b16 %v1248
    %v1738 = vunpack.c.h.b16 %v1248
    %v1739 = vunpack.c.l.b16 %v1249
    %v1740 = vunpack.c.h.b16 %v1249
    %v1741 = vunpack.c.l.b16 %v1250
    %v1742 = vunpack.c.h.b16 %v1250
    %v1743 = vunpack.c.l.b16 %v1251
    %v1744 = vunpack.c.h.b16 %v1251
    %v1745 = vunpack.c.l.b16 %v1252
    %v1746 = vunpack.c.h.b16 %v1252
    %v1747 = vunpack.c.l.b16 %v1253
    %v1748 = vunpack.c.h.b16 %v1253
    %v1749 = vunpack.c.l.b16 %v1254
    %v1750 = vunpack.c.h.b16 %v1254
    %v1751 = vunpack.c.l.b16 %v1255
    %v1752 = vunpack.c.h.b16 %v1255
    %v1753 = vunpack.c.l.b16 %v1256
    %v1754 = vunpack.c.h.b16 %v1256
    %v1755 = vunpack.c.l.b16 %v1257
    %v1756 = vunpack.c.h.b16 %v1257
    %v1757 = vunpack.c.l.b16 %v1258
    %v1758 = vunpack.c.h.b16 %v1258
    %v1759 = vunpack.c.l.b16 %v1259
    %v1760 = vunpack.c.h.b16 %v1259
    %v1761 = vunpack.c.l.b16 %v1260
    %v1762 = vunpack.c.h.b16 %v1260
    %v1763 = vunpack.c.l.b16 %v1261
    %v1764 = vunpack.c.h.b16 %v1261
    %v1765 = vunpack.c.l.b16 %v1262
    %v1766 = vunpack.c.h.b16 %v1262
    %v1767 = vunpack.c.l.b16 %v1263
    %v1768 = vunpack.c.h.b16 %v1263
    %v1769 = vunpack.c.l.b16 %v1264
    %v1770 = vunpack.c.h.b16 %v1264
    %v1771 = vunpack.c.l.b16 %v1265
    %v1772 = vunpack.c.h.b16 %v1265
    %v1773 = vunpack.c.l.b16 %v1266
    %v1774 = vunpack.c.h.b16 %v1266
    %v1775 = vunpack.c.l.b16 %v1267
    %v1776 = vunpack.c.h.b16 %v1267
    %v1777 = vunpack.c.l.b16 %v1268
    %v1778 = vunpack.c.h.b16 %v1268
    %v1779 = vunpack.c.l.b16 %v1269
    %v1780 = vunpack.c.h.b16 %v1269
    %v1781 = vunpack.c.l.b16 %v1270
    %v1782 = vunpack.c.h.b16 %v1270
    %v1783 = vunpack.c.l.b16 %v1271
    %v1784 = vunpack.c.h.b16 %v1271
    %v1785 = vunpack.c.l.b16 %v1272
    %v1786 = vunpack.c.h.b16 %v1272
    %v1787 = vunpack.c.l.b16 %v1273
    %v1788 = vunpack.c.h.b16 %v1273
    %v1789 = vunpack.c.l.b16 %v1274
    %v1790 = vunpack.c.h.b16 %v1274
    %v1791 = vunpack.c.l.b16 %v1275
    %v1792 = vunpack.c.h.b16 %v1275
    %v1793 = vunpack.c.l.b16 %v1276
    %v1794 = vunpack.c.h.b16 %v1276
    %v1795 = vunpack.c.l.b16 %v1277
    %v1796 = vunpack.c.h.b16 %v1277
    %v1797 = vunpack.c.l.b16 %v1278
    %v1798 = vunpack.c.h.b16 %v1278
    %v1799 = vunpack.c.l.b16 %v1279
    %v1800 = vunpack.c.h.b16 %v1279
    %v1801 = vunpack.c.l.b16 %v1280
    %v1802 = vunpack.c.h.b16 %v1280
    %v1803 = vunpack.c.l.b16 %v1281
    %v1804 = vunpack.c.h.b16 %v1281
    %v1805 = vunpack.c.l.b16 %v1282
    %v1806 = vunpack.c.h.b16 %v1282
    %v1807 = vunpack.c.l.b16 %v1283
    %v1808 = vunpack.c.h.b16 %v1283
    %v1809 = vunpack.c.l.b16 %v1284
    %v1810 = vunpack.c.h.b16 %v1284
    %v1811 = vunpack.c.l.b16 %v1285
    %v1812 = vunpack.c.h.b16 %v1285
    %v1813 = vunpack.c.l.b16 %v1286
    %v1814 = vunpack.c.h.b16 %v1286
    %v1815 = vunpack.c.l.b16 %v1287
    %v1816 = vunpack.c.h.b16 %v1287
    %v1817 = vunpack.c.l.b16 %v1288
    %v1818 = vunpack.c.h.b16 %v1288
    %v1819 = vunpack.c.l.b16 %v1289
    %v1820 = vunpack.c.h.b16 %v1289
    %v1821 = vunpack.c.l.b16 %v1290
    %v1822 = vunpack.c.h.b16 %v1290
    %v1823 = vunpack.c.l.b16 %v1291
    %v1824 = vunpack.c.h.b16 %v1291
    %v1825 = vunpack.c.l.b16 %v1292
    %v1826 = vunpack.c.h.b16 %v1292
    %v1827 = vunpack.c.l.b16 %v1293
    %v1828 = vunpack.c.h.b16 %v1293
    %v1829 = vunpack.c.l.b16 %v1294
    %v1830 = vunpack.c.h.b16 %v1294
    %v1831 = vunpack.c.l.b16 %v1295
    %v1832 = vunpack.c.h.b16 %v1295
    %v1833 = vunpack.c.l.b16 %v1296
    %v1834 = vunpack.c.h.b16 %v1296
    %v1835 = vunpack.c.l.b16 %v1297
    %v1836 = vunpack.c.h.b16 %v1297
    %v1837 = vunpack.c.l.b16 %v1298
    %v1838 = vunpack.c.h.b16 %v1298
    %v1839 = vunpack.c.l.b16 %v1299
    %v1840 = vunpack.c.h.b16 %v1299
    %v1841 = vunpack.c.l.b16 %v1300
    %v1842 = vunpack.c.h.b16 %v1300
    %v1843 = vunpack.c.l.b16 %v1301
    %v1844 = vunpack.c.h.b16 %v1301
    %v1845 = vunpack.c.l.b16 %v1302
    %v1846 = vunpack.c.h.b16 %v1302
    %v1847 = vunpack.c.l.b16 %v1303
    %v1848 = vunpack.c.h.b16 %v1303
    %v1849 = vunpack.c.l.b16 %v1304
    %v1850 = vunpack.c.h.b16 %v1304
    %v1851 = vunpack.c.l.b16 %v1305
    %v1852 = vunpack.c.h.b16 %v1305
    %v1853 = vunpack.c.l.b16 %v1306
    %v1854 = vunpack.c.h.b16 %v1306
    %v1855 = vunpack.c.l.b16 %v1307
    %v1856 = vunpack.c.h.b16 %v1307
    %v1857 = vunpack.c.l.b16 %v1308
    %v1858 = vunpack.c.h.b16 %v1308
    %v1859 = vunpack.c.l.b16 %v1309
    %v1860 = vunpack.c.h.b16 %v1309
    %v1861 = vunpack.c.l.b16 %v1310
    %v1862 = vunpack.c.h.b16 %v1310
    %v1863 = vunpack.c.l.b16 %v1311
    %v1864 = vunpack.c.h.b16 %v1311
    %v1865 = vunpack.c.l.b16 %v1312
    %v1866 = vunpack.c.h.b16 %v1312
    %v1867 = vunpack.c.l.b16 %v1313
    %v1868 = vunpack.c.h.b16 %v1313
    %v1869 = vunpack.c.l.b16 %v1314
    %v1870 = vunpack.c.h.b16 %v1314
    %v1871 = vunpack.c.l.b16 %v1315
    %v1872 = vunpack.c.h.b16 %v1315
    %v1873 = vunpack.c.l.b16 %v1316
    %v1874 = vunpack.c.h.b16 %v1316
    %v1875 = vunpack.c.l.b16 %v1317
    %v1876 = vunpack.c.h.b16 %v1317
    %v1877 = vunpack.c.l.b16 %v1318
    %v1878 = vunpack.c.h.b16 %v1318
    %v1879 = vunpack.c.l.b16 %v1319
    %v1880 = vunpack.c.h.b16 %v1319
    %v1881 = vunpack.c.l.b16 %v1320
    %v1882 = vunpack.c.h.b16 %v1320
    %v1883 = vunpack.c.l.b16 %v1321
    %v1884 = vunpack.c.h.b16 %v1321
    %v1885 = vunpack.c.l.b16 %v1322
    %v1886 = vunpack.c.h.b16 %v1322
    %v1887 = vunpack.c.l.b16 %v1323
    %v1888 = vunpack.c.h.b16 %v1323
    %v1889 = vunpack.c.l.b16 %v1324
    %v1890 = vunpack.c.h.b16 %v1324
    %v1891 = vunpack.c.l.b16 %v1325
    %v1892 = vunpack.c.h.b16 %v1325
    %v1893 = vunpack.c.l.b16 %v1326
    %v1894 = vunpack.c.h.b16 %v1326
    %v1895 = vunpack.c.l.b16 %v1327
    %v1896 = vunpack.c.h.b16 %v1327
    %v1897 = vunpack.c.l.b16 %v1328
    %v1898 = vunpack.c.h.b16 %v1328
    %v1899 = vunpack.c.l.b16 %v1329
    %v1900 = vunpack.c.h.b16 %v1329
    %v1901 = vunpack.c.l.b16 %v1330
    %v1902 = vunpack.c.h.b16 %v1330
    %v1903 = vunpack.c.l.b16 %v1331
    %v1904 = vunpack.c.h.b16 %v1331
    %v1905 = vunpack.c.l.b16 %v1332
    %v1906 = vunpack.c.h.b16 %v1332
    %v1907 = vunpack.c.l.b16 %v1333
    %v1908 = vunpack.c.h.b16 %v1333
    %v1909 = vunpack.c.l.b16 %v1334
    %v1910 = vunpack.c.h.b16 %v1334
    %v1911 = vunpack.c.l.b16 %v1335
    %v1912 = vunpack.c.h.b16 %v1335
    %v1913 = vunpack.c.l.b16 %v1336
    %v1914 = vunpack.c.h.b16 %v1336
    %v1915 = vunpack.c.l.b16 %v1337
    %v1916 = vunpack.c.h.b16 %v1337
    %v1917 = vunpack.c.l.b16 %v1338
    %v1918 = vunpack.c.h.b16 %v1338
    %v1919 = vunpack.c.l.b16 %v1339
    %v1920 = vunpack.c.h.b16 %v1339
    %v1921 = vunpack.c.l.b16 %v1340
    %v1922 = vunpack.c.h.b16 %v1340
    %v1923 = vunpack.c.l.b16 %v1341
    %v1924 = vunpack.c.h.b16 %v1341
    %v1925 = vunpack.c.l.b16 %v1342
    %v1926 = vunpack.c.h.b16 %v1342
    %v1927 = vunpack.c.l.b16 %v1343
    %v1928 = vunpack.c.h.b16 %v1343
    %v1929 = vunpack.c.l.b16 %v1344
    %v1930 = vunpack.c.h.b16 %v1344
    %v1931 = vunpack.c.l.b16 %v1345
    %v1932 = vunpack.c.h.b16 %v1345
    %v1933 = vunpack.c.l.b16 %v1346
    %v1934 = vunpack.c.h.b16 %v1346
    %v1935 = vunpack.c.l.b16 %v1347
    %v1936 = vunpack.c.h.b16 %v1347
    %v1937 = vunpack.c.l.b16 %v1348
    %v1938 = vunpack.c.h.b16 %v1348
    %v1939 = vunpack.c.l.b16 %v1349
    %v1940 = vunpack.c.h.b16 %v1349
    %v1941 = vunpack.c.l.b16 %v1350
    %v1942 = vunpack.c.h.b16 %v1350
    %v1943 = vunpack.c.l.b16 %v1351
    %v1944 = vunpack.c.h.b16 %v1351
    %v1945 = vunpack.c.l.b16 %v1352
    %v1946 = vunpack.c.h.b16 %v1352
    %v1947 = vunpack.c.l.b16 %v1353
    %v1948 = vunpack.c.h.b16 %v1353
    %v1949 = vunpack.c.l.b16 %v1354
    %v1950 = vunpack.c.h.b16 %v1354
    %v1951 = vunpack.c.l.b16 %v1355
    %v1952 = vunpack.c.h.b16 %v1355
    %v1953 = vunpack.c.l.b16 %v1356
    %v1954 = vunpack.c.h.b16 %v1356
    %v1955 = vunpack.c.l.b16 %v1357
    %v1956 = vunpack.c.h.b16 %v1357
    %v1957 = vunpack.c.l.b16 %v1358
    %v1958 = vunpack.c.h.b16 %v1358
    %v1959 = vunpack.c.l.b16 %v1359
    %v1960 = vunpack.c.h.b16 %v1359
    %v1961 = vunpack.c.l.b16 %v1360
    %v1962 = vunpack.c.h.b16 %v1360
    %v1963 = vunpack.c.l.b16 %v1361
    %v1964 = vunpack.c.h.b16 %v1361
    %v1965 = vunpack.c.l.b16 %v1362
    %v1966 = vunpack.c.h.b16 %v1362
    %v1967 = vunpack.c.l.b16 %v1363
    %v1968 = vunpack.c.h.b16 %v1363
    %v1969 = vunpack.c.l.b16 %v1364
    %v1970 = vunpack.c.h.b16 %v1364
    %v1971 = vunpack.c.l.b16 %v1365
    %v1972 = vunpack.c.h.b16 %v1365
    %v1973 = vunpack.c.l.b16 %v1366
    %v1974 = vunpack.c.h.b16 %v1366
    %v1975 = vunpack.c.l.b16 %v1367
    %v1976 = vunpack.c.h.b16 %v1367
    %v1977 = vunpack.c.l.b16 %v1368
    %v1978 = vunpack.c.h.b16 %v1368
    %v1979 = vunpack.c.l.b16 %v1369
    %v1980 = vunpack.c.h.b16 %v1369
    %v1981 = vunpack.c.l.b16 %v1370
    %v1982 = vunpack.c.h.b16 %v1370
    %v1983 = vunpack.c.l.b16 %v1371
    %v1984 = vunpack.c.h.b16 %v1371
    %v1985 = vunpack.c.l.b16 %v1372
    %v1986 = vunpack.c.h.b16 %v1372
    %v1987 = vunpack.c.l.b16 %v1373
    %v1988 = vunpack.c.h.b16 %v1373
    %v1989 = vunpack.c.l.b16 %v1374
    %v1990 = vunpack.c.h.b16 %v1374
    %v1991 = vunpack.c.l.b16 %v1375
    %v1992 = vunpack.c.h.b16 %v1375
    %v1993 = vunpack.c.l.b16 %v1376
    %v1994 = vunpack.c.h.b16 %v1376
    %v1995 = vunpack.c.l.b16 %v1377
    %v1996 = vunpack.c.h.b16 %v1377
    %v1997 = vunpack.c.l.b16 %v1378
    %v1998 = vunpack.c.h.b16 %v1378
    %v1999 = vunpack.c.l.b16 %v1379
    %v2000 = vunpack.c.h.b16 %v1379
    %v2001 = vunpack.c.l.b16 %v1380
    %v2002 = vunpack.c.h.b16 %v1380
    %v2003 = vunpack.c.l.b16 %v1381
    %v2004 = vunpack.c.h.b16 %v1381
    %v2005 = vunpack.c.l.b16 %v1382
    %v2006 = vunpack.c.h.b16 %v1382
    %v2007 = vpack.c.b16 %v1617, %v1607
    %v2008 = vpack.c.b16 %v1618, %v1608
    %v2009 = vpack.c.b16 %v1619, %v1609
    %v2010 = vpack.c.b16 %v1620, %v1610
    %v2011 = vpack.c.b16 %v1621, %v1611
    %v2012 = vpack.c.b16 %v1622, %v1612
    %v2013 = vpack.c.b16 %v1623, %v1613
    %v2014 = vpack.c.b16 %v1624, %v1614
    %v2015 = vpack.c.b16 %v1625, %v1615
    %v2016 = vpack.c.b16 %v1626, %v1616
    %v2017 = vpack.c.b16 %v1637, %v1627
    %v2018 = vpack.c.b16 %v1638, %v1628
    %v2019 = vpack.c.b16 %v1639, %v1629
    %v2020 = vpack.c.b16 %v1640, %v1630
    %v2021 = vpack.c.b16 %v1641, %v1631
    %v2022 = vpack.c.b16 %v1642, %v1632
    %v2023 = vpack.c.b16 %v1643, %v1633
    %v2024 = vpack.c.b16 %v1644, %v1634
    %v2025 = vpack.c.b16 %v1645, %v1635
    %v2026 = vpack.c.b16 %v1646, %v1636
    %v2027 = vpack.c.b16 %v1657, %v1647
    %v2028 = vpack.c.b16 %v1658, %v1648
    %v2029 = vpack.c.b16 %v1659, %v1649
    %v2030 = vpack.c.b16 %v1660, %v1650
    %v2031 = vpack.c.b16 %v1661, %v1651
    %v2032 = vpack.c.b16 %v1662, %v1652
    %v2033 = vpack.c.b16 %v1663, %v1653
    %v2034 = vpack.c.b16 %v1664, %v1654
    %v2035 = vpack.c.b16 %v1665, %v1655
    %v2036 = vpack.c.b16 %v1666, %v1656
    %v2037 = vpack.c.b16 %v1677, %v1667
    %v2038 = vpack.c.b16 %v1678, %v1668
    %v2039 = vpack.c.b16 %v1679, %v1669
    %v2040 = vpack.c.b16 %v1680, %v1670
    %v2041 = vpack.c.b16 %v1681, %v1671
    %v2042 = vpack.c.b16 %v1682, %v1672
    %v2043 = vpack.c.b16 %v1683, %v1673
    %v2044 = vpack.c.b16 %v1684, %v1674
    %v2045 = vpack.c.b16 %v1685, %v1675
    %v2046 = vpack.c.b16 %v1686, %v1676
    %v2047 = vpack.c.b16 %v1697, %v1687
    %v2048 = vpack.c.b16 %v1698, %v1688
    %v2049 = vpack.c.b16 %v1699, %v1689
    %v2050 = vpack.c.b16 %v1700, %v1690
    %v2051 = vpack.c.b16 %v1701, %v1691
    %v2052 = vpack.c.b16 %v1702, %v1692
    %v2053 = vpack.c.b16 %v1703, %v1693
    %v2054 = vpack.c.b16 %v1704, %v1694
    %v2055 = vpack.c.b16 %v1705, %v1695
    %v2056 = vpack.c.b16 %v1706, %v1696
    %v2057 = vpack.c.b16 %v1717, %v1707
    %v2058 = vpack.c.b16 %v1718, %v1708
    %v2059 = vpack.c.b16 %v1719, %v1709
    %v2060 = vpack.c.b16 %v1720, %v1710
    %v2061 = vpack.c.b16 %v1721, %v1711
    %v2062 = vpack.c.b16 %v1722, %v1712
    %v2063 = vpack.c.b16 %v1723, %v1713
    %v2064 = vpack.c.b16 %v1724, %v1714
    %v2065 = vpack.c.b16 %v1725, %v1715
    %v2066 = vpack.c.b16 %v1726, %v1716
    %v2067 = vpack.c.b16 %v1737, %v1727
    %v2068 = vpack.c.b16 %v1738, %v1728
    %v2069 = vpack.c.b16 %v1739, %v1729
    %v2070 = vpack.c.b16 %v1740, %v1730
    %v2071 = vpack.c.b16 %v1741, %v1731
    %v2072 = vpack.c.b16 %v1742, %v1732
    %v2073 = vpack.c.b16 %v1743, %v1733
    %v2074 = vpack.c.b16 %v1744, %v1734
    %v2075 = vpack.c.b16 %v1745, %v1735
    %v2076 = vpack.c.b16 %v1746, %v1736
    %v2077 = vpack.c.b16 %v1757, %v1747
    %v2078 = vpack.c.b16 %v1758, %v1748
    %v2079 = vpack.c.b16 %v1759, %v1749
    %v2080 = vpack.c.b16 %v1760, %v1750
    %v2081 = vpack.c.b16 %v1761, %v1751
    %v2082 = vpack.c.b16 %v1762, %v1752
    %v2083 = vpack.c.b16 %v1763, %v1753
    %v2084 = vpack.c.b16 %v1764, %v1754
    %v2085 = vpack.c.b16 %v1765, %v1755
    %v2086 = vpack.c.b16 %v1766, %v1756
    %v2087 = vpack.c.b16 %v1777, %v1767
    %v2088 = vpack.c.b16 %v1778, %v1768
    %v2089 = vpack.c.b16 %v1779, %v1769
    %v2090 = vpack.c.b16 %v1780, %v1770
    %v2091 = vpack.c.b16 %v1781, %v1771
    %v2092 = vpack.c.b16 %v1782, %v1772
    %v2093 = vpack.c.b16 %v1783, %v1773
    %v2094 = vpack.c.b16 %v1784, %v1774
    %v2095 = vpack.c.b16 %v1785, %v1775
    %v2096 = vpack.c.b16 %v1786, %v1776
    %v2097 = vpack.c.b16 %v1797, %v1787
    %v2098 = vpack.c.b16 %v1798, %v1788
    %v2099 = vpack.c.b16 %v1799, %v1789
    %v2100 = vpack.c.b16 %v1800, %v1790
    %v2101 = vpack.c.b16 %v1801, %v1791
    %v2102 = vpack.c.b16 %v1802, %v1792
    %v2103 = vpack.c.b16 %v1803, %v1793
    %v2104 = vpack.c.b16 %v1804, %v1794
    %v2105 = vpack.c.b16 %v1805, %v1795
    %v2106 = vpack.c.b16 %v1806, %v1796
    %v2107 = vpack.c.b16 %v1817, %v1807
    %v2108 = vpack.c.b16 %v1818, %v1808
    %v2109 = vpack.c.b16 %v1819, %v1809
    %v2110 = vpack.c.b16 %v1820, %v1810
    %v2111 = vpack.c.b16 %v1821, %v1811
    %v2112 = vpack.c.b16 %v1822, %v1812
    %v2113 = vpack.c.b16 %v1823, %v1813
    %v2114 = vpack.c.b16 %v1824, %v1814
    %v2115 = vpack.c.b16 %v1825, %v1815
    %v2116 = vpack.c.b16 %v1826, %v1816
    %v2117 = vpack.c.b16 %v1837, %v1827
    %v2118 = vpack.c.b16 %v1838, %v1828
    %v2119 = vpack.c.b16 %v1839, %v1829
    %v2120 = vpack.c.b16 %v1840, %v1830
    %v2121 = vpack.c.b16 %v1841, %v1831
    %v2122 = vpack.c.b16 %v1842, %v1832
    %v2123 = vpack.c.b16 %v1843, %v1833
    %v2124 = vpack.c.b16 %v1844, %v1834
    %v2125 = vpack.c.b16 %v1845, %v1835
    %v2126 = vpack.c.b16 %v1846, %v1836
    %v2127 = vpack.c.b16 %v1857, %v1847
    %v2128 = vpack.c.b16 %v1858, %v1848
    %v2129 = vpack.c.b16 %v1859, %v1849
    %v2130 = vpack.c.b16 %v1860, %v1850
    %v2131 = vpack.c.b16 %v1861, %v1851
    %v2132 = vpack.c.b16 %v1862, %v1852
    %v2133 = vpack.c.b16 %v1863, %v1853
    %v2134 = vpack.c.b16 %v1864, %v1854
    %v2135 = vpack.c.b16 %v1865, %v1855
    %v2136 = vpack.c.b16 %v1866, %v1856
    %v2137 = vpack.c.b16 %v1877, %v1867
    %v2138 = vpack.c.b16 %v1878, %v1868
    %v2139 = vpack.c.b16 %v1879, %v1869
    %v2140 = vpack.c.b16 %v1880, %v1870
    %v2141 = vpack.c.b16 %v1881, %v1871
    %v2142 = vpack.c.b16 %v1882, %v1872
    %v2143 = vpack.c.b16 %v1883, %v1873
    %v2144 = vpack.c.b16 %v1884, %v1874
    %v2145 = vpack.c.b16 %v1885, %v1875
    %v2146 = vpack.c.b16 %v1886, %v1876
    %v2147 = vpack.c.b16 %v1897, %v1887
    %v2148 = vpack.c.b16 %v1898, %v1888
    %v2149 = vpack.c.b16 %v1899, %v1889
    %v2150 = vpack.c.b16 %v1900, %v1890
    %v2151 = vpack.c.b16 %v1901, %v1891
    %v2152 = vpack.c.b16 %v1902, %v1892
    %v2153 = vpack.c.b16 %v1903, %v1893
    %v2154 = vpack.c.b16 %v1904, %v1894
    %v2155 = vpack.c.b16 %v1905, %v1895
    %v2156 = vpack.c.b16 %v1906, %v1896
    %v2157 = vpack.c.b16 %v1917, %v1907
    %v2158 = vpack.c.b16 %v1918, %v1908
    %v2159 = vpack.c.b16 %v1919, %v1909
    %v2160 = vpack.c.b16 %v1920, %v1910
    %v2161 = vpack.c.b16 %v1921, %v1911
    %v2162 = vpack.c.b16 %v1922, %v1912
    %v2163 = vpack.c.b16 %v1923, %v1913
    %v2164 = vpack.c.b16 %v1924, %v1914
    %v2165 = vpack.c.b16 %v1925, %v1915
    %v2166 = vpack.c.b16 %v1926, %v1916
    %v2167 = vpack.c.b16 %v1937, %v1927
    %v2168 = vpack.c.b16 %v1938, %v1928
    %v2169 = vpack.c.b16 %v1939, %v1929
    %v2170 = vpack.c.b16 %v1940, %v1930
    %v2171 = vpack.c.b16 %v1941, %v1931
    %v2172 = vpack.c.b16 %v1942, %v1932
    %v2173 = vpack.c.b16 %v1943, %v1933
    %v2174 = vpack.c.b16 %v1944, %v1934
    %v2175 = vpack.c.b16 %v1945, %v1935
    %v2176 = vpack.c.b16 %v1946, %v1936
    %v2177 = vpack.c.b16 %v1957, %v1947
    %v2178 = vpack.c.b16 %v1958, %v1948
    %v2179 = vpack.c.b16 %v1959, %v1949
    %v2180 = vpack.c.b16 %v1960, %v1950
    %v2181 = vpack.c.b16 %v1961, %v1951
    %v2182 = vpack.c.b16 %v1962, %v1952
    %v2183 = vpack.c.b16 %v1963, %v1953
    %v2184 = vpack.c.b16 %v1964, %v1954
    %v2185 = vpack.c.b16 %v1965, %v1955
    %v2186 = vpack.c.b16 %v1966, %v1956
    %v2187 = vpack.c.b16 %v1977, %v1967
    %v2188 = vpack.c.b16 %v1978, %v1968
    %v2189 = vpack.c.b16 %v1979, %v1969
    %v2190 = vpack.c.b16 %v1980, %v1970
    %v2191 = vpack.c.b16 %v1981, %v1971
    %v2192 = vpack.c.b16 %v1982, %v1972
    %v2193 = vpack.c.b16 %v1983, %v1973
    %v2194 = vpack.c.b16 %v1984, %v1974
    %v2195 = vpack.c.b16 %v1985, %v1975
    %v2196 = vpack.c.b16 %v1986, %v1976
    %v2197 = vpack.c.b16 %v1997, %v1987
    %v2198 = vpack.c.b16 %v1998, %v1988
    %v2199 = vpack.c.b16 %v1999, %v1989
    %v2200 = vpack.c.b16 %v2000, %v1990
    %v2201 = vpack.c.b16 %v2001, %v1991
    %v2202 = vpack.c.b16 %v2002, %v1992
    %v2203 = vpack.c.b16 %v2003, %v1993
    %v2204 = vpack.c.b16 %v2004, %v1994
    %v2205 = vpack.c.b16 %v2005, %v1995
    %v2206 = vpack.c.b16 %v2006, %v1996
    %v2408 = vsel %vm899, %v1182, 0
    %2410 = vmatpush.bf16.msra.mxu0 %v2077
    %2411 = vmatpush.bf16.msra.mxu0 %v2067
    %2412 = vmatpush.bf16.msra.mxu0 %v2057
    %2413 = vmatpush.bf16.msra.mxu0 %v2047
    %2414 = vmatpush.bf16.msra.mxu0 %v2037
    %2415 = vmatpush.bf16.msra.mxu0 %v2027
    %2416 = vmatpush.bf16.msra.mxu0 %v2017
    %2417 = vmatpush.bf16.msra.mxu0 %v2007
    %2418 = vmatmul.bf16.gmra.mxu0 %v1180
    %v2419 = vpop.f32.mrf.mxu0
    %v2420 = vadd.f32 %v1387, %v2419
    %v2421 = vpop.f32.mrf.mxu0
    %v2422 = vadd.f32 %v1387, %v2421
    %2423 = vdwg.mxu0
    %2424 = vmatpush.bf16.msra.mxu0 %v2157
    %2425 = vmatpush.bf16.msra.mxu0 %v2147
    %2426 = vmatpush.bf16.msra.mxu0 %v2137
    %2427 = vmatpush.bf16.msra.mxu0 %v2127
    %2428 = vmatpush.bf16.msra.mxu0 %v2117
    %2429 = vmatpush.bf16.msra.mxu0 %v2107
    %2430 = vmatpush.bf16.msra.mxu0 %v2097
    %2431 = vmatpush.bf16.msra.mxu0 %v2087
    %2432 = vmatmul.bf16.gmra.mxu0 %v1181
    %v2433 = vpop.f32.mrf.mxu0
    %v2434 = vadd.f32 %v2420, %v2433
    %v2435 = vpop.f32.mrf.mxu0
    %v2436 = vadd.f32 %v2422, %v2435
    %2437 = vdwg.mxu0
    %2438 = vmatpush.bf16.msra.mxu0 0
    %2439 = vmatpush.bf16.msra.mxu0 0
    %2440 = vmatpush.bf16.msra.mxu0 0
    %2441 = vmatpush.bf16.msra.mxu0 0
    %2442 = vmatpush.bf16.msra.mxu0 %v2197
    %2443 = vmatpush.bf16.msra.mxu0 %v2187
    %2444 = vmatpush.bf16.msra.mxu0 %v2177
    %2445 = vmatpush.bf16.msra.mxu0 %v2167
    %2446 = vmatmul.bf16.gmra.mxu0 %v2408
    %v2447 = vpop.f32.mrf.mxu0
    %v2448 = vadd.f32 %v2434, %v2447
    %v2449 = vpop.f32.mrf.mxu0
    %v2450 = vadd.f32 %v2436, %v2449
    %2451 = vdwg.mxu0
    %2452 = vmatpush.bf16.msra.mxu0 %v2078
    %2453 = vmatpush.bf16.msra.mxu0 %v2068
    %2454 = vmatpush.bf16.msra.mxu0 %v2058
    %2455 = vmatpush.bf16.msra.mxu0 %v2048
    %2456 = vmatpush.bf16.msra.mxu0 %v2038
    %2457 = vmatpush.bf16.msra.mxu0 %v2028
    %2458 = vmatpush.bf16.msra.mxu0 %v2018
    %2459 = vmatpush.bf16.msra.mxu0 %v2008
    %2460 = vmatmul.bf16.gmra.mxu0 %v1180
    %v2461 = vpop.f32.mrf.mxu0
    %v2462 = vadd.f32 %v1388, %v2461
    %v2463 = vpop.f32.mrf.mxu0
    %v2464 = vadd.f32 %v1388, %v2463
    %2465 = vdwg.mxu0
    %2466 = vmatpush.bf16.msra.mxu0 %v2158
    %2467 = vmatpush.bf16.msra.mxu0 %v2148
    %2468 = vmatpush.bf16.msra.mxu0 %v2138
    %2469 = vmatpush.bf16.msra.mxu0 %v2128
    %2470 = vmatpush.bf16.msra.mxu0 %v2118
    %2471 = vmatpush.bf16.msra.mxu0 %v2108
    %2472 = vmatpush.bf16.msra.mxu0 %v2098
    %2473 = vmatpush.bf16.msra.mxu0 %v2088
    %2474 = vmatmul.bf16.gmra.mxu0 %v1181
    %v2475 = vpop.f32.mrf.mxu0
    %v2476 = vadd.f32 %v2462, %v2475
    %v2477 = vpop.f32.mrf.mxu0
    %v2478 = vadd.f32 %v2464, %v2477
    %2479 = vdwg.mxu0
    %2480 = vmatpush.bf16.msra.mxu0 0
    %2481 = vmatpush.bf16.msra.mxu0 0
    %2482 = vmatpush.bf16.msra.mxu0 0
    %2483 = vmatpush.bf16.msra.mxu0 0
    %2484 = vmatpush.bf16.msra.mxu0 %v2198
    %2485 = vmatpush.bf16.msra.mxu0 %v2188
    %2486 = vmatpush.bf16.msra.mxu0 %v2178
    %2487 = vmatpush.bf16.msra.mxu0 %v2168
    %2488 = vmatmul.bf16.gmra.mxu0 %v2408
    %v2489 = vpop.f32.mrf.mxu0
    %v2490 = vadd.f32 %v2476, %v2489
    %v2491 = vpop.f32.mrf.mxu0
    %v2492 = vadd.f32 %v2478, %v2491
    %2493 = vdwg.mxu0
    %2494 = vmatpush.bf16.msra.mxu0 %v2079
    %2495 = vmatpush.bf16.msra.mxu0 %v2069
    %2496 = vmatpush.bf16.msra.mxu0 %v2059
    %2497 = vmatpush.bf16.msra.mxu0 %v2049
    %2498 = vmatpush.bf16.msra.mxu0 %v2039
    %2499 = vmatpush.bf16.msra.mxu0 %v2029
    %2500 = vmatpush.bf16.msra.mxu0 %v2019
    %2501 = vmatpush.bf16.msra.mxu0 %v2009
    %2502 = vmatmul.bf16.gmra.mxu0 %v1180
    %v2503 = vpop.f32.mrf.mxu0
    %v2504 = vadd.f32 %v1389, %v2503
    %v2505 = vpop.f32.mrf.mxu0
    %v2506 = vadd.f32 %v1389, %v2505
    %2507 = vdwg.mxu0
    %2508 = vmatpush.bf16.msra.mxu0 %v2159
    %2509 = vmatpush.bf16.msra.mxu0 %v2149
    %2510 = vmatpush.bf16.msra.mxu0 %v2139
    %2511 = vmatpush.bf16.msra.mxu0 %v2129
    %2512 = vmatpush.bf16.msra.mxu0 %v2119
    %2513 = vmatpush.bf16.msra.mxu0 %v2109
    %2514 = vmatpush.bf16.msra.mxu0 %v2099
    %2515 = vmatpush.bf16.msra.mxu0 %v2089
    %2516 = vmatmul.bf16.gmra.mxu0 %v1181
    %v2517 = vpop.f32.mrf.mxu0
    %v2518 = vadd.f32 %v2504, %v2517
    %v2519 = vpop.f32.mrf.mxu0
    %v2520 = vadd.f32 %v2506, %v2519
    %2521 = vdwg.mxu0
    %2522 = vmatpush.bf16.msra.mxu0 0
    %2523 = vmatpush.bf16.msra.mxu0 0
    %2524 = vmatpush.bf16.msra.mxu0 0
    %2525 = vmatpush.bf16.msra.mxu0 0
    %2526 = vmatpush.bf16.msra.mxu0 %v2199
    %2527 = vmatpush.bf16.msra.mxu0 %v2189
    %2528 = vmatpush.bf16.msra.mxu0 %v2179
    %2529 = vmatpush.bf16.msra.mxu0 %v2169
    %2530 = vmatmul.bf16.gmra.mxu0 %v2408
    %v2531 = vpop.f32.mrf.mxu0
    %v2532 = vadd.f32 %v2518, %v2531
    %v2533 = vpop.f32.mrf.mxu0
    %v2534 = vadd.f32 %v2520, %v2533
    %2535 = vdwg.mxu0
    %2536 = vmatpush.bf16.msra.mxu0 %v2080
    %2537 = vmatpush.bf16.msra.mxu0 %v2070
    %2538 = vmatpush.bf16.msra.mxu0 %v2060
    %2539 = vmatpush.bf16.msra.mxu0 %v2050
    %2540 = vmatpush.bf16.msra.mxu0 %v2040
    %2541 = vmatpush.bf16.msra.mxu0 %v2030
    %2542 = vmatpush.bf16.msra.mxu0 %v2020
    %2543 = vmatpush.bf16.msra.mxu0 %v2010
    %2544 = vmatmul.bf16.gmra.mxu0 %v1180
    %v2545 = vpop.f32.mrf.mxu0
    %v2546 = vadd.f32 %v1390, %v2545
    %v2547 = vpop.f32.mrf.mxu0
    %v2548 = vadd.f32 %v1390, %v2547
    %2549 = vdwg.mxu0
    %2550 = vmatpush.bf16.msra.mxu0 %v2160
    %2551 = vmatpush.bf16.msra.mxu0 %v2150
    %2552 = vmatpush.bf16.msra.mxu0 %v2140
    %2553 = vmatpush.bf16.msra.mxu0 %v2130
    %2554 = vmatpush.bf16.msra.mxu0 %v2120
    %2555 = vmatpush.bf16.msra.mxu0 %v2110
    %2556 = vmatpush.bf16.msra.mxu0 %v2100
    %2557 = vmatpush.bf16.msra.mxu0 %v2090
    %2558 = vmatmul.bf16.gmra.mxu0 %v1181
    %v2559 = vpop.f32.mrf.mxu0
    %v2560 = vadd.f32 %v2546, %v2559
    %v2561 = vpop.f32.mrf.mxu0
    %v2562 = vadd.f32 %v2548, %v2561
    %2563 = vdwg.mxu0
    %2564 = vmatpush.bf16.msra.mxu0 0
    %2565 = vmatpush.bf16.msra.mxu0 0
    %2566 = vmatpush.bf16.msra.mxu0 0
    %2567 = vmatpush.bf16.msra.mxu0 0
    %2568 = vmatpush.bf16.msra.mxu0 %v2200
    %2569 = vmatpush.bf16.msra.mxu0 %v2190
    %2570 = vmatpush.bf16.msra.mxu0 %v2180
    %2571 = vmatpush.bf16.msra.mxu0 %v2170
    %2572 = vmatmul.bf16.gmra.mxu0 %v2408
    %v2573 = vpop.f32.mrf.mxu0
    %v2574 = vadd.f32 %v2560, %v2573
    %v2575 = vpop.f32.mrf.mxu0
    %v2576 = vadd.f32 %v2562, %v2575
    %2577 = vdwg.mxu0
    %2578 = vmatpush.bf16.msra.mxu0 %v2081
    %2579 = vmatpush.bf16.msra.mxu0 %v2071
    %2580 = vmatpush.bf16.msra.mxu0 %v2061
    %2581 = vmatpush.bf16.msra.mxu0 %v2051
    %2582 = vmatpush.bf16.msra.mxu0 %v2041
    %2583 = vmatpush.bf16.msra.mxu0 %v2031
    %2584 = vmatpush.bf16.msra.mxu0 %v2021
    %2585 = vmatpush.bf16.msra.mxu0 %v2011
    %2586 = vmatmul.bf16.gmra.mxu0 %v1180
    %v2587 = vpop.f32.mrf.mxu0
    %v2588 = vadd.f32 %v1391, %v2587
    %v2589 = vpop.f32.mrf.mxu0
    %v2590 = vadd.f32 %v1391, %v2589
    %2591 = vdwg.mxu0
    %2592 = vmatpush.bf16.msra.mxu0 %v2161
    %2593 = vmatpush.bf16.msra.mxu0 %v2151
    %2594 = vmatpush.bf16.msra.mxu0 %v2141
    %2595 = vmatpush.bf16.msra.mxu0 %v2131
    %2596 = vmatpush.bf16.msra.mxu0 %v2121
    %2597 = vmatpush.bf16.msra.mxu0 %v2111
    %2598 = vmatpush.bf16.msra.mxu0 %v2101
    %2599 = vmatpush.bf16.msra.mxu0 %v2091
    %2600 = vmatmul.bf16.gmra.mxu0 %v1181
    %v2601 = vpop.f32.mrf.mxu0
    %v2602 = vadd.f32 %v2588, %v2601
    %v2603 = vpop.f32.mrf.mxu0
    %v2604 = vadd.f32 %v2590, %v2603
    %2605 = vdwg.mxu0
    %2606 = vmatpush.bf16.msra.mxu0 0
    %2607 = vmatpush.bf16.msra.mxu0 0
    %2608 = vmatpush.bf16.msra.mxu0 0
    %2609 = vmatpush.bf16.msra.mxu0 0
    %2610 = vmatpush.bf16.msra.mxu0 %v2201
    %2611 = vmatpush.bf16.msra.mxu0 %v2191
    %2612 = vmatpush.bf16.msra.mxu0 %v2181
    %2613 = vmatpush.bf16.msra.mxu0 %v2171
    %2614 = vmatmul.bf16.gmra.mxu0 %v2408
    %v2615 = vpop.f32.mrf.mxu0
    %v2616 = vadd.f32 %v2602, %v2615
    %v2617 = vpop.f32.mrf.mxu0
    %v2618 = vadd.f32 %v2604, %v2617
    %2619 = vdwg.mxu0
    %2620 = vmatpush.bf16.msra.mxu0 %v2082
    %2621 = vmatpush.bf16.msra.mxu0 %v2072
    %2622 = vmatpush.bf16.msra.mxu0 %v2062
    %2623 = vmatpush.bf16.msra.mxu0 %v2052
    %2624 = vmatpush.bf16.msra.mxu0 %v2042
    %2625 = vmatpush.bf16.msra.mxu0 %v2032
    %2626 = vmatpush.bf16.msra.mxu0 %v2022
    %2627 = vmatpush.bf16.msra.mxu0 %v2012
    %2628 = vmatmul.bf16.gmra.mxu0 %v1180
    %v2629 = vpop.f32.mrf.mxu0
    %v2630 = vadd.f32 %v1392, %v2629
    %v2631 = vpop.f32.mrf.mxu0
    %v2632 = vadd.f32 %v1392, %v2631
    %2633 = vdwg.mxu0
    %2634 = vmatpush.bf16.msra.mxu0 %v2162
    %2635 = vmatpush.bf16.msra.mxu0 %v2152
    %2636 = vmatpush.bf16.msra.mxu0 %v2142
    %2637 = vmatpush.bf16.msra.mxu0 %v2132
    %2638 = vmatpush.bf16.msra.mxu0 %v2122
    %2639 = vmatpush.bf16.msra.mxu0 %v2112
    %2640 = vmatpush.bf16.msra.mxu0 %v2102
    %2641 = vmatpush.bf16.msra.mxu0 %v2092
    %2642 = vmatmul.bf16.gmra.mxu0 %v1181
    %v2643 = vpop.f32.mrf.mxu0
    %v2644 = vadd.f32 %v2630, %v2643
    %v2645 = vpop.f32.mrf.mxu0
    %v2646 = vadd.f32 %v2632, %v2645
    %2647 = vdwg.mxu0
    %2648 = vmatpush.bf16.msra.mxu0 0
    %2649 = vmatpush.bf16.msra.mxu0 0
    %2650 = vmatpush.bf16.msra.mxu0 0
    %2651 = vmatpush.bf16.msra.mxu0 0
    %2652 = vmatpush.bf16.msra.mxu0 %v2202
    %2653 = vmatpush.bf16.msra.mxu0 %v2192
    %2654 = vmatpush.bf16.msra.mxu0 %v2182
    %2655 = vmatpush.bf16.msra.mxu0 %v2172
    %2656 = vmatmul.bf16.gmra.mxu0 %v2408
    %v2657 = vpop.f32.mrf.mxu0
    %v2658 = vadd.f32 %v2644, %v2657
    %v2659 = vpop.f32.mrf.mxu0
    %v2660 = vadd.f32 %v2646, %v2659
    %2661 = vdwg.mxu0
    %2662 = vmatpush.bf16.msra.mxu0 %v2083
    %2663 = vmatpush.bf16.msra.mxu0 %v2073
    %2664 = vmatpush.bf16.msra.mxu0 %v2063
    %2665 = vmatpush.bf16.msra.mxu0 %v2053
    %2666 = vmatpush.bf16.msra.mxu0 %v2043
    %2667 = vmatpush.bf16.msra.mxu0 %v2033
    %2668 = vmatpush.bf16.msra.mxu0 %v2023
    %2669 = vmatpush.bf16.msra.mxu0 %v2013
    %2670 = vmatmul.bf16.gmra.mxu0 %v1180
    %v2671 = vpop.f32.mrf.mxu0
    %v2672 = vadd.f32 %v1393, %v2671
    %v2673 = vpop.f32.mrf.mxu0
    %v2674 = vadd.f32 %v1393, %v2673
    %2675 = vdwg.mxu0
    %2676 = vmatpush.bf16.msra.mxu0 %v2163
    %2677 = vmatpush.bf16.msra.mxu0 %v2153
    %2678 = vmatpush.bf16.msra.mxu0 %v2143
    %2679 = vmatpush.bf16.msra.mxu0 %v2133
    %2680 = vmatpush.bf16.msra.mxu0 %v2123
    %2681 = vmatpush.bf16.msra.mxu0 %v2113
    %2682 = vmatpush.bf16.msra.mxu0 %v2103
    %2683 = vmatpush.bf16.msra.mxu0 %v2093
    %2684 = vmatmul.bf16.gmra.mxu0 %v1181
    %v2685 = vpop.f32.mrf.mxu0
    %v2686 = vadd.f32 %v2672, %v2685
    %v2687 = vpop.f32.mrf.mxu0
    %v2688 = vadd.f32 %v2674, %v2687
    %2689 = vdwg.mxu0
    %2690 = vmatpush.bf16.msra.mxu0 0
    %2691 = vmatpush.bf16.msra.mxu0 0
    %2692 = vmatpush.bf16.msra.mxu0 0
    %2693 = vmatpush.bf16.msra.mxu0 0
    %2694 = vmatpush.bf16.msra.mxu0 %v2203
    %2695 = vmatpush.bf16.msra.mxu0 %v2193
    %2696 = vmatpush.bf16.msra.mxu0 %v2183
    %2697 = vmatpush.bf16.msra.mxu0 %v2173
    %2698 = vmatmul.bf16.gmra.mxu0 %v2408
    %v2699 = vpop.f32.mrf.mxu0
    %v2700 = vadd.f32 %v2686, %v2699
    %v2701 = vpop.f32.mrf.mxu0
    %v2702 = vadd.f32 %v2688, %v2701
    %2703 = vdwg.mxu0
    %2704 = vmatpush.bf16.msra.mxu0 %v2084
    %2705 = vmatpush.bf16.msra.mxu0 %v2074
    %2706 = vmatpush.bf16.msra.mxu0 %v2064
    %2707 = vmatpush.bf16.msra.mxu0 %v2054
    %2708 = vmatpush.bf16.msra.mxu0 %v2044
    %2709 = vmatpush.bf16.msra.mxu0 %v2034
    %2710 = vmatpush.bf16.msra.mxu0 %v2024
    %2711 = vmatpush.bf16.msra.mxu0 %v2014
    %2712 = vmatmul.bf16.gmra.mxu0 %v1180
    %v2713 = vpop.f32.mrf.mxu0
    %v2714 = vadd.f32 %v1394, %v2713
    %v2715 = vpop.f32.mrf.mxu0
    %v2716 = vadd.f32 %v1394, %v2715
    %2717 = vdwg.mxu0
    %2718 = vmatpush.bf16.msra.mxu0 %v2164
    %2719 = vmatpush.bf16.msra.mxu0 %v2154
    %2720 = vmatpush.bf16.msra.mxu0 %v2144
    %2721 = vmatpush.bf16.msra.mxu0 %v2134
    %2722 = vmatpush.bf16.msra.mxu0 %v2124
    %2723 = vmatpush.bf16.msra.mxu0 %v2114
    %2724 = vmatpush.bf16.msra.mxu0 %v2104
    %2725 = vmatpush.bf16.msra.mxu0 %v2094
    %2726 = vmatmul.bf16.gmra.mxu0 %v1181
    %v2727 = vpop.f32.mrf.mxu0
    %v2728 = vadd.f32 %v2714, %v2727
    %v2729 = vpop.f32.mrf.mxu0
    %v2730 = vadd.f32 %v2716, %v2729
    %2731 = vdwg.mxu0
    %2732 = vmatpush.bf16.msra.mxu0 0
    %2733 = vmatpush.bf16.msra.mxu0 0
    %2734 = vmatpush.bf16.msra.mxu0 0
    %2735 = vmatpush.bf16.msra.mxu0 0
    %2736 = vmatpush.bf16.msra.mxu0 %v2204
    %2737 = vmatpush.bf16.msra.mxu0 %v2194
    %2738 = vmatpush.bf16.msra.mxu0 %v2184
    %2739 = vmatpush.bf16.msra.mxu0 %v2174
    %2740 = vmatmul.bf16.gmra.mxu0 %v2408
    %v2741 = vpop.f32.mrf.mxu0
    %v2742 = vadd.f32 %v2728, %v2741
    %v2743 = vpop.f32.mrf.mxu0
    %v2744 = vadd.f32 %v2730, %v2743
    %2745 = vdwg.mxu0
    %2746 = vmatpush.bf16.msra.mxu0 %v2085
    %2747 = vmatpush.bf16.msra.mxu0 %v2075
    %2748 = vmatpush.bf16.msra.mxu0 %v2065
    %2749 = vmatpush.bf16.msra.mxu0 %v2055
    %2750 = vmatpush.bf16.msra.mxu0 %v2045
    %2751 = vmatpush.bf16.msra.mxu0 %v2035
    %2752 = vmatpush.bf16.msra.mxu0 %v2025
    %2753 = vmatpush.bf16.msra.mxu0 %v2015
    %2754 = vmatmul.bf16.gmra.mxu0 %v1180
    %v2755 = vpop.f32.mrf.mxu0
    %v2756 = vadd.f32 %v1395, %v2755
    %v2757 = vpop.f32.mrf.mxu0
    %v2758 = vadd.f32 %v1395, %v2757
    %2759 = vdwg.mxu0
    %2760 = vmatpush.bf16.msra.mxu0 %v2165
    %2761 = vmatpush.bf16.msra.mxu0 %v2155
    %2762 = vmatpush.bf16.msra.mxu0 %v2145
    %2763 = vmatpush.bf16.msra.mxu0 %v2135
    %2764 = vmatpush.bf16.msra.mxu0 %v2125
    %2765 = vmatpush.bf16.msra.mxu0 %v2115
    %2766 = vmatpush.bf16.msra.mxu0 %v2105
    %2767 = vmatpush.bf16.msra.mxu0 %v2095
    %2768 = vmatmul.bf16.gmra.mxu0 %v1181
    %v2769 = vpop.f32.mrf.mxu0
    %v2770 = vadd.f32 %v2756, %v2769
    %v2771 = vpop.f32.mrf.mxu0
    %v2772 = vadd.f32 %v2758, %v2771
    %2773 = vdwg.mxu0
    %2774 = vmatpush.bf16.msra.mxu0 0
    %2775 = vmatpush.bf16.msra.mxu0 0
    %2776 = vmatpush.bf16.msra.mxu0 0
    %2777 = vmatpush.bf16.msra.mxu0 0
    %2778 = vmatpush.bf16.msra.mxu0 %v2205
    %2779 = vmatpush.bf16.msra.mxu0 %v2195
    %2780 = vmatpush.bf16.msra.mxu0 %v2185
    %2781 = vmatpush.bf16.msra.mxu0 %v2175
    %2782 = vmatmul.bf16.gmra.mxu0 %v2408
    %v2783 = vpop.f32.mrf.mxu0
    %v2784 = vadd.f32 %v2770, %v2783
    %v2785 = vpop.f32.mrf.mxu0
    %v2786 = vadd.f32 %v2772, %v2785
    %2787 = vdwg.mxu0
    %2788 = vmatpush.bf16.msra.mxu0 %v2086
    %2789 = vmatpush.bf16.msra.mxu0 %v2076
    %2790 = vmatpush.bf16.msra.mxu0 %v2066
    %2791 = vmatpush.bf16.msra.mxu0 %v2056
    %2792 = vmatpush.bf16.msra.mxu0 %v2046
    %2793 = vmatpush.bf16.msra.mxu0 %v2036
    %2794 = vmatpush.bf16.msra.mxu0 %v2026
    %2795 = vmatpush.bf16.msra.mxu0 %v2016
    %2796 = vmatmul.bf16.gmra.mxu0 %v1180
    %v2797 = vpop.f32.mrf.mxu0
    %v2798 = vadd.f32 %v1396, %v2797
    %v2799 = vpop.f32.mrf.mxu0
    %v2800 = vadd.f32 %v1396, %v2799
    %2801 = vdwg.mxu0
    %2802 = vmatpush.bf16.msra.mxu0 %v2166
    %2803 = vmatpush.bf16.msra.mxu0 %v2156
    %2804 = vmatpush.bf16.msra.mxu0 %v2146
    %2805 = vmatpush.bf16.msra.mxu0 %v2136
    %2806 = vmatpush.bf16.msra.mxu0 %v2126
    %2807 = vmatpush.bf16.msra.mxu0 %v2116
    %2808 = vmatpush.bf16.msra.mxu0 %v2106
    %2809 = vmatpush.bf16.msra.mxu0 %v2096
    %2810 = vmatmul.bf16.gmra.mxu0 %v1181
    %v2811 = vpop.f32.mrf.mxu0
    %v2812 = vadd.f32 %v2798, %v2811
    %v2813 = vpop.f32.mrf.mxu0
    %v2814 = vadd.f32 %v2800, %v2813
    %2815 = vdwg.mxu0
    %2816 = vmatpush.bf16.msra.mxu0 0
    %2817 = vmatpush.bf16.msra.mxu0 0
    %2818 = vmatpush.bf16.msra.mxu0 0
    %2819 = vmatpush.bf16.msra.mxu0 0
    %2820 = vmatpush.bf16.msra.mxu0 %v2206
    %2821 = vmatpush.bf16.msra.mxu0 %v2196
    %2822 = vmatpush.bf16.msra.mxu0 %v2186
    %2823 = vmatpush.bf16.msra.mxu0 %v2176
    %2824 = vmatmul.bf16.gmra.mxu0 %v2408
    %v2825 = vpop.f32.mrf.mxu0
    %v2826 = vadd.f32 %v2812, %v2825
    %v2827 = vpop.f32.mrf.mxu0
    %v2828 = vadd.f32 %v2814, %v2827
    %2829 = vdwg.mxu0
    %v2830 = vmul.f32 %v2448, 0.5
    %v2831 = vmul.f32 %v2490, 0.5
    %v2832 = vmul.f32 %v2532, 0.5
    %v2833 = vmul.f32 %v2574, 0.5
    %v2834 = vmul.f32 %v2616, 0.5
    %v2835 = vmul.f32 %v2658, 0.5
    %v2836 = vmul.f32 %v2700, 0.5
    %v2837 = vmul.f32 %v2742, 0.5
    %v2838 = vmul.f32 %v2784, 0.5
    %v2839 = vmul.f32 %v2826, 0.5
    %v2840 = vmul.f32 %v2450, 0.5
    %v2841 = vmul.f32 %v2492, 0.5
    %v2842 = vmul.f32 %v2534, 0.5
    %v2843 = vmul.f32 %v2576, 0.5
    %v2844 = vmul.f32 %v2618, 0.5
    %v2845 = vmul.f32 %v2660, 0.5
    %v2846 = vmul.f32 %v2702, 0.5
    %v2847 = vmul.f32 %v2744, 0.5
    %v2848 = vmul.f32 %v2786, 0.5
    %v2849 = vmul.f32 %v2828, 0.5
    %v2850 = vmul.f32 %v2448, 0.70710677
    %v2851 = vmul.f32 %v2490, 0.70710677
    %v2852 = vmul.f32 %v2532, 0.70710677
    %v2853 = vmul.f32 %v2574, 0.70710677
    %v2854 = vmul.f32 %v2616, 0.70710677
    %v2855 = vmul.f32 %v2658, 0.70710677
    %v2856 = vmul.f32 %v2700, 0.70710677
    %v2857 = vmul.f32 %v2742, 0.70710677
    %v2858 = vmul.f32 %v2784, 0.70710677
    %v2859 = vmul.f32 %v2826, 0.70710677
    %v2860 = vmul.f32 %v2450, 0.70710677
    %v2861 = vmul.f32 %v2492, 0.70710677
    %v2862 = vmul.f32 %v2534, 0.70710677
    %v2863 = vmul.f32 %v2576, 0.70710677
    %v2864 = vmul.f32 %v2618, 0.70710677
    %v2865 = vmul.f32 %v2660, 0.70710677
    %v2866 = vmul.f32 %v2702, 0.70710677
    %v2867 = vmul.f32 %v2744, 0.70710677
    %v2868 = vmul.f32 %v2786, 0.70710677
    %v2869 = vmul.f32 %v2828, 0.70710677
    %v2870 = vmul.f32 %v2850, %v2850
    %v2871 = vmin.f32 16.0, %v2870
    %v2872 = vmul.f32 %v2871, 2.1237322e-06
    %v2873 = vadd.f32 %v2872, 0.00028619796
    %v2874 = vmul.f32 %v2871, %v2873
    %v2875 = vadd.f32 %v2874, 0.0036580483
    %v2876 = vmul.f32 %v2871, %v2875
    %v2877 = vadd.f32 %v2876, 0.05243302
    %v2878 = vmul.f32 %v2871, %v2877
    %v2879 = vadd.f32 %v2878, 0.18741608
    %v2880 = vmul.f32 %v2871, %v2879
    %v2881 = vadd.f32 %v2880, 1.1283791
    %v2882 = vmul.f32 %v2850, %v2881
    %v2883 = vmul.f32 %v2871, 3.8918573e-05
    %v2884 = vadd.f32 %v2883, 0.001143296
    %v2885 = vmul.f32 %v2871, %v2884
    %v2886 = vadd.f32 %v2885, 0.014752088
    %v2887 = vmul.f32 %v2871, %v2886
    %v2888 = vadd.f32 %v2887, 0.112945676
    %v2889 = vmul.f32 %v2871, %v2888
    %v2890 = vadd.f32 %v2889, 0.4994258
    %v2891 = vmul.f32 %v2871, %v2890
    %v2892 = vadd.f32 %v2891, 1.0
    %v2893 = vrcp.pop %v2892
    %v2894 = vmul.f32 %v2892, %v2893
    %v2895 = vsub.f32 1.0, %v2894
    %v2896 = vmul.f32 %v2893, %v2895
    %v2897 = vadd.f32 %v2893, %v2896
    %vm2898 = vweird.f32 %v2892
    %vm2899 = vweird.f32 %v2893
    %vm2900 = vmor %vm2898, %vm2899
    %v2901 = vsel %vm2900, %v2893, %v2897
    %v2902 = vand.u32 2147483647, %v2892
    %vm2903 = vcmp.eq.f32.partialorder %v2902, 8.507059e+37
    %v2904 = vand.u32 %v2892, 2147483648
    %v2905 = vor.u32 1.1754944e-38, %v2904
    %v2906 = vsel %vm2903, %v2905, %v2901
    %v2907 = vmul.f32 %v2882, %v2906
    %v2908 = vmin.f32 %v2907, 1.0
    %v2909 = vmax.f32 %v2908, -1.0
    %v2910 = vmul.f32 %v2851, %v2851
    %v2911 = vmin.f32 16.0, %v2910
    %v2912 = vmul.f32 %v2911, 2.1237322e-06
    %v2913 = vadd.f32 %v2912, 0.00028619796
    %v2914 = vmul.f32 %v2911, %v2913
    %v2915 = vadd.f32 %v2914, 0.0036580483
    %v2916 = vmul.f32 %v2911, %v2915
    %v2917 = vadd.f32 %v2916, 0.05243302
    %v2918 = vmul.f32 %v2911, %v2917
    %v2919 = vadd.f32 %v2918, 0.18741608
    %v2920 = vmul.f32 %v2911, %v2919
    %v2921 = vadd.f32 %v2920, 1.1283791
    %v2922 = vmul.f32 %v2851, %v2921
    %v2923 = vmul.f32 %v2911, 3.8918573e-05
    %v2924 = vadd.f32 %v2923, 0.001143296
    %v2925 = vmul.f32 %v2911, %v2924
    %v2926 = vadd.f32 %v2925, 0.014752088
    %v2927 = vmul.f32 %v2911, %v2926
    %v2928 = vadd.f32 %v2927, 0.112945676
    %v2929 = vmul.f32 %v2911, %v2928
    %v2930 = vadd.f32 %v2929, 0.4994258
    %v2931 = vmul.f32 %v2911, %v2930
    %v2932 = vadd.f32 %v2931, 1.0
    %v2933 = vrcp.pop %v2932
    %v2934 = vmul.f32 %v2932, %v2933
    %v2935 = vsub.f32 1.0, %v2934
    %v2936 = vmul.f32 %v2933, %v2935
    %v2937 = vadd.f32 %v2933, %v2936
    %vm2938 = vweird.f32 %v2932
    %vm2939 = vweird.f32 %v2933
    %vm2940 = vmor %vm2938, %vm2939
    %v2941 = vsel %vm2940, %v2933, %v2937
    %v2942 = vand.u32 2147483647, %v2932
    %vm2943 = vcmp.eq.f32.partialorder %v2942, 8.507059e+37
    %v2944 = vand.u32 %v2932, 2147483648
    %v2945 = vor.u32 1.1754944e-38, %v2944
    %v2946 = vsel %vm2943, %v2945, %v2941
    %v2947 = vmul.f32 %v2922, %v2946
    %v2948 = vmin.f32 %v2947, 1.0
    %v2949 = vmax.f32 %v2948, -1.0
    %v2950 = vmul.f32 %v2852, %v2852
    %v2951 = vmin.f32 16.0, %v2950
    %v2952 = vmul.f32 %v2951, 2.1237322e-06
    %v2953 = vadd.f32 %v2952, 0.00028619796
    %v2954 = vmul.f32 %v2951, %v2953
    %v2955 = vadd.f32 %v2954, 0.0036580483
    %v2956 = vmul.f32 %v2951, %v2955
    %v2957 = vadd.f32 %v2956, 0.05243302
    %v2958 = vmul.f32 %v2951, %v2957
    %v2959 = vadd.f32 %v2958, 0.18741608
    %v2960 = vmul.f32 %v2951, %v2959
    %v2961 = vadd.f32 %v2960, 1.1283791
    %v2962 = vmul.f32 %v2852, %v2961
    %v2963 = vmul.f32 %v2951, 3.8918573e-05
    %v2964 = vadd.f32 %v2963, 0.001143296
    %v2965 = vmul.f32 %v2951, %v2964
    %v2966 = vadd.f32 %v2965, 0.014752088
    %v2967 = vmul.f32 %v2951, %v2966
    %v2968 = vadd.f32 %v2967, 0.112945676
    %v2969 = vmul.f32 %v2951, %v2968
    %v2970 = vadd.f32 %v2969, 0.4994258
    %v2971 = vmul.f32 %v2951, %v2970
    %v2972 = vadd.f32 %v2971, 1.0
    %v2973 = vrcp.pop %v2972
    %v2974 = vmul.f32 %v2972, %v2973
    %v2975 = vsub.f32 1.0, %v2974
    %v2976 = vmul.f32 %v2973, %v2975
    %v2977 = vadd.f32 %v2973, %v2976
    %vm2978 = vweird.f32 %v2972
    %vm2979 = vweird.f32 %v2973
    %vm2980 = vmor %vm2978, %vm2979
    %v2981 = vsel %vm2980, %v2973, %v2977
    %v2982 = vand.u32 2147483647, %v2972
    %vm2983 = vcmp.eq.f32.partialorder %v2982, 8.507059e+37
    %v2984 = vand.u32 %v2972, 2147483648
    %v2985 = vor.u32 1.1754944e-38, %v2984
    %v2986 = vsel %vm2983, %v2985, %v2981
    %v2987 = vmul.f32 %v2962, %v2986
    %v2988 = vmin.f32 %v2987, 1.0
    %v2989 = vmax.f32 %v2988, -1.0
    %v2990 = vmul.f32 %v2853, %v2853
    %v2991 = vmin.f32 16.0, %v2990
    %v2992 = vmul.f32 %v2991, 2.1237322e-06
    %v2993 = vadd.f32 %v2992, 0.00028619796
    %v2994 = vmul.f32 %v2991, %v2993
    %v2995 = vadd.f32 %v2994, 0.0036580483
    %v2996 = vmul.f32 %v2991, %v2995
    %v2997 = vadd.f32 %v2996, 0.05243302
    %v2998 = vmul.f32 %v2991, %v2997
    %v2999 = vadd.f32 %v2998, 0.18741608
    %v3000 = vmul.f32 %v2991, %v2999
    %v3001 = vadd.f32 %v3000, 1.1283791
    %v3002 = vmul.f32 %v2853, %v3001
    %v3003 = vmul.f32 %v2991, 3.8918573e-05
    %v3004 = vadd.f32 %v3003, 0.001143296
    %v3005 = vmul.f32 %v2991, %v3004
    %v3006 = vadd.f32 %v3005, 0.014752088
    %v3007 = vmul.f32 %v2991, %v3006
    %v3008 = vadd.f32 %v3007, 0.112945676
    %v3009 = vmul.f32 %v2991, %v3008
    %v3010 = vadd.f32 %v3009, 0.4994258
    %v3011 = vmul.f32 %v2991, %v3010
    %v3012 = vadd.f32 %v3011, 1.0
    %v3013 = vrcp.pop %v3012
    %v3014 = vmul.f32 %v3012, %v3013
    %v3015 = vsub.f32 1.0, %v3014
    %v3016 = vmul.f32 %v3013, %v3015
    %v3017 = vadd.f32 %v3013, %v3016
    %vm3018 = vweird.f32 %v3012
    %vm3019 = vweird.f32 %v3013
    %vm3020 = vmor %vm3018, %vm3019
    %v3021 = vsel %vm3020, %v3013, %v3017
    %v3022 = vand.u32 2147483647, %v3012
    %vm3023 = vcmp.eq.f32.partialorder %v3022, 8.507059e+37
    %v3024 = vand.u32 %v3012, 2147483648
    %v3025 = vor.u32 1.1754944e-38, %v3024
    %v3026 = vsel %vm3023, %v3025, %v3021
    %v3027 = vmul.f32 %v3002, %v3026
    %v3028 = vmin.f32 %v3027, 1.0
    %v3029 = vmax.f32 %v3028, -1.0
    %v3030 = vmul.f32 %v2854, %v2854
    %v3031 = vmin.f32 16.0, %v3030
    %v3032 = vmul.f32 %v3031, 2.1237322e-06
    %v3033 = vadd.f32 %v3032, 0.00028619796
    %v3034 = vmul.f32 %v3031, %v3033
    %v3035 = vadd.f32 %v3034, 0.0036580483
    %v3036 = vmul.f32 %v3031, %v3035
    %v3037 = vadd.f32 %v3036, 0.05243302
    %v3038 = vmul.f32 %v3031, %v3037
    %v3039 = vadd.f32 %v3038, 0.18741608
    %v3040 = vmul.f32 %v3031, %v3039
    %v3041 = vadd.f32 %v3040, 1.1283791
    %v3042 = vmul.f32 %v2854, %v3041
    %v3043 = vmul.f32 %v3031, 3.8918573e-05
    %v3044 = vadd.f32 %v3043, 0.001143296
    %v3045 = vmul.f32 %v3031, %v3044
    %v3046 = vadd.f32 %v3045, 0.014752088
    %v3047 = vmul.f32 %v3031, %v3046
    %v3048 = vadd.f32 %v3047, 0.112945676
    %v3049 = vmul.f32 %v3031, %v3048
    %v3050 = vadd.f32 %v3049, 0.4994258
    %v3051 = vmul.f32 %v3031, %v3050
    %v3052 = vadd.f32 %v3051, 1.0
    %v3053 = vrcp.pop %v3052
    %v3054 = vmul.f32 %v3052, %v3053
    %v3055 = vsub.f32 1.0, %v3054
    %v3056 = vmul.f32 %v3053, %v3055
    %v3057 = vadd.f32 %v3053, %v3056
    %vm3058 = vweird.f32 %v3052
    %vm3059 = vweird.f32 %v3053
    %vm3060 = vmor %vm3058, %vm3059
    %v3061 = vsel %vm3060, %v3053, %v3057
    %v3062 = vand.u32 2147483647, %v3052
    %vm3063 = vcmp.eq.f32.partialorder %v3062, 8.507059e+37
    %v3064 = vand.u32 %v3052, 2147483648
    %v3065 = vor.u32 1.1754944e-38, %v3064
    %v3066 = vsel %vm3063, %v3065, %v3061
    %v3067 = vmul.f32 %v3042, %v3066
    %v3068 = vmin.f32 %v3067, 1.0
    %v3069 = vmax.f32 %v3068, -1.0
    %v3070 = vmul.f32 %v2855, %v2855
    %v3071 = vmin.f32 16.0, %v3070
    %v3072 = vmul.f32 %v3071, 2.1237322e-06
    %v3073 = vadd.f32 %v3072, 0.00028619796
    %v3074 = vmul.f32 %v3071, %v3073
    %v3075 = vadd.f32 %v3074, 0.0036580483
    %v3076 = vmul.f32 %v3071, %v3075
    %v3077 = vadd.f32 %v3076, 0.05243302
    %v3078 = vmul.f32 %v3071, %v3077
    %v3079 = vadd.f32 %v3078, 0.18741608
    %v3080 = vmul.f32 %v3071, %v3079
    %v3081 = vadd.f32 %v3080, 1.1283791
    %v3082 = vmul.f32 %v2855, %v3081
    %v3083 = vmul.f32 %v3071, 3.8918573e-05
    %v3084 = vadd.f32 %v3083, 0.001143296
    %v3085 = vmul.f32 %v3071, %v3084
    %v3086 = vadd.f32 %v3085, 0.014752088
    %v3087 = vmul.f32 %v3071, %v3086
    %v3088 = vadd.f32 %v3087, 0.112945676
    %v3089 = vmul.f32 %v3071, %v3088
    %v3090 = vadd.f32 %v3089, 0.4994258
    %v3091 = vmul.f32 %v3071, %v3090
    %v3092 = vadd.f32 %v3091, 1.0
    %v3093 = vrcp.pop %v3092
    %v3094 = vmul.f32 %v3092, %v3093
    %v3095 = vsub.f32 1.0, %v3094
    %v3096 = vmul.f32 %v3093, %v3095
    %v3097 = vadd.f32 %v3093, %v3096
    %vm3098 = vweird.f32 %v3092
    %vm3099 = vweird.f32 %v3093
    %vm3100 = vmor %vm3098, %vm3099
    %v3101 = vsel %vm3100, %v3093, %v3097
    %v3102 = vand.u32 2147483647, %v3092
    %vm3103 = vcmp.eq.f32.partialorder %v3102, 8.507059e+37
    %v3104 = vand.u32 %v3092, 2147483648
    %v3105 = vor.u32 1.1754944e-38, %v3104
    %v3106 = vsel %vm3103, %v3105, %v3101
    %v3107 = vmul.f32 %v3082, %v3106
    %v3108 = vmin.f32 %v3107, 1.0
    %v3109 = vmax.f32 %v3108, -1.0
    %v3110 = vmul.f32 %v2856, %v2856
    %v3111 = vmin.f32 16.0, %v3110
    %v3112 = vmul.f32 %v3111, 2.1237322e-06
    %v3113 = vadd.f32 %v3112, 0.00028619796
    %v3114 = vmul.f32 %v3111, %v3113
    %v3115 = vadd.f32 %v3114, 0.0036580483
    %v3116 = vmul.f32 %v3111, %v3115
    %v3117 = vadd.f32 %v3116, 0.05243302
    %v3118 = vmul.f32 %v3111, %v3117
    %v3119 = vadd.f32 %v3118, 0.18741608
    %v3120 = vmul.f32 %v3111, %v3119
    %v3121 = vadd.f32 %v3120, 1.1283791
    %v3122 = vmul.f32 %v2856, %v3121
    %v3123 = vmul.f32 %v3111, 3.8918573e-05
    %v3124 = vadd.f32 %v3123, 0.001143296
    %v3125 = vmul.f32 %v3111, %v3124
    %v3126 = vadd.f32 %v3125, 0.014752088
    %v3127 = vmul.f32 %v3111, %v3126
    %v3128 = vadd.f32 %v3127, 0.112945676
    %v3129 = vmul.f32 %v3111, %v3128
    %v3130 = vadd.f32 %v3129, 0.4994258
    %v3131 = vmul.f32 %v3111, %v3130
    %v3132 = vadd.f32 %v3131, 1.0
    %v3133 = vrcp.pop %v3132
    %v3134 = vmul.f32 %v3132, %v3133
    %v3135 = vsub.f32 1.0, %v3134
    %v3136 = vmul.f32 %v3133, %v3135
    %v3137 = vadd.f32 %v3133, %v3136
    %vm3138 = vweird.f32 %v3132
    %vm3139 = vweird.f32 %v3133
    %vm3140 = vmor %vm3138, %vm3139
    %v3141 = vsel %vm3140, %v3133, %v3137
    %v3142 = vand.u32 2147483647, %v3132
    %vm3143 = vcmp.eq.f32.partialorder %v3142, 8.507059e+37
    %v3144 = vand.u32 %v3132, 2147483648
    %v3145 = vor.u32 1.1754944e-38, %v3144
    %v3146 = vsel %vm3143, %v3145, %v3141
    %v3147 = vmul.f32 %v3122, %v3146
    %v3148 = vmin.f32 %v3147, 1.0
    %v3149 = vmax.f32 %v3148, -1.0
    %v3150 = vmul.f32 %v2857, %v2857
    %v3151 = vmin.f32 16.0, %v3150
    %v3152 = vmul.f32 %v3151, 2.1237322e-06
    %v3153 = vadd.f32 %v3152, 0.00028619796
    %v3154 = vmul.f32 %v3151, %v3153
    %v3155 = vadd.f32 %v3154, 0.0036580483
    %v3156 = vmul.f32 %v3151, %v3155
    %v3157 = vadd.f32 %v3156, 0.05243302
    %v3158 = vmul.f32 %v3151, %v3157
    %v3159 = vadd.f32 %v3158, 0.18741608
    %v3160 = vmul.f32 %v3151, %v3159
    %v3161 = vadd.f32 %v3160, 1.1283791
    %v3162 = vmul.f32 %v2857, %v3161
    %v3163 = vmul.f32 %v3151, 3.8918573e-05
    %v3164 = vadd.f32 %v3163, 0.001143296
    %v3165 = vmul.f32 %v3151, %v3164
    %v3166 = vadd.f32 %v3165, 0.014752088
    %v3167 = vmul.f32 %v3151, %v3166
    %v3168 = vadd.f32 %v3167, 0.112945676
    %v3169 = vmul.f32 %v3151, %v3168
    %v3170 = vadd.f32 %v3169, 0.4994258
    %v3171 = vmul.f32 %v3151, %v3170
    %v3172 = vadd.f32 %v3171, 1.0
    %v3173 = vrcp.pop %v3172
    %v3174 = vmul.f32 %v3172, %v3173
    %v3175 = vsub.f32 1.0, %v3174
    %v3176 = vmul.f32 %v3173, %v3175
    %v3177 = vadd.f32 %v3173, %v3176
    %vm3178 = vweird.f32 %v3172
    %vm3179 = vweird.f32 %v3173
    %vm3180 = vmor %vm3178, %vm3179
    %v3181 = vsel %vm3180, %v3173, %v3177
    %v3182 = vand.u32 2147483647, %v3172
    %vm3183 = vcmp.eq.f32.partialorder %v3182, 8.507059e+37
    %v3184 = vand.u32 %v3172, 2147483648
    %v3185 = vor.u32 1.1754944e-38, %v3184
    %v3186 = vsel %vm3183, %v3185, %v3181
    %v3187 = vmul.f32 %v3162, %v3186
    %v3188 = vmin.f32 %v3187, 1.0
    %v3189 = vmax.f32 %v3188, -1.0
    %v3190 = vmul.f32 %v2858, %v2858
    %v3191 = vmin.f32 16.0, %v3190
    %v3192 = vmul.f32 %v3191, 2.1237322e-06
    %v3193 = vadd.f32 %v3192, 0.00028619796
    %v3194 = vmul.f32 %v3191, %v3193
    %v3195 = vadd.f32 %v3194, 0.0036580483
    %v3196 = vmul.f32 %v3191, %v3195
    %v3197 = vadd.f32 %v3196, 0.05243302
    %v3198 = vmul.f32 %v3191, %v3197
    %v3199 = vadd.f32 %v3198, 0.18741608
    %v3200 = vmul.f32 %v3191, %v3199
    %v3201 = vadd.f32 %v3200, 1.1283791
    %v3202 = vmul.f32 %v2858, %v3201
    %v3203 = vmul.f32 %v3191, 3.8918573e-05
    %v3204 = vadd.f32 %v3203, 0.001143296
    %v3205 = vmul.f32 %v3191, %v3204
    %v3206 = vadd.f32 %v3205, 0.014752088
    %v3207 = vmul.f32 %v3191, %v3206
    %v3208 = vadd.f32 %v3207, 0.112945676
    %v3209 = vmul.f32 %v3191, %v3208
    %v3210 = vadd.f32 %v3209, 0.4994258
    %v3211 = vmul.f32 %v3191, %v3210
    %v3212 = vadd.f32 %v3211, 1.0
    %v3213 = vrcp.pop %v3212
    %v3214 = vmul.f32 %v3212, %v3213
    %v3215 = vsub.f32 1.0, %v3214
    %v3216 = vmul.f32 %v3213, %v3215
    %v3217 = vadd.f32 %v3213, %v3216
    %vm3218 = vweird.f32 %v3212
    %vm3219 = vweird.f32 %v3213
    %vm3220 = vmor %vm3218, %vm3219
    %v3221 = vsel %vm3220, %v3213, %v3217
    %v3222 = vand.u32 2147483647, %v3212
    %vm3223 = vcmp.eq.f32.partialorder %v3222, 8.507059e+37
    %v3224 = vand.u32 %v3212, 2147483648
    %v3225 = vor.u32 1.1754944e-38, %v3224
    %v3226 = vsel %vm3223, %v3225, %v3221
    %v3227 = vmul.f32 %v3202, %v3226
    %v3228 = vmin.f32 %v3227, 1.0
    %v3229 = vmax.f32 %v3228, -1.0
    %v3230 = vmul.f32 %v2859, %v2859
    %v3231 = vmin.f32 16.0, %v3230
    %v3232 = vmul.f32 %v3231, 2.1237322e-06
    %v3233 = vadd.f32 %v3232, 0.00028619796
    %v3234 = vmul.f32 %v3231, %v3233
    %v3235 = vadd.f32 %v3234, 0.0036580483
    %v3236 = vmul.f32 %v3231, %v3235
    %v3237 = vadd.f32 %v3236, 0.05243302
    %v3238 = vmul.f32 %v3231, %v3237
    %v3239 = vadd.f32 %v3238, 0.18741608
    %v3240 = vmul.f32 %v3231, %v3239
    %v3241 = vadd.f32 %v3240, 1.1283791
    %v3242 = vmul.f32 %v2859, %v3241
    %v3243 = vmul.f32 %v3231, 3.8918573e-05
    %v3244 = vadd.f32 %v3243, 0.001143296
    %v3245 = vmul.f32 %v3231, %v3244
    %v3246 = vadd.f32 %v3245, 0.014752088
    %v3247 = vmul.f32 %v3231, %v3246
    %v3248 = vadd.f32 %v3247, 0.112945676
    %v3249 = vmul.f32 %v3231, %v3248
    %v3250 = vadd.f32 %v3249, 0.4994258
    %v3251 = vmul.f32 %v3231, %v3250
    %v3252 = vadd.f32 %v3251, 1.0
    %v3253 = vrcp.pop %v3252
    %v3254 = vmul.f32 %v3252, %v3253
    %v3255 = vsub.f32 1.0, %v3254
    %v3256 = vmul.f32 %v3253, %v3255
    %v3257 = vadd.f32 %v3253, %v3256
    %vm3258 = vweird.f32 %v3252
    %vm3259 = vweird.f32 %v3253
    %vm3260 = vmor %vm3258, %vm3259
    %v3261 = vsel %vm3260, %v3253, %v3257
    %v3262 = vand.u32 2147483647, %v3252
    %vm3263 = vcmp.eq.f32.partialorder %v3262, 8.507059e+37
    %v3264 = vand.u32 %v3252, 2147483648
    %v3265 = vor.u32 1.1754944e-38, %v3264
    %v3266 = vsel %vm3263, %v3265, %v3261
    %v3267 = vmul.f32 %v3242, %v3266
    %v3268 = vmin.f32 %v3267, 1.0
    %v3269 = vmax.f32 %v3268, -1.0
    %v3270 = vmul.f32 %v2860, %v2860
    %v3271 = vmin.f32 16.0, %v3270
    %v3272 = vmul.f32 %v3271, 2.1237322e-06
    %v3273 = vadd.f32 %v3272, 0.00028619796
    %v3274 = vmul.f32 %v3271, %v3273
    %v3275 = vadd.f32 %v3274, 0.0036580483
    %v3276 = vmul.f32 %v3271, %v3275
    %v3277 = vadd.f32 %v3276, 0.05243302
    %v3278 = vmul.f32 %v3271, %v3277
    %v3279 = vadd.f32 %v3278, 0.18741608
    %v3280 = vmul.f32 %v3271, %v3279
    %v3281 = vadd.f32 %v3280, 1.1283791
    %v3282 = vmul.f32 %v2860, %v3281
    %v3283 = vmul.f32 %v3271, 3.8918573e-05
    %v3284 = vadd.f32 %v3283, 0.001143296
    %v3285 = vmul.f32 %v3271, %v3284
    %v3286 = vadd.f32 %v3285, 0.014752088
    %v3287 = vmul.f32 %v3271, %v3286
    %v3288 = vadd.f32 %v3287, 0.112945676
    %v3289 = vmul.f32 %v3271, %v3288
    %v3290 = vadd.f32 %v3289, 0.4994258
    %v3291 = vmul.f32 %v3271, %v3290
    %v3292 = vadd.f32 %v3291, 1.0
    %v3293 = vrcp.pop %v3292
    %v3294 = vmul.f32 %v3292, %v3293
    %v3295 = vsub.f32 1.0, %v3294
    %v3296 = vmul.f32 %v3293, %v3295
    %v3297 = vadd.f32 %v3293, %v3296
    %vm3298 = vweird.f32 %v3292
    %vm3299 = vweird.f32 %v3293
    %vm3300 = vmor %vm3298, %vm3299
    %v3301 = vsel %vm3300, %v3293, %v3297
    %v3302 = vand.u32 2147483647, %v3292
    %vm3303 = vcmp.eq.f32.partialorder %v3302, 8.507059e+37
    %v3304 = vand.u32 %v3292, 2147483648
    %v3305 = vor.u32 1.1754944e-38, %v3304
    %v3306 = vsel %vm3303, %v3305, %v3301
    %v3307 = vmul.f32 %v3282, %v3306
    %v3308 = vmin.f32 %v3307, 1.0
    %v3309 = vmax.f32 %v3308, -1.0
    %v3310 = vmul.f32 %v2861, %v2861
    %v3311 = vmin.f32 16.0, %v3310
    %v3312 = vmul.f32 %v3311, 2.1237322e-06
    %v3313 = vadd.f32 %v3312, 0.00028619796
    %v3314 = vmul.f32 %v3311, %v3313
    %v3315 = vadd.f32 %v3314, 0.0036580483
    %v3316 = vmul.f32 %v3311, %v3315
    %v3317 = vadd.f32 %v3316, 0.05243302
    %v3318 = vmul.f32 %v3311, %v3317
    %v3319 = vadd.f32 %v3318, 0.18741608
    %v3320 = vmul.f32 %v3311, %v3319
    %v3321 = vadd.f32 %v3320, 1.1283791
    %v3322 = vmul.f32 %v2861, %v3321
    %v3323 = vmul.f32 %v3311, 3.8918573e-05
    %v3324 = vadd.f32 %v3323, 0.001143296
    %v3325 = vmul.f32 %v3311, %v3324
    %v3326 = vadd.f32 %v3325, 0.014752088
    %v3327 = vmul.f32 %v3311, %v3326
    %v3328 = vadd.f32 %v3327, 0.112945676
    %v3329 = vmul.f32 %v3311, %v3328
    %v3330 = vadd.f32 %v3329, 0.4994258
    %v3331 = vmul.f32 %v3311, %v3330
    %v3332 = vadd.f32 %v3331, 1.0
    %v3333 = vrcp.pop %v3332
    %v3334 = vmul.f32 %v3332, %v3333
    %v3335 = vsub.f32 1.0, %v3334
    %v3336 = vmul.f32 %v3333, %v3335
    %v3337 = vadd.f32 %v3333, %v3336
    %vm3338 = vweird.f32 %v3332
    %vm3339 = vweird.f32 %v3333
    %vm3340 = vmor %vm3338, %vm3339
    %v3341 = vsel %vm3340, %v3333, %v3337
    %v3342 = vand.u32 2147483647, %v3332
    %vm3343 = vcmp.eq.f32.partialorder %v3342, 8.507059e+37
    %v3344 = vand.u32 %v3332, 2147483648
    %v3345 = vor.u32 1.1754944e-38, %v3344
    %v3346 = vsel %vm3343, %v3345, %v3341
    %v3347 = vmul.f32 %v3322, %v3346
    %v3348 = vmin.f32 %v3347, 1.0
    %v3349 = vmax.f32 %v3348, -1.0
    %v3350 = vmul.f32 %v2862, %v2862
    %v3351 = vmin.f32 16.0, %v3350
    %v3352 = vmul.f32 %v3351, 2.1237322e-06
    %v3353 = vadd.f32 %v3352, 0.00028619796
    %v3354 = vmul.f32 %v3351, %v3353
    %v3355 = vadd.f32 %v3354, 0.0036580483
    %v3356 = vmul.f32 %v3351, %v3355
    %v3357 = vadd.f32 %v3356, 0.05243302
    %v3358 = vmul.f32 %v3351, %v3357
    %v3359 = vadd.f32 %v3358, 0.18741608
    %v3360 = vmul.f32 %v3351, %v3359
    %v3361 = vadd.f32 %v3360, 1.1283791
    %v3362 = vmul.f32 %v2862, %v3361
    %v3363 = vmul.f32 %v3351, 3.8918573e-05
    %v3364 = vadd.f32 %v3363, 0.001143296
    %v3365 = vmul.f32 %v3351, %v3364
    %v3366 = vadd.f32 %v3365, 0.014752088
    %v3367 = vmul.f32 %v3351, %v3366
    %v3368 = vadd.f32 %v3367, 0.112945676
    %v3369 = vmul.f32 %v3351, %v3368
    %v3370 = vadd.f32 %v3369, 0.4994258
    %v3371 = vmul.f32 %v3351, %v3370
    %v3372 = vadd.f32 %v3371, 1.0
    %v3373 = vrcp.pop %v3372
    %v3374 = vmul.f32 %v3372, %v3373
    %v3375 = vsub.f32 1.0, %v3374
    %v3376 = vmul.f32 %v3373, %v3375
    %v3377 = vadd.f32 %v3373, %v3376
    %vm3378 = vweird.f32 %v3372
    %vm3379 = vweird.f32 %v3373
    %vm3380 = vmor %vm3378, %vm3379
    %v3381 = vsel %vm3380, %v3373, %v3377
    %v3382 = vand.u32 2147483647, %v3372
    %vm3383 = vcmp.eq.f32.partialorder %v3382, 8.507059e+37
    %v3384 = vand.u32 %v3372, 2147483648
    %v3385 = vor.u32 1.1754944e-38, %v3384
    %v3386 = vsel %vm3383, %v3385, %v3381
    %v3387 = vmul.f32 %v3362, %v3386
    %v3388 = vmin.f32 %v3387, 1.0
    %v3389 = vmax.f32 %v3388, -1.0
    %v3390 = vmul.f32 %v2863, %v2863
    %v3391 = vmin.f32 16.0, %v3390
    %v3392 = vmul.f32 %v3391, 2.1237322e-06
    %v3393 = vadd.f32 %v3392, 0.00028619796
    %v3394 = vmul.f32 %v3391, %v3393
    %v3395 = vadd.f32 %v3394, 0.0036580483
    %v3396 = vmul.f32 %v3391, %v3395
    %v3397 = vadd.f32 %v3396, 0.05243302
    %v3398 = vmul.f32 %v3391, %v3397
    %v3399 = vadd.f32 %v3398, 0.18741608
    %v3400 = vmul.f32 %v3391, %v3399
    %v3401 = vadd.f32 %v3400, 1.1283791
    %v3402 = vmul.f32 %v2863, %v3401
    %v3403 = vmul.f32 %v3391, 3.8918573e-05
    %v3404 = vadd.f32 %v3403, 0.001143296
    %v3405 = vmul.f32 %v3391, %v3404
    %v3406 = vadd.f32 %v3405, 0.014752088
    %v3407 = vmul.f32 %v3391, %v3406
    %v3408 = vadd.f32 %v3407, 0.112945676
    %v3409 = vmul.f32 %v3391, %v3408
    %v3410 = vadd.f32 %v3409, 0.4994258
    %v3411 = vmul.f32 %v3391, %v3410
    %v3412 = vadd.f32 %v3411, 1.0
    %v3413 = vrcp.pop %v3412
    %v3414 = vmul.f32 %v3412, %v3413
    %v3415 = vsub.f32 1.0, %v3414
    %v3416 = vmul.f32 %v3413, %v3415
    %v3417 = vadd.f32 %v3413, %v3416
    %vm3418 = vweird.f32 %v3412
    %vm3419 = vweird.f32 %v3413
    %vm3420 = vmor %vm3418, %vm3419
    %v3421 = vsel %vm3420, %v3413, %v3417
    %v3422 = vand.u32 2147483647, %v3412
    %vm3423 = vcmp.eq.f32.partialorder %v3422, 8.507059e+37
    %v3424 = vand.u32 %v3412, 2147483648
    %v3425 = vor.u32 1.1754944e-38, %v3424
    %v3426 = vsel %vm3423, %v3425, %v3421
    %v3427 = vmul.f32 %v3402, %v3426
    %v3428 = vmin.f32 %v3427, 1.0
    %v3429 = vmax.f32 %v3428, -1.0
    %v3430 = vmul.f32 %v2864, %v2864
    %v3431 = vmin.f32 16.0, %v3430
    %v3432 = vmul.f32 %v3431, 2.1237322e-06
    %v3433 = vadd.f32 %v3432, 0.00028619796
    %v3434 = vmul.f32 %v3431, %v3433
    %v3435 = vadd.f32 %v3434, 0.0036580483
    %v3436 = vmul.f32 %v3431, %v3435
    %v3437 = vadd.f32 %v3436, 0.05243302
    %v3438 = vmul.f32 %v3431, %v3437
    %v3439 = vadd.f32 %v3438, 0.18741608
    %v3440 = vmul.f32 %v3431, %v3439
    %v3441 = vadd.f32 %v3440, 1.1283791
    %v3442 = vmul.f32 %v2864, %v3441
    %v3443 = vmul.f32 %v3431, 3.8918573e-05
    %v3444 = vadd.f32 %v3443, 0.001143296
    %v3445 = vmul.f32 %v3431, %v3444
    %v3446 = vadd.f32 %v3445, 0.014752088
    %v3447 = vmul.f32 %v3431, %v3446
    %v3448 = vadd.f32 %v3447, 0.112945676
    %v3449 = vmul.f32 %v3431, %v3448
    %v3450 = vadd.f32 %v3449, 0.4994258
    %v3451 = vmul.f32 %v3431, %v3450
    %v3452 = vadd.f32 %v3451, 1.0
    %v3453 = vrcp.pop %v3452
    %v3454 = vmul.f32 %v3452, %v3453
    %v3455 = vsub.f32 1.0, %v3454
    %v3456 = vmul.f32 %v3453, %v3455
    %v3457 = vadd.f32 %v3453, %v3456
    %vm3458 = vweird.f32 %v3452
    %vm3459 = vweird.f32 %v3453
    %vm3460 = vmor %vm3458, %vm3459
    %v3461 = vsel %vm3460, %v3453, %v3457
    %v3462 = vand.u32 2147483647, %v3452
    %vm3463 = vcmp.eq.f32.partialorder %v3462, 8.507059e+37
    %v3464 = vand.u32 %v3452, 2147483648
    %v3465 = vor.u32 1.1754944e-38, %v3464
    %v3466 = vsel %vm3463, %v3465, %v3461
    %v3467 = vmul.f32 %v3442, %v3466
    %v3468 = vmin.f32 %v3467, 1.0
    %v3469 = vmax.f32 %v3468, -1.0
    %v3470 = vmul.f32 %v2865, %v2865
    %v3471 = vmin.f32 16.0, %v3470
    %v3472 = vmul.f32 %v3471, 2.1237322e-06
    %v3473 = vadd.f32 %v3472, 0.00028619796
    %v3474 = vmul.f32 %v3471, %v3473
    %v3475 = vadd.f32 %v3474, 0.0036580483
    %v3476 = vmul.f32 %v3471, %v3475
    %v3477 = vadd.f32 %v3476, 0.05243302
    %v3478 = vmul.f32 %v3471, %v3477
    %v3479 = vadd.f32 %v3478, 0.18741608
    %v3480 = vmul.f32 %v3471, %v3479
    %v3481 = vadd.f32 %v3480, 1.1283791
    %v3482 = vmul.f32 %v2865, %v3481
    %v3483 = vmul.f32 %v3471, 3.8918573e-05
    %v3484 = vadd.f32 %v3483, 0.001143296
    %v3485 = vmul.f32 %v3471, %v3484
    %v3486 = vadd.f32 %v3485, 0.014752088
    %v3487 = vmul.f32 %v3471, %v3486
    %v3488 = vadd.f32 %v3487, 0.112945676
    %v3489 = vmul.f32 %v3471, %v3488
    %v3490 = vadd.f32 %v3489, 0.4994258
    %v3491 = vmul.f32 %v3471, %v3490
    %v3492 = vadd.f32 %v3491, 1.0
    %v3493 = vrcp.pop %v3492
    %v3494 = vmul.f32 %v3492, %v3493
    %v3495 = vsub.f32 1.0, %v3494
    %v3496 = vmul.f32 %v3493, %v3495
    %v3497 = vadd.f32 %v3493, %v3496
    %vm3498 = vweird.f32 %v3492
    %vm3499 = vweird.f32 %v3493
    %vm3500 = vmor %vm3498, %vm3499
    %v3501 = vsel %vm3500, %v3493, %v3497
    %v3502 = vand.u32 2147483647, %v3492
    %vm3503 = vcmp.eq.f32.partialorder %v3502, 8.507059e+37
    %v3504 = vand.u32 %v3492, 2147483648
    %v3505 = vor.u32 1.1754944e-38, %v3504
    %v3506 = vsel %vm3503, %v3505, %v3501
    %v3507 = vmul.f32 %v3482, %v3506
    %v3508 = vmin.f32 %v3507, 1.0
    %v3509 = vmax.f32 %v3508, -1.0
    %v3510 = vmul.f32 %v2866, %v2866
    %v3511 = vmin.f32 16.0, %v3510
    %v3512 = vmul.f32 %v3511, 2.1237322e-06
    %v3513 = vadd.f32 %v3512, 0.00028619796
    %v3514 = vmul.f32 %v3511, %v3513
    %v3515 = vadd.f32 %v3514, 0.0036580483
    %v3516 = vmul.f32 %v3511, %v3515
    %v3517 = vadd.f32 %v3516, 0.05243302
    %v3518 = vmul.f32 %v3511, %v3517
    %v3519 = vadd.f32 %v3518, 0.18741608
    %v3520 = vmul.f32 %v3511, %v3519
    %v3521 = vadd.f32 %v3520, 1.1283791
    %v3522 = vmul.f32 %v2866, %v3521
    %v3523 = vmul.f32 %v3511, 3.8918573e-05
    %v3524 = vadd.f32 %v3523, 0.001143296
    %v3525 = vmul.f32 %v3511, %v3524
    %v3526 = vadd.f32 %v3525, 0.014752088
    %v3527 = vmul.f32 %v3511, %v3526
    %v3528 = vadd.f32 %v3527, 0.112945676
    %v3529 = vmul.f32 %v3511, %v3528
    %v3530 = vadd.f32 %v3529, 0.4994258
    %v3531 = vmul.f32 %v3511, %v3530
    %v3532 = vadd.f32 %v3531, 1.0
    %v3533 = vrcp.pop %v3532
    %v3534 = vmul.f32 %v3532, %v3533
    %v3535 = vsub.f32 1.0, %v3534
    %v3536 = vmul.f32 %v3533, %v3535
    %v3537 = vadd.f32 %v3533, %v3536
    %vm3538 = vweird.f32 %v3532
    %vm3539 = vweird.f32 %v3533
    %vm3540 = vmor %vm3538, %vm3539
    %v3541 = vsel %vm3540, %v3533, %v3537
    %v3542 = vand.u32 2147483647, %v3532
    %vm3543 = vcmp.eq.f32.partialorder %v3542, 8.507059e+37
    %v3544 = vand.u32 %v3532, 2147483648
    %v3545 = vor.u32 1.1754944e-38, %v3544
    %v3546 = vsel %vm3543, %v3545, %v3541
    %v3547 = vmul.f32 %v3522, %v3546
    %v3548 = vmin.f32 %v3547, 1.0
    %v3549 = vmax.f32 %v3548, -1.0
    %v3550 = vmul.f32 %v2867, %v2867
    %v3551 = vmin.f32 16.0, %v3550
    %v3552 = vmul.f32 %v3551, 2.1237322e-06
    %v3553 = vadd.f32 %v3552, 0.00028619796
    %v3554 = vmul.f32 %v3551, %v3553
    %v3555 = vadd.f32 %v3554, 0.0036580483
    %v3556 = vmul.f32 %v3551, %v3555
    %v3557 = vadd.f32 %v3556, 0.05243302
    %v3558 = vmul.f32 %v3551, %v3557
    %v3559 = vadd.f32 %v3558, 0.18741608
    %v3560 = vmul.f32 %v3551, %v3559
    %v3561 = vadd.f32 %v3560, 1.1283791
    %v3562 = vmul.f32 %v2867, %v3561
    %v3563 = vmul.f32 %v3551, 3.8918573e-05
    %v3564 = vadd.f32 %v3563, 0.001143296
    %v3565 = vmul.f32 %v3551, %v3564
    %v3566 = vadd.f32 %v3565, 0.014752088
    %v3567 = vmul.f32 %v3551, %v3566
    %v3568 = vadd.f32 %v3567, 0.112945676
    %v3569 = vmul.f32 %v3551, %v3568
    %v3570 = vadd.f32 %v3569, 0.4994258
    %v3571 = vmul.f32 %v3551, %v3570
    %v3572 = vadd.f32 %v3571, 1.0
    %v3573 = vrcp.pop %v3572
    %v3574 = vmul.f32 %v3572, %v3573
    %v3575 = vsub.f32 1.0, %v3574
    %v3576 = vmul.f32 %v3573, %v3575
    %v3577 = vadd.f32 %v3573, %v3576
    %vm3578 = vweird.f32 %v3572
    %vm3579 = vweird.f32 %v3573
    %vm3580 = vmor %vm3578, %vm3579
    %v3581 = vsel %vm3580, %v3573, %v3577
    %v3582 = vand.u32 2147483647, %v3572
    %vm3583 = vcmp.eq.f32.partialorder %v3582, 8.507059e+37
    %v3584 = vand.u32 %v3572, 2147483648
    %v3585 = vor.u32 1.1754944e-38, %v3584
    %v3586 = vsel %vm3583, %v3585, %v3581
    %v3587 = vmul.f32 %v3562, %v3586
    %v3588 = vmin.f32 %v3587, 1.0
    %v3589 = vmax.f32 %v3588, -1.0
    %v3590 = vmul.f32 %v2868, %v2868
    %v3591 = vmin.f32 16.0, %v3590
    %v3592 = vmul.f32 %v3591, 2.1237322e-06
    %v3593 = vadd.f32 %v3592, 0.00028619796
    %v3594 = vmul.f32 %v3591, %v3593
    %v3595 = vadd.f32 %v3594, 0.0036580483
    %v3596 = vmul.f32 %v3591, %v3595
    %v3597 = vadd.f32 %v3596, 0.05243302
    %v3598 = vmul.f32 %v3591, %v3597
    %v3599 = vadd.f32 %v3598, 0.18741608
    %v3600 = vmul.f32 %v3591, %v3599
    %v3601 = vadd.f32 %v3600, 1.1283791
    %v3602 = vmul.f32 %v2868, %v3601
    %v3603 = vmul.f32 %v3591, 3.8918573e-05
    %v3604 = vadd.f32 %v3603, 0.001143296
    %v3605 = vmul.f32 %v3591, %v3604
    %v3606 = vadd.f32 %v3605, 0.014752088
    %v3607 = vmul.f32 %v3591, %v3606
    %v3608 = vadd.f32 %v3607, 0.112945676
    %v3609 = vmul.f32 %v3591, %v3608
    %v3610 = vadd.f32 %v3609, 0.4994258
    %v3611 = vmul.f32 %v3591, %v3610
    %v3612 = vadd.f32 %v3611, 1.0
    %v3613 = vrcp.pop %v3612
    %v3614 = vmul.f32 %v3612, %v3613
    %v3615 = vsub.f32 1.0, %v3614
    %v3616 = vmul.f32 %v3613, %v3615
    %v3617 = vadd.f32 %v3613, %v3616
    %vm3618 = vweird.f32 %v3612
    %vm3619 = vweird.f32 %v3613
    %vm3620 = vmor %vm3618, %vm3619
    %v3621 = vsel %vm3620, %v3613, %v3617
    %v3622 = vand.u32 2147483647, %v3612
    %vm3623 = vcmp.eq.f32.partialorder %v3622, 8.507059e+37
    %v3624 = vand.u32 %v3612, 2147483648
    %v3625 = vor.u32 1.1754944e-38, %v3624
    %v3626 = vsel %vm3623, %v3625, %v3621
    %v3627 = vmul.f32 %v3602, %v3626
    %v3628 = vmin.f32 %v3627, 1.0
    %v3629 = vmax.f32 %v3628, -1.0
    %v3630 = vmul.f32 %v2869, %v2869
    %v3631 = vmin.f32 16.0, %v3630
    %v3632 = vmul.f32 %v3631, 2.1237322e-06
    %v3633 = vadd.f32 %v3632, 0.00028619796
    %v3634 = vmul.f32 %v3631, %v3633
    %v3635 = vadd.f32 %v3634, 0.0036580483
    %v3636 = vmul.f32 %v3631, %v3635
    %v3637 = vadd.f32 %v3636, 0.05243302
    %v3638 = vmul.f32 %v3631, %v3637
    %v3639 = vadd.f32 %v3638, 0.18741608
    %v3640 = vmul.f32 %v3631, %v3639
    %v3641 = vadd.f32 %v3640, 1.1283791
    %v3642 = vmul.f32 %v2869, %v3641
    %v3643 = vmul.f32 %v3631, 3.8918573e-05
    %v3644 = vadd.f32 %v3643, 0.001143296
    %v3645 = vmul.f32 %v3631, %v3644
    %v3646 = vadd.f32 %v3645, 0.014752088
    %v3647 = vmul.f32 %v3631, %v3646
    %v3648 = vadd.f32 %v3647, 0.112945676
    %v3649 = vmul.f32 %v3631, %v3648
    %v3650 = vadd.f32 %v3649, 0.4994258
    %v3651 = vmul.f32 %v3631, %v3650
    %v3652 = vadd.f32 %v3651, 1.0
    %v3653 = vrcp.pop %v3652
    %v3654 = vmul.f32 %v3652, %v3653
    %v3655 = vsub.f32 1.0, %v3654
    %v3656 = vmul.f32 %v3653, %v3655
    %v3657 = vadd.f32 %v3653, %v3656
    %vm3658 = vweird.f32 %v3652
    %vm3659 = vweird.f32 %v3653
    %vm3660 = vmor %vm3658, %vm3659
    %v3661 = vsel %vm3660, %v3653, %v3657
    %v3662 = vand.u32 2147483647, %v3652
    %vm3663 = vcmp.eq.f32.partialorder %v3662, 8.507059e+37
    %v3664 = vand.u32 %v3652, 2147483648
    %v3665 = vor.u32 1.1754944e-38, %v3664
    %v3666 = vsel %vm3663, %v3665, %v3661
    %v3667 = vmul.f32 %v3642, %v3666
    %v3668 = vmin.f32 %v3667, 1.0
    %v3669 = vmax.f32 %v3668, -1.0
    %v3670 = vadd.f32 %v2909, 1.0
    %v3671 = vadd.f32 %v2949, 1.0
    %v3672 = vadd.f32 %v2989, 1.0
    %v3673 = vadd.f32 %v3029, 1.0
    %v3674 = vadd.f32 %v3069, 1.0
    %v3675 = vadd.f32 %v3109, 1.0
    %v3676 = vadd.f32 %v3149, 1.0
    %v3677 = vadd.f32 %v3189, 1.0
    %v3678 = vadd.f32 %v3229, 1.0
    %v3679 = vadd.f32 %v3269, 1.0
    %v3680 = vadd.f32 %v3309, 1.0
    %v3681 = vadd.f32 %v3349, 1.0
    %v3682 = vadd.f32 %v3389, 1.0
    %v3683 = vadd.f32 %v3429, 1.0
    %v3684 = vadd.f32 %v3469, 1.0
    %v3685 = vadd.f32 %v3509, 1.0
    %v3686 = vadd.f32 %v3549, 1.0
    %v3687 = vadd.f32 %v3589, 1.0
    %v3688 = vadd.f32 %v3629, 1.0
    %v3689 = vadd.f32 %v3669, 1.0
    %v3690 = vmul.f32 %v2830, %v3670
    %v3691 = vmul.f32 %v2831, %v3671
    %v3692 = vmul.f32 %v2832, %v3672
    %v3693 = vmul.f32 %v2833, %v3673
    %v3694 = vmul.f32 %v2834, %v3674
    %v3695 = vmul.f32 %v2835, %v3675
    %v3696 = vmul.f32 %v2836, %v3676
    %v3697 = vmul.f32 %v2837, %v3677
    %v3698 = vmul.f32 %v2838, %v3678
    %v3699 = vmul.f32 %v2839, %v3679
    %v3700 = vmul.f32 %v2840, %v3680
    %v3701 = vmul.f32 %v2841, %v3681
    %v3702 = vmul.f32 %v2842, %v3682
    %v3703 = vmul.f32 %v2843, %v3683
    %v3704 = vmul.f32 %v2844, %v3684
    %v3705 = vmul.f32 %v2845, %v3685
    %v3706 = vmul.f32 %v2846, %v3686
    %v3707 = vmul.f32 %v2847, %v3687
    %v3708 = vmul.f32 %v2848, %v3688
    %v3709 = vmul.f32 %v2849, %v3689
    %v3710 = vpack.c.bf16 %v3700, %v3690
    %v3711 = vpack.c.bf16 %v3701, %v3691
    %v3712 = vpack.c.bf16 %v3702, %v3692
    %v3713 = vpack.c.bf16 %v3703, %v3693
    %v3714 = vpack.c.bf16 %v3704, %v3694
    %v3715 = vpack.c.bf16 %v3705, %v3695
    %v3716 = vpack.c.bf16 %v3706, %v3696
    %v3717 = vpack.c.bf16 %v3707, %v3697
    %v3718 = vpack.c.bf16 %v3708, %v3698
    %v3719 = vpack.c.bf16 %v3709, %v3699
    %v3720 = vld [vmem:[%s12] sm:$0xff]
    %v3721 = vld [vmem:[%s12 + $0x8] sm:$0xf]
    %v3722 = vld [vmem:[%s12 + $0xc] sm:$0xff]
    %v3723 = vld [vmem:[%s12 + $0x14] sm:$0xf]
    %v3724 = vld [vmem:[%s12 + $0x18] sm:$0xff]
    %v3725 = vld [vmem:[%s12 + $0x20] sm:$0xf]
    %v3726 = vld [vmem:[%s12 + $0x24] sm:$0xff]
    %v3727 = vld [vmem:[%s12 + $0x2c] sm:$0xf]
    %v3728 = vld [vmem:[%s12 + $0x30] sm:$0xff]
    %v3729 = vld [vmem:[%s12 + $0x38] sm:$0xf]
    %v3730 = vld [vmem:[%s12 + $0x3c] sm:$0xff]
    %v3731 = vld [vmem:[%s12 + $0x44] sm:$0xf]
    %v3732 = vld [vmem:[%s12 + $0x48] sm:$0xff]
    %v3733 = vld [vmem:[%s12 + $0x50] sm:$0xf]
    %v3734 = vld [vmem:[%s12 + $0x54] sm:$0xff]
    %v3735 = vld [vmem:[%s12 + $0x5c] sm:$0xf]
    %v3736 = vld [vmem:[%s12 + $0x60] sm:$0xff]
    %v3737 = vld [vmem:[%s12 + $0x68] sm:$0xf]
    %v3738 = vld [vmem:[%s12 + $0x6c] sm:$0xff]
    %v3739 = vld [vmem:[%s12 + $0x74] sm:$0xf]
    %v3740 = vld [vmem:[%s12 + $0x78] sm:$0xff]
    %v3741 = vld [vmem:[%s12 + $0x80] sm:$0xf]
    %v3742 = vld [vmem:[%s12 + $0x84] sm:$0xff]
    %v3743 = vld [vmem:[%s12 + $0x8c] sm:$0xf]
    %v3744 = vld [vmem:[%s12 + $0x90] sm:$0xff]
    %v3745 = vld [vmem:[%s12 + $0x98] sm:$0xf]
    %v3746 = vld [vmem:[%s12 + $0x9c] sm:$0xff]
    %v3747 = vld [vmem:[%s12 + $0xa4] sm:$0xf]
    %v3748 = vld [vmem:[%s12 + $0xa8] sm:$0xff]
    %v3749 = vld [vmem:[%s12 + $0xb0] sm:$0xf]
    %v3750 = vld [vmem:[%s12 + $0xb4] sm:$0xff]
    %v3751 = vld [vmem:[%s12 + $0xbc] sm:$0xf]
    %v3752 = vld [vmem:[%s12 + $0xc0] sm:$0xff]
    %v3753 = vld [vmem:[%s12 + $0xc8] sm:$0xf]
    %v3754 = vld [vmem:[%s12 + $0xcc] sm:$0xff]
    %v3755 = vld [vmem:[%s12 + $0xd4] sm:$0xf]
    %v3756 = vld [vmem:[%s12 + $0xd8] sm:$0xff]
    %v3757 = vld [vmem:[%s12 + $0xe0] sm:$0xf]
    %v3758 = vld [vmem:[%s12 + $0xe4] sm:$0xff]
    %v3759 = vld [vmem:[%s12 + $0xec] sm:$0xf]
    %v3760 = vld [vmem:[%s12 + $0xf0] sm:$0xff]
    %v3761 = vld [vmem:[%s12 + $0xf8] sm:$0xf]
    %v3762 = vld [vmem:[%s12 + $0xfc] sm:$0xff]
    %v3763 = vld [vmem:[%s12 + $0x104] sm:$0xf]
    %v3764 = vld [vmem:[%s12 + $0x108] sm:$0xff]
    %v3765 = vld [vmem:[%s12 + $0x110] sm:$0xf]
    %v3766 = vld [vmem:[%s12 + $0x114] sm:$0xff]
    %v3767 = vld [vmem:[%s12 + $0x11c] sm:$0xf]
    %v3768 = vld [vmem:[%s12 + $0x120] sm:$0xff]
    %v3769 = vld [vmem:[%s12 + $0x128] sm:$0xf]
    %v3770 = vld [vmem:[%s12 + $0x12c] sm:$0xff]
    %v3771 = vld [vmem:[%s12 + $0x134] sm:$0xf]
    %v3772 = vld [vmem:[%s12 + $0x138] sm:$0xff]
    %v3773 = vld [vmem:[%s12 + $0x140] sm:$0xf]
    %v3774 = vld [vmem:[%s12 + $0x144] sm:$0xff]
    %v3775 = vld [vmem:[%s12 + $0x14c] sm:$0xf]
    %v3776 = vld [vmem:[%s12 + $0x150] sm:$0xff]
    %v3777 = vld [vmem:[%s12 + $0x158] sm:$0xf]
    %v3778 = vld [vmem:[%s12 + $0x15c] sm:$0xff]
    %v3779 = vld [vmem:[%s12 + $0x164] sm:$0xf]
    %v3780 = vld [vmem:[%s12 + $0x168] sm:$0xff]
    %v3781 = vld [vmem:[%s12 + $0x170] sm:$0xf]
    %v3782 = vld [vmem:[%s12 + $0x174] sm:$0xff]
    %v3783 = vld [vmem:[%s12 + $0x17c] sm:$0xf]
    %v3784 = vld [vmem:[%s12 + $0x180] sm:$0xff]
    %v3785 = vld [vmem:[%s12 + $0x188] sm:$0xf]
    %v3786 = vld [vmem:[%s12 + $0x18c] sm:$0xff]
    %v3787 = vld [vmem:[%s12 + $0x194] sm:$0xf]
    %v3788 = vld [vmem:[%s12 + $0x198] sm:$0xff]
    %v3789 = vld [vmem:[%s12 + $0x1a0] sm:$0xf]
    %v3790 = vld [vmem:[%s12 + $0x1a4] sm:$0xff]
    %v3791 = vld [vmem:[%s12 + $0x1ac] sm:$0xf]
    %v3792 = vld [vmem:[%s12 + $0x1b0] sm:$0xff]
    %v3793 = vld [vmem:[%s12 + $0x1b8] sm:$0xf]
    %v3794 = vld [vmem:[%s12 + $0x1bc] sm:$0xff]
    %v3795 = vld [vmem:[%s12 + $0x1c4] sm:$0xf]
    %v3796 = vld [vmem:[%s12 + $0x1c8] sm:$0xff]
    %v3797 = vld [vmem:[%s12 + $0x1d0] sm:$0xf]
    %v3798 = vld [vmem:[%s12 + $0x1d4] sm:$0xff]
    %v3799 = vld [vmem:[%s12 + $0x1dc] sm:$0xf]
    %v3800 = vld [vmem:[%s12 + $0x1e0] sm:$0xff]
    %v3801 = vld [vmem:[%s12 + $0x1e8] sm:$0xf]
    %v3802 = vld [vmem:[%s12 + $0x1ec] sm:$0xff]
    %v3803 = vld [vmem:[%s12 + $0x1f4] sm:$0xf]
    %v3804 = vld [vmem:[%s12 + $0x1f8] sm:$0xff]
    %v3805 = vld [vmem:[%s12 + $0x200] sm:$0xf]
    %v3806 = vld [vmem:[%s12 + $0x204] sm:$0xff]
    %v3807 = vld [vmem:[%s12 + $0x20c] sm:$0xf]
    %v3808 = vld [vmem:[%s12 + $0x210] sm:$0xff]
    %v3809 = vld [vmem:[%s12 + $0x218] sm:$0xf]
    %v3810 = vld [vmem:[%s12 + $0x21c] sm:$0xff]
    %v3811 = vld [vmem:[%s12 + $0x224] sm:$0xf]
    %v3812 = vld [vmem:[%s12 + $0x228] sm:$0xff]
    %v3813 = vld [vmem:[%s12 + $0x230] sm:$0xf]
    %v3814 = vld [vmem:[%s12 + $0x234] sm:$0xff]
    %v3815 = vld [vmem:[%s12 + $0x23c] sm:$0xf]
    %v3816 = vld [vmem:[%s12 + $0x240] sm:$0xff]
    %v3817 = vld [vmem:[%s12 + $0x248] sm:$0xf]
    %v3818 = vld [vmem:[%s12 + $0x24c] sm:$0xff]
    %v3819 = vld [vmem:[%s12 + $0x254] sm:$0xf]
    %v3820 = vld [vmem:[%s12 + $0x258] sm:$0xff]
    %v3821 = vld [vmem:[%s12 + $0x260] sm:$0xf]
    %v3822 = vld [vmem:[%s12 + $0x264] sm:$0xff]
    %v3823 = vld [vmem:[%s12 + $0x26c] sm:$0xf]
    %v3824 = vld [vmem:[%s12 + $0x270] sm:$0xff]
    %v3825 = vld [vmem:[%s12 + $0x278] sm:$0xf]
    %v3826 = vld [vmem:[%s12 + $0x27c] sm:$0xff]
    %v3827 = vld [vmem:[%s12 + $0x284] sm:$0xf]
    %v3828 = vld [vmem:[%s12 + $0x288] sm:$0xff]
    %v3829 = vld [vmem:[%s12 + $0x290] sm:$0xf]
    %v3830 = vld [vmem:[%s12 + $0x294] sm:$0xff]
    %v3831 = vld [vmem:[%s12 + $0x29c] sm:$0xf]
    %v3832 = vld [vmem:[%s12 + $0x2a0] sm:$0xff]
    %v3833 = vld [vmem:[%s12 + $0x2a8] sm:$0xf]
    %v3834 = vld [vmem:[%s12 + $0x2ac] sm:$0xff]
    %v3835 = vld [vmem:[%s12 + $0x2b4] sm:$0xf]
    %v3836 = vld [vmem:[%s12 + $0x2b8] sm:$0xff]
    %v3837 = vld [vmem:[%s12 + $0x2c0] sm:$0xf]
    %v3838 = vld [vmem:[%s12 + $0x2c4] sm:$0xff]
    %v3839 = vld [vmem:[%s12 + $0x2cc] sm:$0xf]
    %v3840 = vld [vmem:[%s12 + $0x2d0] sm:$0xff]
    %v3841 = vld [vmem:[%s12 + $0x2d8] sm:$0xf]
    %v3842 = vld [vmem:[%s12 + $0x2dc] sm:$0xff]
    %v3843 = vld [vmem:[%s12 + $0x2e4] sm:$0xf]
    %v3844 = vld [vmem:[%s12 + $0x2e8] sm:$0xff]
    %v3845 = vld [vmem:[%s12 + $0x2f0] sm:$0xf]
    %v3846 = vld [vmem:[%s12 + $0x2f4] sm:$0xff]
    %v3847 = vld [vmem:[%s12 + $0x2fc] sm:$0xf]
    %v3848 = vld [vmem:[%s12 + $0x300] sm:$0xff]
    %v3849 = vld [vmem:[%s12 + $0x308] sm:$0xf]
    %v3850 = vld [vmem:[%s12 + $0x30c] sm:$0xff]
    %v3851 = vld [vmem:[%s12 + $0x314] sm:$0xf]
    %v3852 = vld [vmem:[%s12 + $0x318] sm:$0xff]
    %v3853 = vld [vmem:[%s12 + $0x320] sm:$0xf]
    %v3854 = vld [vmem:[%s12 + $0x324] sm:$0xff]
    %v3855 = vld [vmem:[%s12 + $0x32c] sm:$0xf]
    %v3856 = vld [vmem:[%s12 + $0x330] sm:$0xff]
    %v3857 = vld [vmem:[%s12 + $0x338] sm:$0xf]
    %v3858 = vld [vmem:[%s12 + $0x33c] sm:$0xff]
    %v3859 = vld [vmem:[%s12 + $0x344] sm:$0xf]
    %v3860 = vld [vmem:[%s12 + $0x348] sm:$0xff]
    %v3861 = vld [vmem:[%s12 + $0x350] sm:$0xf]
    %v3862 = vld [vmem:[%s12 + $0x354] sm:$0xff]
    %v3863 = vld [vmem:[%s12 + $0x35c] sm:$0xf]
    %v3864 = vld [vmem:[%s12 + $0x360] sm:$0xff]
    %v3865 = vld [vmem:[%s12 + $0x368] sm:$0xf]
    %v3866 = vld [vmem:[%s12 + $0x36c] sm:$0xff]
    %v3867 = vld [vmem:[%s12 + $0x374] sm:$0xf]
    %v3868 = vld [vmem:[%s12 + $0x378] sm:$0xff]
    %v3869 = vld [vmem:[%s12 + $0x380] sm:$0xf]
    %v3870 = vld [vmem:[%s12 + $0x384] sm:$0xff]
    %v3871 = vld [vmem:[%s12 + $0x38c] sm:$0xf]
    %v3872 = vld [vmem:[%s12 + $0x390] sm:$0xff]
    %v3873 = vld [vmem:[%s12 + $0x398] sm:$0xf]
    %v3874 = vld [vmem:[%s12 + $0x39c] sm:$0xff]
    %v3875 = vld [vmem:[%s12 + $0x3a4] sm:$0xf]
    %v3876 = vld [vmem:[%s12 + $0x3a8] sm:$0xff]
    %v3877 = vld [vmem:[%s12 + $0x3b0] sm:$0xf]
    %v3878 = vld [vmem:[%s12 + $0x3b4] sm:$0xff]
    %v3879 = vld [vmem:[%s12 + $0x3bc] sm:$0xf]
    %v3880 = vld [vmem:[%s12 + $0x3c0] sm:$0xff]
    %v3881 = vld [vmem:[%s12 + $0x3c8] sm:$0xf]
    %v3882 = vld [vmem:[%s12 + $0x3cc] sm:$0xff]
    %v3883 = vld [vmem:[%s12 + $0x3d4] sm:$0xf]
    %v3884 = vld [vmem:[%s12 + $0x3d8] sm:$0xff]
    %v3885 = vld [vmem:[%s12 + $0x3e0] sm:$0xf]
    %v3886 = vld [vmem:[%s12 + $0x3e4] sm:$0xff]
    %v3887 = vld [vmem:[%s12 + $0x3ec] sm:$0xf]
    %v3888 = vld [vmem:[%s12 + $0x3f0] sm:$0xff]
    %v3889 = vld [vmem:[%s12 + $0x3f8] sm:$0xf]
    %v3890 = vld [vmem:[%s12 + $0x3fc] sm:$0xff]
    %v3891 = vld [vmem:[%s12 + $0x404] sm:$0xf]
    %v3892 = vld [vmem:[%s12 + $0x408] sm:$0xff]
    %v3893 = vld [vmem:[%s12 + $0x410] sm:$0xf]
    %v3894 = vld [vmem:[%s12 + $0x414] sm:$0xff]
    %v3895 = vld [vmem:[%s12 + $0x41c] sm:$0xf]
    %v3896 = vld [vmem:[%s12 + $0x420] sm:$0xff]
    %v3897 = vld [vmem:[%s12 + $0x428] sm:$0xf]
    %v3898 = vld [vmem:[%s12 + $0x42c] sm:$0xff]
    %v3899 = vld [vmem:[%s12 + $0x434] sm:$0xf]
    %v3900 = vld [vmem:[%s12 + $0x438] sm:$0xff]
    %v3901 = vld [vmem:[%s12 + $0x440] sm:$0xf]
    %v3902 = vld [vmem:[%s12 + $0x444] sm:$0xff]
    %v3903 = vld [vmem:[%s12 + $0x44c] sm:$0xf]
    %v3904 = vld [vmem:[%s12 + $0x450] sm:$0xff]
    %v3905 = vld [vmem:[%s12 + $0x458] sm:$0xf]
    %v3906 = vld [vmem:[%s12 + $0x45c] sm:$0xff]
    %v3907 = vld [vmem:[%s12 + $0x464] sm:$0xf]
    %v3908 = vld [vmem:[%s12 + $0x468] sm:$0xff]
    %v3909 = vld [vmem:[%s12 + $0x470] sm:$0xf]
    %v3910 = vld [vmem:[%s12 + $0x474] sm:$0xff]
    %v3911 = vld [vmem:[%s12 + $0x47c] sm:$0xf]
    %v3912 = vld [vmem:[%s12 + $0x480] sm:$0xff]
    %v3913 = vld [vmem:[%s12 + $0x488] sm:$0xf]
    %v3914 = vld [vmem:[%s12 + $0x48c] sm:$0xff]
    %v3915 = vld [vmem:[%s12 + $0x494] sm:$0xf]
    %v3916 = vld [vmem:[%s12 + $0x498] sm:$0xff]
    %v3917 = vld [vmem:[%s12 + $0x4a0] sm:$0xf]
    %v3918 = vld [vmem:[%s12 + $0x4a4] sm:$0xff]
    %v3919 = vld [vmem:[%s12 + $0x4ac] sm:$0xf]
    %v3920 = vld [vmem:[%s12 + $0x4b0] sm:$0xff]
    %v3921 = vld [vmem:[%s12 + $0x4b8] sm:$0xf]
    %v3922 = vld [vmem:[%s12 + $0x4bc] sm:$0xff]
    %v3923 = vld [vmem:[%s12 + $0x4c4] sm:$0xf]
    %v3924 = vld [vmem:[%s12 + $0x4c8] sm:$0xff]
    %v3925 = vld [vmem:[%s12 + $0x4d0] sm:$0xf]
    %v3926 = vld [vmem:[%s12 + $0x4d4] sm:$0xff]
    %v3927 = vld [vmem:[%s12 + $0x4dc] sm:$0xf]
    %v3928 = vld [vmem:[%s12 + $0x4e0] sm:$0xff]
    %v3929 = vld [vmem:[%s12 + $0x4e8] sm:$0xf]
    %v3930 = vld [vmem:[%s12 + $0x4ec] sm:$0xff]
    %v3931 = vld [vmem:[%s12 + $0x4f4] sm:$0xf]
    %v3932 = vld [vmem:[%s12 + $0x4f8] sm:$0xff]
    %v3933 = vld [vmem:[%s12 + $0x500] sm:$0xf]
    %v3934 = vld [vmem:[%s12 + $0x504] sm:$0xff]
    %v3935 = vld [vmem:[%s12 + $0x50c] sm:$0xf]
    %v3936 = vld [vmem:[%s12 + $0x510] sm:$0xff]
    %v3937 = vld [vmem:[%s12 + $0x518] sm:$0xf]
    %v3938 = vld [vmem:[%s12 + $0x51c] sm:$0xff]
    %v3939 = vld [vmem:[%s12 + $0x524] sm:$0xf]
    %v3940 = vld [vmem:[%s12 + $0x528] sm:$0xff]
    %v3941 = vld [vmem:[%s12 + $0x530] sm:$0xf]
    %v3942 = vld [vmem:[%s12 + $0x534] sm:$0xff]
    %v3943 = vld [vmem:[%s12 + $0x53c] sm:$0xf]
    %v3944 = vld [vmem:[%s12 + $0x540] sm:$0xff]
    %v3945 = vld [vmem:[%s12 + $0x548] sm:$0xf]
    %v3946 = vld [vmem:[%s12 + $0x54c] sm:$0xff]
    %v3947 = vld [vmem:[%s12 + $0x554] sm:$0xf]
    %v3948 = vld [vmem:[%s12 + $0x558] sm:$0xff]
    %v3949 = vld [vmem:[%s12 + $0x560] sm:$0xf]
    %v3950 = vld [vmem:[%s12 + $0x564] sm:$0xff]
    %v3951 = vld [vmem:[%s12 + $0x56c] sm:$0xf]
    %v3952 = vld [vmem:[%s12 + $0x570] sm:$0xff]
    %v3953 = vld [vmem:[%s12 + $0x578] sm:$0xf]
    %v3954 = vld [vmem:[%s12 + $0x57c] sm:$0xff]
    %v3955 = vld [vmem:[%s12 + $0x584] sm:$0xf]
    %v3956 = vld [vmem:[%s12 + $0x588] sm:$0xff]
    %v3957 = vld [vmem:[%s12 + $0x590] sm:$0xf]
    %v3958 = vld [vmem:[%s12 + $0x594] sm:$0xff]
    %v3959 = vld [vmem:[%s12 + $0x59c] sm:$0xf]
    %v3960 = vld [vmem:[%s12 + $0x5a0] sm:$0xff]
    %v3961 = vld [vmem:[%s12 + $0x5a8] sm:$0xf]
    %v3962 = vld [vmem:[%s12 + $0x5ac] sm:$0xff]
    %v3963 = vld [vmem:[%s12 + $0x5b4] sm:$0xf]
    %v3964 = vld [vmem:[%s12 + $0x5b8] sm:$0xff]
    %v3965 = vld [vmem:[%s12 + $0x5c0] sm:$0xf]
    %v3966 = vld [vmem:[%s12 + $0x5c4] sm:$0xff]
    %v3967 = vld [vmem:[%s12 + $0x5cc] sm:$0xf]
    %v3968 = vld [vmem:[%s12 + $0x5d0] sm:$0xff]
    %v3969 = vld [vmem:[%s12 + $0x5d8] sm:$0xf]
    %v3970 = vld [vmem:[%s12 + $0x5dc] sm:$0xff]
    %v3971 = vld [vmem:[%s12 + $0x5e4] sm:$0xf]
    %v3972 = vld [vmem:[%s12 + $0x5e8] sm:$0xff]
    %v3973 = vld [vmem:[%s12 + $0x5f0] sm:$0xf]
    %v3974 = vld [vmem:[%s12 + $0x5f4] sm:$0xff]
    %v3975 = vld [vmem:[%s12 + $0x5fc] sm:$0xf]
    %v3976 = vld [vmem:[%s12 + $0x600] sm:$0xff]
    %v3977 = vld [vmem:[%s12 + $0x608] sm:$0xf]
    %v3978 = vld [vmem:[%s12 + $0x60c] sm:$0xff]
    %v3979 = vld [vmem:[%s12 + $0x614] sm:$0xf]
    %v3980 = vld [vmem:[%s12 + $0x618] sm:$0xff]
    %v3981 = vld [vmem:[%s12 + $0x620] sm:$0xf]
    %v3982 = vld [vmem:[%s12 + $0x624] sm:$0xff]
    %v3983 = vld [vmem:[%s12 + $0x62c] sm:$0xf]
    %v3984 = vld [vmem:[%s12 + $0x630] sm:$0xff]
    %v3985 = vld [vmem:[%s12 + $0x638] sm:$0xf]
    %v3986 = vld [vmem:[%s12 + $0x63c] sm:$0xff]
    %v3987 = vld [vmem:[%s12 + $0x644] sm:$0xf]
    %v3988 = vld [vmem:[%s12 + $0x648] sm:$0xff]
    %v3989 = vld [vmem:[%s12 + $0x650] sm:$0xf]
    %v3990 = vld [vmem:[%s12 + $0x654] sm:$0xff]
    %v3991 = vld [vmem:[%s12 + $0x65c] sm:$0xf]
    %v3992 = vld [vmem:[%s12 + $0x660] sm:$0xff]
    %v3993 = vld [vmem:[%s12 + $0x668] sm:$0xf]
    %v3994 = vld [vmem:[%s12 + $0x66c] sm:$0xff]
    %v3995 = vld [vmem:[%s12 + $0x674] sm:$0xf]
    %v3996 = vld [vmem:[%s12 + $0x678] sm:$0xff]
    %v3997 = vld [vmem:[%s12 + $0x680] sm:$0xf]
    %v3998 = vld [vmem:[%s12 + $0x684] sm:$0xff]
    %v3999 = vld [vmem:[%s12 + $0x68c] sm:$0xf]
    %v4000 = vld [vmem:[%s12 + $0x690] sm:$0xff]
    %v4001 = vld [vmem:[%s12 + $0x698] sm:$0xf]
    %v4002 = vld [vmem:[%s12 + $0x69c] sm:$0xff]
    %v4003 = vld [vmem:[%s12 + $0x6a4] sm:$0xf]
    %v4004 = vld [vmem:[%s12 + $0x6a8] sm:$0xff]
    %v4005 = vld [vmem:[%s12 + $0x6b0] sm:$0xf]
    %v4006 = vld [vmem:[%s12 + $0x6b4] sm:$0xff]
    %v4007 = vld [vmem:[%s12 + $0x6bc] sm:$0xf]
    %v4008 = vld [vmem:[%s12 + $0x6c0] sm:$0xff]
    %v4009 = vld [vmem:[%s12 + $0x6c8] sm:$0xf]
    %v4010 = vld [vmem:[%s12 + $0x6cc] sm:$0xff]
    %v4011 = vld [vmem:[%s12 + $0x6d4] sm:$0xf]
    %v4012 = vld [vmem:[%s12 + $0x6d8] sm:$0xff]
    %v4013 = vld [vmem:[%s12 + $0x6e0] sm:$0xf]
    %v4014 = vld [vmem:[%s12 + $0x6e4] sm:$0xff]
    %v4015 = vld [vmem:[%s12 + $0x6ec] sm:$0xf]
    %v4016 = vld [vmem:[%s12 + $0x6f0] sm:$0xff]
    %v4017 = vld [vmem:[%s12 + $0x6f8] sm:$0xf]
    %v4018 = vld [vmem:[%s12 + $0x6fc] sm:$0xff]
    %v4019 = vld [vmem:[%s12 + $0x704] sm:$0xf]
    %v4020 = vld [vmem:[%s12 + $0x708] sm:$0xff]
    %v4021 = vld [vmem:[%s12 + $0x710] sm:$0xf]
    %v4022 = vld [vmem:[%s12 + $0x714] sm:$0xff]
    %v4023 = vld [vmem:[%s12 + $0x71c] sm:$0xf]
    %v4024 = vld [vmem:[%s12 + $0x720] sm:$0xff]
    %v4025 = vld [vmem:[%s12 + $0x728] sm:$0xf]
    %v4026 = vld [vmem:[%s12 + $0x72c] sm:$0xff]
    %v4027 = vld [vmem:[%s12 + $0x734] sm:$0xf]
    %v4028 = vld [vmem:[%s12 + $0x738] sm:$0xff]
    %v4029 = vld [vmem:[%s12 + $0x740] sm:$0xf]
    %v4030 = vld [vmem:[%s12 + $0x744] sm:$0xff]
    %v4031 = vld [vmem:[%s12 + $0x74c] sm:$0xf]
    %v4032 = vld [vmem:[%s12 + $0x750] sm:$0xff]
    %v4033 = vld [vmem:[%s12 + $0x758] sm:$0xf]
    %v4034 = vld [vmem:[%s12 + $0x75c] sm:$0xff]
    %v4035 = vld [vmem:[%s12 + $0x764] sm:$0xf]
    %v4036 = vld [vmem:[%s12 + $0x768] sm:$0xff]
    %v4037 = vld [vmem:[%s12 + $0x770] sm:$0xf]
    %v4038 = vld [vmem:[%s12 + $0x774] sm:$0xff]
    %v4039 = vld [vmem:[%s12 + $0x77c] sm:$0xf]
    %v4040 = vld [vmem:[%s13] sm:$0x7]
    %v4042 = vperm.slane %v4040, 0
    %v4043 = vperm.slane %v4040, 1
    %v4044 = vperm.slane %v4040, 2
    %v4368 = vunpack.c.l.b16 %v3720
    %v4369 = vunpack.c.h.b16 %v3720
    %v4370 = vunpack.c.l.b16 %v3721
    %v4371 = vunpack.c.l.b16 %v3722
    %v4372 = vunpack.c.h.b16 %v3722
    %v4373 = vunpack.c.l.b16 %v3723
    %v4374 = vunpack.c.l.b16 %v3724
    %v4375 = vunpack.c.h.b16 %v3724
    %v4376 = vunpack.c.l.b16 %v3725
    %v4377 = vunpack.c.l.b16 %v3726
    %v4378 = vunpack.c.h.b16 %v3726
    %v4379 = vunpack.c.l.b16 %v3727
    %v4380 = vunpack.c.l.b16 %v3728
    %v4381 = vunpack.c.h.b16 %v3728
    %v4382 = vunpack.c.l.b16 %v3729
    %v4383 = vunpack.c.l.b16 %v3730
    %v4384 = vunpack.c.h.b16 %v3730
    %v4385 = vunpack.c.l.b16 %v3731
    %v4386 = vunpack.c.l.b16 %v3732
    %v4387 = vunpack.c.h.b16 %v3732
    %v4388 = vunpack.c.l.b16 %v3733
    %v4389 = vunpack.c.l.b16 %v3734
    %v4390 = vunpack.c.h.b16 %v3734
    %v4391 = vunpack.c.l.b16 %v3735
    %v4392 = vunpack.c.l.b16 %v3736
    %v4393 = vunpack.c.h.b16 %v3736
    %v4394 = vunpack.c.l.b16 %v3737
    %v4395 = vunpack.c.l.b16 %v3738
    %v4396 = vunpack.c.h.b16 %v3738
    %v4397 = vunpack.c.l.b16 %v3739
    %v4398 = vunpack.c.l.b16 %v3740
    %v4399 = vunpack.c.h.b16 %v3740
    %v4400 = vunpack.c.l.b16 %v3741
    %v4401 = vunpack.c.l.b16 %v3742
    %v4402 = vunpack.c.h.b16 %v3742
    %v4403 = vunpack.c.l.b16 %v3743
    %v4404 = vunpack.c.l.b16 %v3744
    %v4405 = vunpack.c.h.b16 %v3744
    %v4406 = vunpack.c.l.b16 %v3745
    %v4407 = vunpack.c.l.b16 %v3746
    %v4408 = vunpack.c.h.b16 %v3746
    %v4409 = vunpack.c.l.b16 %v3747
    %v4410 = vunpack.c.l.b16 %v3748
    %v4411 = vunpack.c.h.b16 %v3748
    %v4412 = vunpack.c.l.b16 %v3749
    %v4413 = vunpack.c.l.b16 %v3750
    %v4414 = vunpack.c.h.b16 %v3750
    %v4415 = vunpack.c.l.b16 %v3751
    %v4416 = vunpack.c.l.b16 %v3752
    %v4417 = vunpack.c.h.b16 %v3752
    %v4418 = vunpack.c.l.b16 %v3753
    %v4419 = vunpack.c.l.b16 %v3754
    %v4420 = vunpack.c.h.b16 %v3754
    %v4421 = vunpack.c.l.b16 %v3755
    %v4422 = vunpack.c.l.b16 %v3756
    %v4423 = vunpack.c.h.b16 %v3756
    %v4424 = vunpack.c.l.b16 %v3757
    %v4425 = vunpack.c.l.b16 %v3758
    %v4426 = vunpack.c.h.b16 %v3758
    %v4427 = vunpack.c.l.b16 %v3759
    %v4428 = vunpack.c.l.b16 %v3760
    %v4429 = vunpack.c.h.b16 %v3760
    %v4430 = vunpack.c.l.b16 %v3761
    %v4431 = vunpack.c.l.b16 %v3762
    %v4432 = vunpack.c.h.b16 %v3762
    %v4433 = vunpack.c.l.b16 %v3763
    %v4434 = vunpack.c.l.b16 %v3764
    %v4435 = vunpack.c.h.b16 %v3764
    %v4436 = vunpack.c.l.b16 %v3765
    %v4437 = vunpack.c.l.b16 %v3766
    %v4438 = vunpack.c.h.b16 %v3766
    %v4439 = vunpack.c.l.b16 %v3767
    %v4440 = vunpack.c.l.b16 %v3768
    %v4441 = vunpack.c.h.b16 %v3768
    %v4442 = vunpack.c.l.b16 %v3769
    %v4443 = vunpack.c.l.b16 %v3770
    %v4444 = vunpack.c.h.b16 %v3770
    %v4445 = vunpack.c.l.b16 %v3771
    %v4446 = vunpack.c.l.b16 %v3772
    %v4447 = vunpack.c.h.b16 %v3772
    %v4448 = vunpack.c.l.b16 %v3773
    %v4449 = vunpack.c.l.b16 %v3774
    %v4450 = vunpack.c.h.b16 %v3774
    %v4451 = vunpack.c.l.b16 %v3775
    %v4452 = vunpack.c.l.b16 %v3776
    %v4453 = vunpack.c.h.b16 %v3776
    %v4454 = vunpack.c.l.b16 %v3777
    %v4455 = vunpack.c.l.b16 %v3778
    %v4456 = vunpack.c.h.b16 %v3778
    %v4457 = vunpack.c.l.b16 %v3779
    %v4458 = vunpack.c.l.b16 %v3780
    %v4459 = vunpack.c.h.b16 %v3780
    %v4460 = vunpack.c.l.b16 %v3781
    %v4461 = vunpack.c.l.b16 %v3782
    %v4462 = vunpack.c.h.b16 %v3782
    %v4463 = vunpack.c.l.b16 %v3783
    %v4464 = vunpack.c.l.b16 %v3784
    %v4465 = vunpack.c.h.b16 %v3784
    %v4466 = vunpack.c.l.b16 %v3785
    %v4467 = vunpack.c.l.b16 %v3786
    %v4468 = vunpack.c.h.b16 %v3786
    %v4469 = vunpack.c.l.b16 %v3787
    %v4470 = vunpack.c.l.b16 %v3788
    %v4471 = vunpack.c.h.b16 %v3788
    %v4472 = vunpack.c.l.b16 %v3789
    %v4473 = vunpack.c.l.b16 %v3790
    %v4474 = vunpack.c.h.b16 %v3790
    %v4475 = vunpack.c.l.b16 %v3791
    %v4476 = vunpack.c.l.b16 %v3792
    %v4477 = vunpack.c.h.b16 %v3792
    %v4478 = vunpack.c.l.b16 %v3793
    %v4479 = vunpack.c.l.b16 %v3794
    %v4480 = vunpack.c.h.b16 %v3794
    %v4481 = vunpack.c.l.b16 %v3795
    %v4482 = vunpack.c.l.b16 %v3796
    %v4483 = vunpack.c.h.b16 %v3796
    %v4484 = vunpack.c.l.b16 %v3797
    %v4485 = vunpack.c.l.b16 %v3798
    %v4486 = vunpack.c.h.b16 %v3798
    %v4487 = vunpack.c.l.b16 %v3799
    %v4488 = vunpack.c.l.b16 %v3800
    %v4489 = vunpack.c.h.b16 %v3800
    %v4490 = vunpack.c.l.b16 %v3801
    %v4491 = vunpack.c.l.b16 %v3802
    %v4492 = vunpack.c.h.b16 %v3802
    %v4493 = vunpack.c.l.b16 %v3803
    %v4494 = vunpack.c.l.b16 %v3804
    %v4495 = vunpack.c.h.b16 %v3804
    %v4496 = vunpack.c.l.b16 %v3805
    %v4497 = vunpack.c.l.b16 %v3806
    %v4498 = vunpack.c.h.b16 %v3806
    %v4499 = vunpack.c.l.b16 %v3807
    %v4500 = vunpack.c.l.b16 %v3808
    %v4501 = vunpack.c.h.b16 %v3808
    %v4502 = vunpack.c.l.b16 %v3809
    %v4503 = vunpack.c.l.b16 %v3810
    %v4504 = vunpack.c.h.b16 %v3810
    %v4505 = vunpack.c.l.b16 %v3811
    %v4506 = vunpack.c.l.b16 %v3812
    %v4507 = vunpack.c.h.b16 %v3812
    %v4508 = vunpack.c.l.b16 %v3813
    %v4509 = vunpack.c.l.b16 %v3814
    %v4510 = vunpack.c.h.b16 %v3814
    %v4511 = vunpack.c.l.b16 %v3815
    %v4512 = vunpack.c.l.b16 %v3816
    %v4513 = vunpack.c.h.b16 %v3816
    %v4514 = vunpack.c.l.b16 %v3817
    %v4515 = vunpack.c.l.b16 %v3818
    %v4516 = vunpack.c.h.b16 %v3818
    %v4517 = vunpack.c.l.b16 %v3819
    %v4518 = vunpack.c.l.b16 %v3820
    %v4519 = vunpack.c.h.b16 %v3820
    %v4520 = vunpack.c.l.b16 %v3821
    %v4521 = vunpack.c.l.b16 %v3822
    %v4522 = vunpack.c.h.b16 %v3822
    %v4523 = vunpack.c.l.b16 %v3823
    %v4524 = vunpack.c.l.b16 %v3824
    %v4525 = vunpack.c.h.b16 %v3824
    %v4526 = vunpack.c.l.b16 %v3825
    %v4527 = vunpack.c.l.b16 %v3826
    %v4528 = vunpack.c.h.b16 %v3826
    %v4529 = vunpack.c.l.b16 %v3827
    %v4530 = vunpack.c.l.b16 %v3828
    %v4531 = vunpack.c.h.b16 %v3828
    %v4532 = vunpack.c.l.b16 %v3829
    %v4533 = vunpack.c.l.b16 %v3830
    %v4534 = vunpack.c.h.b16 %v3830
    %v4535 = vunpack.c.l.b16 %v3831
    %v4536 = vunpack.c.l.b16 %v3832
    %v4537 = vunpack.c.h.b16 %v3832
    %v4538 = vunpack.c.l.b16 %v3833
    %v4539 = vunpack.c.l.b16 %v3834
    %v4540 = vunpack.c.h.b16 %v3834
    %v4541 = vunpack.c.l.b16 %v3835
    %v4542 = vunpack.c.l.b16 %v3836
    %v4543 = vunpack.c.h.b16 %v3836
    %v4544 = vunpack.c.l.b16 %v3837
    %v4545 = vunpack.c.l.b16 %v3838
    %v4546 = vunpack.c.h.b16 %v3838
    %v4547 = vunpack.c.l.b16 %v3839
    %v4548 = vunpack.c.l.b16 %v3840
    %v4549 = vunpack.c.h.b16 %v3840
    %v4550 = vunpack.c.l.b16 %v3841
    %v4551 = vunpack.c.l.b16 %v3842
    %v4552 = vunpack.c.h.b16 %v3842
    %v4553 = vunpack.c.l.b16 %v3843
    %v4554 = vunpack.c.l.b16 %v3844
    %v4555 = vunpack.c.h.b16 %v3844
    %v4556 = vunpack.c.l.b16 %v3845
    %v4557 = vunpack.c.l.b16 %v3846
    %v4558 = vunpack.c.h.b16 %v3846
    %v4559 = vunpack.c.l.b16 %v3847
    %v4560 = vunpack.c.l.b16 %v3848
    %v4561 = vunpack.c.h.b16 %v3848
    %v4562 = vunpack.c.l.b16 %v3849
    %v4563 = vunpack.c.l.b16 %v3850
    %v4564 = vunpack.c.h.b16 %v3850
    %v4565 = vunpack.c.l.b16 %v3851
    %v4566 = vunpack.c.l.b16 %v3852
    %v4567 = vunpack.c.h.b16 %v3852
    %v4568 = vunpack.c.l.b16 %v3853
    %v4569 = vunpack.c.l.b16 %v3854
    %v4570 = vunpack.c.h.b16 %v3854
    %v4571 = vunpack.c.l.b16 %v3855
    %v4572 = vunpack.c.l.b16 %v3856
    %v4573 = vunpack.c.h.b16 %v3856
    %v4574 = vunpack.c.l.b16 %v3857
    %v4575 = vunpack.c.l.b16 %v3858
    %v4576 = vunpack.c.h.b16 %v3858
    %v4577 = vunpack.c.l.b16 %v3859
    %v4578 = vunpack.c.l.b16 %v3860
    %v4579 = vunpack.c.h.b16 %v3860
    %v4580 = vunpack.c.l.b16 %v3861
    %v4581 = vunpack.c.l.b16 %v3862
    %v4582 = vunpack.c.h.b16 %v3862
    %v4583 = vunpack.c.l.b16 %v3863
    %v4584 = vunpack.c.l.b16 %v3864
    %v4585 = vunpack.c.h.b16 %v3864
    %v4586 = vunpack.c.l.b16 %v3865
    %v4587 = vunpack.c.l.b16 %v3866
    %v4588 = vunpack.c.h.b16 %v3866
    %v4589 = vunpack.c.l.b16 %v3867
    %v4590 = vunpack.c.l.b16 %v3868
    %v4591 = vunpack.c.h.b16 %v3868
    %v4592 = vunpack.c.l.b16 %v3869
    %v4593 = vunpack.c.l.b16 %v3870
    %v4594 = vunpack.c.h.b16 %v3870
    %v4595 = vunpack.c.l.b16 %v3871
    %v4596 = vunpack.c.l.b16 %v3872
    %v4597 = vunpack.c.h.b16 %v3872
    %v4598 = vunpack.c.l.b16 %v3873
    %v4599 = vunpack.c.l.b16 %v3874
    %v4600 = vunpack.c.h.b16 %v3874
    %v4601 = vunpack.c.l.b16 %v3875
    %v4602 = vunpack.c.l.b16 %v3876
    %v4603 = vunpack.c.h.b16 %v3876
    %v4604 = vunpack.c.l.b16 %v3877
    %v4605 = vunpack.c.l.b16 %v3878
    %v4606 = vunpack.c.h.b16 %v3878
    %v4607 = vunpack.c.l.b16 %v3879
    %v4608 = vunpack.c.l.b16 %v3880
    %v4609 = vunpack.c.h.b16 %v3880
    %v4610 = vunpack.c.l.b16 %v3881
    %v4611 = vunpack.c.l.b16 %v3882
    %v4612 = vunpack.c.h.b16 %v3882
    %v4613 = vunpack.c.l.b16 %v3883
    %v4614 = vunpack.c.l.b16 %v3884
    %v4615 = vunpack.c.h.b16 %v3884
    %v4616 = vunpack.c.l.b16 %v3885
    %v4617 = vunpack.c.l.b16 %v3886
    %v4618 = vunpack.c.h.b16 %v3886
    %v4619 = vunpack.c.l.b16 %v3887
    %v4620 = vunpack.c.l.b16 %v3888
    %v4621 = vunpack.c.h.b16 %v3888
    %v4622 = vunpack.c.l.b16 %v3889
    %v4623 = vunpack.c.l.b16 %v3890
    %v4624 = vunpack.c.h.b16 %v3890
    %v4625 = vunpack.c.l.b16 %v3891
    %v4626 = vunpack.c.l.b16 %v3892
    %v4627 = vunpack.c.h.b16 %v3892
    %v4628 = vunpack.c.l.b16 %v3893
    %v4629 = vunpack.c.l.b16 %v3894
    %v4630 = vunpack.c.h.b16 %v3894
    %v4631 = vunpack.c.l.b16 %v3895
    %v4632 = vunpack.c.l.b16 %v3896
    %v4633 = vunpack.c.h.b16 %v3896
    %v4634 = vunpack.c.l.b16 %v3897
    %v4635 = vunpack.c.l.b16 %v3898
    %v4636 = vunpack.c.h.b16 %v3898
    %v4637 = vunpack.c.l.b16 %v3899
    %v4638 = vunpack.c.l.b16 %v3900
    %v4639 = vunpack.c.h.b16 %v3900
    %v4640 = vunpack.c.l.b16 %v3901
    %v4641 = vunpack.c.l.b16 %v3902
    %v4642 = vunpack.c.h.b16 %v3902
    %v4643 = vunpack.c.l.b16 %v3903
    %v4644 = vunpack.c.l.b16 %v3904
    %v4645 = vunpack.c.h.b16 %v3904
    %v4646 = vunpack.c.l.b16 %v3905
    %v4647 = vunpack.c.l.b16 %v3906
    %v4648 = vunpack.c.h.b16 %v3906
    %v4649 = vunpack.c.l.b16 %v3907
    %v4650 = vunpack.c.l.b16 %v3908
    %v4651 = vunpack.c.h.b16 %v3908
    %v4652 = vunpack.c.l.b16 %v3909
    %v4653 = vunpack.c.l.b16 %v3910
    %v4654 = vunpack.c.h.b16 %v3910
    %v4655 = vunpack.c.l.b16 %v3911
    %v4656 = vunpack.c.l.b16 %v3912
    %v4657 = vunpack.c.h.b16 %v3912
    %v4658 = vunpack.c.l.b16 %v3913
    %v4659 = vunpack.c.l.b16 %v3914
    %v4660 = vunpack.c.h.b16 %v3914
    %v4661 = vunpack.c.l.b16 %v3915
    %v4662 = vunpack.c.l.b16 %v3916
    %v4663 = vunpack.c.h.b16 %v3916
    %v4664 = vunpack.c.l.b16 %v3917
    %v4665 = vunpack.c.l.b16 %v3918
    %v4666 = vunpack.c.h.b16 %v3918
    %v4667 = vunpack.c.l.b16 %v3919
    %v4668 = vunpack.c.l.b16 %v3920
    %v4669 = vunpack.c.h.b16 %v3920
    %v4670 = vunpack.c.l.b16 %v3921
    %v4671 = vunpack.c.l.b16 %v3922
    %v4672 = vunpack.c.h.b16 %v3922
    %v4673 = vunpack.c.l.b16 %v3923
    %v4674 = vunpack.c.l.b16 %v3924
    %v4675 = vunpack.c.h.b16 %v3924
    %v4676 = vunpack.c.l.b16 %v3925
    %v4677 = vunpack.c.l.b16 %v3926
    %v4678 = vunpack.c.h.b16 %v3926
    %v4679 = vunpack.c.l.b16 %v3927
    %v4680 = vunpack.c.l.b16 %v3928
    %v4681 = vunpack.c.h.b16 %v3928
    %v4682 = vunpack.c.l.b16 %v3929
    %v4683 = vunpack.c.l.b16 %v3930
    %v4684 = vunpack.c.h.b16 %v3930
    %v4685 = vunpack.c.l.b16 %v3931
    %v4686 = vunpack.c.l.b16 %v3932
    %v4687 = vunpack.c.h.b16 %v3932
    %v4688 = vunpack.c.l.b16 %v3933
    %v4689 = vunpack.c.l.b16 %v3934
    %v4690 = vunpack.c.h.b16 %v3934
    %v4691 = vunpack.c.l.b16 %v3935
    %v4692 = vunpack.c.l.b16 %v3936
    %v4693 = vunpack.c.h.b16 %v3936
    %v4694 = vunpack.c.l.b16 %v3937
    %v4695 = vunpack.c.l.b16 %v3938
    %v4696 = vunpack.c.h.b16 %v3938
    %v4697 = vunpack.c.l.b16 %v3939
    %v4698 = vunpack.c.l.b16 %v3940
    %v4699 = vunpack.c.h.b16 %v3940
    %v4700 = vunpack.c.l.b16 %v3941
    %v4701 = vunpack.c.l.b16 %v3942
    %v4702 = vunpack.c.h.b16 %v3942
    %v4703 = vunpack.c.l.b16 %v3943
    %v4704 = vunpack.c.l.b16 %v3944
    %v4705 = vunpack.c.h.b16 %v3944
    %v4706 = vunpack.c.l.b16 %v3945
    %v4707 = vunpack.c.l.b16 %v3946
    %v4708 = vunpack.c.h.b16 %v3946
    %v4709 = vunpack.c.l.b16 %v3947
    %v4710 = vunpack.c.l.b16 %v3948
    %v4711 = vunpack.c.h.b16 %v3948
    %v4712 = vunpack.c.l.b16 %v3949
    %v4713 = vunpack.c.l.b16 %v3950
    %v4714 = vunpack.c.h.b16 %v3950
    %v4715 = vunpack.c.l.b16 %v3951
    %v4716 = vunpack.c.l.b16 %v3952
    %v4717 = vunpack.c.h.b16 %v3952
    %v4718 = vunpack.c.l.b16 %v3953
    %v4719 = vunpack.c.l.b16 %v3954
    %v4720 = vunpack.c.h.b16 %v3954
    %v4721 = vunpack.c.l.b16 %v3955
    %v4722 = vunpack.c.l.b16 %v3956
    %v4723 = vunpack.c.h.b16 %v3956
    %v4724 = vunpack.c.l.b16 %v3957
    %v4725 = vunpack.c.l.b16 %v3958
    %v4726 = vunpack.c.h.b16 %v3958
    %v4727 = vunpack.c.l.b16 %v3959
    %v4728 = vunpack.c.l.b16 %v3960
    %v4729 = vunpack.c.h.b16 %v3960
    %v4730 = vunpack.c.l.b16 %v3961
    %v4731 = vunpack.c.l.b16 %v3962
    %v4732 = vunpack.c.h.b16 %v3962
    %v4733 = vunpack.c.l.b16 %v3963
    %v4734 = vunpack.c.l.b16 %v3964
    %v4735 = vunpack.c.h.b16 %v3964
    %v4736 = vunpack.c.l.b16 %v3965
    %v4737 = vunpack.c.l.b16 %v3966
    %v4738 = vunpack.c.h.b16 %v3966
    %v4739 = vunpack.c.l.b16 %v3967
    %v4740 = vunpack.c.l.b16 %v3968
    %v4741 = vunpack.c.h.b16 %v3968
    %v4742 = vunpack.c.l.b16 %v3969
    %v4743 = vunpack.c.l.b16 %v3970
    %v4744 = vunpack.c.h.b16 %v3970
    %v4745 = vunpack.c.l.b16 %v3971
    %v4746 = vunpack.c.l.b16 %v3972
    %v4747 = vunpack.c.h.b16 %v3972
    %v4748 = vunpack.c.l.b16 %v3973
    %v4749 = vunpack.c.l.b16 %v3974
    %v4750 = vunpack.c.h.b16 %v3974
    %v4751 = vunpack.c.l.b16 %v3975
    %v4752 = vunpack.c.l.b16 %v3976
    %v4753 = vunpack.c.h.b16 %v3976
    %v4754 = vunpack.c.l.b16 %v3977
    %v4755 = vunpack.c.l.b16 %v3978
    %v4756 = vunpack.c.h.b16 %v3978
    %v4757 = vunpack.c.l.b16 %v3979
    %v4758 = vunpack.c.l.b16 %v3980
    %v4759 = vunpack.c.h.b16 %v3980
    %v4760 = vunpack.c.l.b16 %v3981
    %v4761 = vunpack.c.l.b16 %v3982
    %v4762 = vunpack.c.h.b16 %v3982
    %v4763 = vunpack.c.l.b16 %v3983
    %v4764 = vunpack.c.l.b16 %v3984
    %v4765 = vunpack.c.h.b16 %v3984
    %v4766 = vunpack.c.l.b16 %v3985
    %v4767 = vunpack.c.l.b16 %v3986
    %v4768 = vunpack.c.h.b16 %v3986
    %v4769 = vunpack.c.l.b16 %v3987
    %v4770 = vunpack.c.l.b16 %v3988
    %v4771 = vunpack.c.h.b16 %v3988
    %v4772 = vunpack.c.l.b16 %v3989
    %v4773 = vunpack.c.l.b16 %v3990
    %v4774 = vunpack.c.h.b16 %v3990
    %v4775 = vunpack.c.l.b16 %v3991
    %v4776 = vunpack.c.l.b16 %v3992
    %v4777 = vunpack.c.h.b16 %v3992
    %v4778 = vunpack.c.l.b16 %v3993
    %v4779 = vunpack.c.l.b16 %v3994
    %v4780 = vunpack.c.h.b16 %v3994
    %v4781 = vunpack.c.l.b16 %v3995
    %v4782 = vunpack.c.l.b16 %v3996
    %v4783 = vunpack.c.h.b16 %v3996
    %v4784 = vunpack.c.l.b16 %v3997
    %v4785 = vunpack.c.l.b16 %v3998
    %v4786 = vunpack.c.h.b16 %v3998
    %v4787 = vunpack.c.l.b16 %v3999
    %v4788 = vunpack.c.l.b16 %v4000
    %v4789 = vunpack.c.h.b16 %v4000
    %v4790 = vunpack.c.l.b16 %v4001
    %v4791 = vunpack.c.l.b16 %v4002
    %v4792 = vunpack.c.h.b16 %v4002
    %v4793 = vunpack.c.l.b16 %v4003
    %v4794 = vunpack.c.l.b16 %v4004
    %v4795 = vunpack.c.h.b16 %v4004
    %v4796 = vunpack.c.l.b16 %v4005
    %v4797 = vunpack.c.l.b16 %v4006
    %v4798 = vunpack.c.h.b16 %v4006
    %v4799 = vunpack.c.l.b16 %v4007
    %v4800 = vunpack.c.l.b16 %v4008
    %v4801 = vunpack.c.h.b16 %v4008
    %v4802 = vunpack.c.l.b16 %v4009
    %v4803 = vunpack.c.l.b16 %v4010
    %v4804 = vunpack.c.h.b16 %v4010
    %v4805 = vunpack.c.l.b16 %v4011
    %v4806 = vunpack.c.l.b16 %v4012
    %v4807 = vunpack.c.h.b16 %v4012
    %v4808 = vunpack.c.l.b16 %v4013
    %v4809 = vunpack.c.l.b16 %v4014
    %v4810 = vunpack.c.h.b16 %v4014
    %v4811 = vunpack.c.l.b16 %v4015
    %v4812 = vunpack.c.l.b16 %v4016
    %v4813 = vunpack.c.h.b16 %v4016
    %v4814 = vunpack.c.l.b16 %v4017
    %v4815 = vunpack.c.l.b16 %v4018
    %v4816 = vunpack.c.h.b16 %v4018
    %v4817 = vunpack.c.l.b16 %v4019
    %v4818 = vunpack.c.l.b16 %v4020
    %v4819 = vunpack.c.h.b16 %v4020
    %v4820 = vunpack.c.l.b16 %v4021
    %v4821 = vunpack.c.l.b16 %v4022
    %v4822 = vunpack.c.h.b16 %v4022
    %v4823 = vunpack.c.l.b16 %v4023
    %v4824 = vunpack.c.l.b16 %v4024
    %v4825 = vunpack.c.h.b16 %v4024
    %v4826 = vunpack.c.l.b16 %v4025
    %v4827 = vunpack.c.l.b16 %v4026
    %v4828 = vunpack.c.h.b16 %v4026
    %v4829 = vunpack.c.l.b16 %v4027
    %v4830 = vunpack.c.l.b16 %v4028
    %v4831 = vunpack.c.h.b16 %v4028
    %v4832 = vunpack.c.l.b16 %v4029
    %v4833 = vunpack.c.l.b16 %v4030
    %v4834 = vunpack.c.h.b16 %v4030
    %v4835 = vunpack.c.l.b16 %v4031
    %v4836 = vunpack.c.l.b16 %v4032
    %v4837 = vunpack.c.h.b16 %v4032
    %v4838 = vunpack.c.l.b16 %v4033
    %v4839 = vunpack.c.l.b16 %v4034
    %v4840 = vunpack.c.h.b16 %v4034
    %v4841 = vunpack.c.l.b16 %v4035
    %v4842 = vunpack.c.l.b16 %v4036
    %v4843 = vunpack.c.h.b16 %v4036
    %v4844 = vunpack.c.l.b16 %v4037
    %v4845 = vunpack.c.l.b16 %v4038
    %v4846 = vunpack.c.h.b16 %v4038
    %v4847 = vunpack.c.l.b16 %v4039
    %v4848 = vpack.c.b16 %v4371, %v4368
    %v4849 = vpack.c.b16 %v4372, %v4369
    %v4850 = vpack.c.b16 %v4373, %v4370
    %v4851 = vpack.c.b16 %v4377, %v4374
    %v4852 = vpack.c.b16 %v4378, %v4375
    %v4853 = vpack.c.b16 %v4379, %v4376
    %v4854 = vpack.c.b16 %v4383, %v4380
    %v4855 = vpack.c.b16 %v4384, %v4381
    %v4856 = vpack.c.b16 %v4385, %v4382
    %v4857 = vpack.c.b16 %v4389, %v4386
    %v4858 = vpack.c.b16 %v4390, %v4387
    %v4859 = vpack.c.b16 %v4391, %v4388
    %v4860 = vpack.c.b16 %v4395, %v4392
    %v4861 = vpack.c.b16 %v4396, %v4393
    %v4862 = vpack.c.b16 %v4397, %v4394
    %v4863 = vpack.c.b16 %v4401, %v4398
    %v4864 = vpack.c.b16 %v4402, %v4399
    %v4865 = vpack.c.b16 %v4403, %v4400
    %v4866 = vpack.c.b16 %v4407, %v4404
    %v4867 = vpack.c.b16 %v4408, %v4405
    %v4868 = vpack.c.b16 %v4409, %v4406
    %v4869 = vpack.c.b16 %v4413, %v4410
    %v4870 = vpack.c.b16 %v4414, %v4411
    %v4871 = vpack.c.b16 %v4415, %v4412
    %v4872 = vpack.c.b16 %v4419, %v4416
    %v4873 = vpack.c.b16 %v4420, %v4417
    %v4874 = vpack.c.b16 %v4421, %v4418
    %v4875 = vpack.c.b16 %v4425, %v4422
    %v4876 = vpack.c.b16 %v4426, %v4423
    %v4877 = vpack.c.b16 %v4427, %v4424
    %v4878 = vpack.c.b16 %v4431, %v4428
    %v4879 = vpack.c.b16 %v4432, %v4429
    %v4880 = vpack.c.b16 %v4433, %v4430
    %v4881 = vpack.c.b16 %v4437, %v4434
    %v4882 = vpack.c.b16 %v4438, %v4435
    %v4883 = vpack.c.b16 %v4439, %v4436
    %v4884 = vpack.c.b16 %v4443, %v4440
    %v4885 = vpack.c.b16 %v4444, %v4441
    %v4886 = vpack.c.b16 %v4445, %v4442
    %v4887 = vpack.c.b16 %v4449, %v4446
    %v4888 = vpack.c.b16 %v4450, %v4447
    %v4889 = vpack.c.b16 %v4451, %v4448
    %v4890 = vpack.c.b16 %v4455, %v4452
    %v4891 = vpack.c.b16 %v4456, %v4453
    %v4892 = vpack.c.b16 %v4457, %v4454
    %v4893 = vpack.c.b16 %v4461, %v4458
    %v4894 = vpack.c.b16 %v4462, %v4459
    %v4895 = vpack.c.b16 %v4463, %v4460
    %v4896 = vpack.c.b16 %v4467, %v4464
    %v4897 = vpack.c.b16 %v4468, %v4465
    %v4898 = vpack.c.b16 %v4469, %v4466
    %v4899 = vpack.c.b16 %v4473, %v4470
    %v4900 = vpack.c.b16 %v4474, %v4471
    %v4901 = vpack.c.b16 %v4475, %v4472
    %v4902 = vpack.c.b16 %v4479, %v4476
    %v4903 = vpack.c.b16 %v4480, %v4477
    %v4904 = vpack.c.b16 %v4481, %v4478
    %v4905 = vpack.c.b16 %v4485, %v4482
    %v4906 = vpack.c.b16 %v4486, %v4483
    %v4907 = vpack.c.b16 %v4487, %v4484
    %v4908 = vpack.c.b16 %v4491, %v4488
    %v4909 = vpack.c.b16 %v4492, %v4489
    %v4910 = vpack.c.b16 %v4493, %v4490
    %v4911 = vpack.c.b16 %v4497, %v4494
    %v4912 = vpack.c.b16 %v4498, %v4495
    %v4913 = vpack.c.b16 %v4499, %v4496
    %v4914 = vpack.c.b16 %v4503, %v4500
    %v4915 = vpack.c.b16 %v4504, %v4501
    %v4916 = vpack.c.b16 %v4505, %v4502
    %v4917 = vpack.c.b16 %v4509, %v4506
    %v4918 = vpack.c.b16 %v4510, %v4507
    %v4919 = vpack.c.b16 %v4511, %v4508
    %v4920 = vpack.c.b16 %v4515, %v4512
    %v4921 = vpack.c.b16 %v4516, %v4513
    %v4922 = vpack.c.b16 %v4517, %v4514
    %v4923 = vpack.c.b16 %v4521, %v4518
    %v4924 = vpack.c.b16 %v4522, %v4519
    %v4925 = vpack.c.b16 %v4523, %v4520
    %v4926 = vpack.c.b16 %v4527, %v4524
    %v4927 = vpack.c.b16 %v4528, %v4525
    %v4928 = vpack.c.b16 %v4529, %v4526
    %v4929 = vpack.c.b16 %v4533, %v4530
    %v4930 = vpack.c.b16 %v4534, %v4531
    %v4931 = vpack.c.b16 %v4535, %v4532
    %v4932 = vpack.c.b16 %v4539, %v4536
    %v4933 = vpack.c.b16 %v4540, %v4537
    %v4934 = vpack.c.b16 %v4541, %v4538
    %v4935 = vpack.c.b16 %v4545, %v4542
    %v4936 = vpack.c.b16 %v4546, %v4543
    %v4937 = vpack.c.b16 %v4547, %v4544
    %v4938 = vpack.c.b16 %v4551, %v4548
    %v4939 = vpack.c.b16 %v4552, %v4549
    %v4940 = vpack.c.b16 %v4553, %v4550
    %v4941 = vpack.c.b16 %v4557, %v4554
    %v4942 = vpack.c.b16 %v4558, %v4555
    %v4943 = vpack.c.b16 %v4559, %v4556
    %v4944 = vpack.c.b16 %v4563, %v4560
    %v4945 = vpack.c.b16 %v4564, %v4561
    %v4946 = vpack.c.b16 %v4565, %v4562
    %v4947 = vpack.c.b16 %v4569, %v4566
    %v4948 = vpack.c.b16 %v4570, %v4567
    %v4949 = vpack.c.b16 %v4571, %v4568
    %v4950 = vpack.c.b16 %v4575, %v4572
    %v4951 = vpack.c.b16 %v4576, %v4573
    %v4952 = vpack.c.b16 %v4577, %v4574
    %v4953 = vpack.c.b16 %v4581, %v4578
    %v4954 = vpack.c.b16 %v4582, %v4579
    %v4955 = vpack.c.b16 %v4583, %v4580
    %v4956 = vpack.c.b16 %v4587, %v4584
    %v4957 = vpack.c.b16 %v4588, %v4585
    %v4958 = vpack.c.b16 %v4589, %v4586
    %v4959 = vpack.c.b16 %v4593, %v4590
    %v4960 = vpack.c.b16 %v4594, %v4591
    %v4961 = vpack.c.b16 %v4595, %v4592
    %v4962 = vpack.c.b16 %v4599, %v4596
    %v4963 = vpack.c.b16 %v4600, %v4597
    %v4964 = vpack.c.b16 %v4601, %v4598
    %v4965 = vpack.c.b16 %v4605, %v4602
    %v4966 = vpack.c.b16 %v4606, %v4603
    %v4967 = vpack.c.b16 %v4607, %v4604
    %v4968 = vpack.c.b16 %v4611, %v4608
    %v4969 = vpack.c.b16 %v4612, %v4609
    %v4970 = vpack.c.b16 %v4613, %v4610
    %v4971 = vpack.c.b16 %v4617, %v4614
    %v4972 = vpack.c.b16 %v4618, %v4615
    %v4973 = vpack.c.b16 %v4619, %v4616
    %v4974 = vpack.c.b16 %v4623, %v4620
    %v4975 = vpack.c.b16 %v4624, %v4621
    %v4976 = vpack.c.b16 %v4625, %v4622
    %v4977 = vpack.c.b16 %v4629, %v4626
    %v4978 = vpack.c.b16 %v4630, %v4627
    %v4979 = vpack.c.b16 %v4631, %v4628
    %v4980 = vpack.c.b16 %v4635, %v4632
    %v4981 = vpack.c.b16 %v4636, %v4633
    %v4982 = vpack.c.b16 %v4637, %v4634
    %v4983 = vpack.c.b16 %v4641, %v4638
    %v4984 = vpack.c.b16 %v4642, %v4639
    %v4985 = vpack.c.b16 %v4643, %v4640
    %v4986 = vpack.c.b16 %v4647, %v4644
    %v4987 = vpack.c.b16 %v4648, %v4645
    %v4988 = vpack.c.b16 %v4649, %v4646
    %v4989 = vpack.c.b16 %v4653, %v4650
    %v4990 = vpack.c.b16 %v4654, %v4651
    %v4991 = vpack.c.b16 %v4655, %v4652
    %v4992 = vpack.c.b16 %v4659, %v4656
    %v4993 = vpack.c.b16 %v4660, %v4657
    %v4994 = vpack.c.b16 %v4661, %v4658
    %v4995 = vpack.c.b16 %v4665, %v4662
    %v4996 = vpack.c.b16 %v4666, %v4663
    %v4997 = vpack.c.b16 %v4667, %v4664
    %v4998 = vpack.c.b16 %v4671, %v4668
    %v4999 = vpack.c.b16 %v4672, %v4669
    %v5000 = vpack.c.b16 %v4673, %v4670
    %v5001 = vpack.c.b16 %v4677, %v4674
    %v5002 = vpack.c.b16 %v4678, %v4675
    %v5003 = vpack.c.b16 %v4679, %v4676
    %v5004 = vpack.c.b16 %v4683, %v4680
    %v5005 = vpack.c.b16 %v4684, %v4681
    %v5006 = vpack.c.b16 %v4685, %v4682
    %v5007 = vpack.c.b16 %v4689, %v4686
    %v5008 = vpack.c.b16 %v4690, %v4687
    %v5009 = vpack.c.b16 %v4691, %v4688
    %v5010 = vpack.c.b16 %v4695, %v4692
    %v5011 = vpack.c.b16 %v4696, %v4693
    %v5012 = vpack.c.b16 %v4697, %v4694
    %v5013 = vpack.c.b16 %v4701, %v4698
    %v5014 = vpack.c.b16 %v4702, %v4699
    %v5015 = vpack.c.b16 %v4703, %v4700
    %v5016 = vpack.c.b16 %v4707, %v4704
    %v5017 = vpack.c.b16 %v4708, %v4705
    %v5018 = vpack.c.b16 %v4709, %v4706
    %v5019 = vpack.c.b16 %v4713, %v4710
    %v5020 = vpack.c.b16 %v4714, %v4711
    %v5021 = vpack.c.b16 %v4715, %v4712
    %v5022 = vpack.c.b16 %v4719, %v4716
    %v5023 = vpack.c.b16 %v4720, %v4717
    %v5024 = vpack.c.b16 %v4721, %v4718
    %v5025 = vpack.c.b16 %v4725, %v4722
    %v5026 = vpack.c.b16 %v4726, %v4723
    %v5027 = vpack.c.b16 %v4727, %v4724
    %v5028 = vpack.c.b16 %v4731, %v4728
    %v5029 = vpack.c.b16 %v4732, %v4729
    %v5030 = vpack.c.b16 %v4733, %v4730
    %v5031 = vpack.c.b16 %v4737, %v4734
    %v5032 = vpack.c.b16 %v4738, %v4735
    %v5033 = vpack.c.b16 %v4739, %v4736
    %v5034 = vpack.c.b16 %v4743, %v4740
    %v5035 = vpack.c.b16 %v4744, %v4741
    %v5036 = vpack.c.b16 %v4745, %v4742
    %v5037 = vpack.c.b16 %v4749, %v4746
    %v5038 = vpack.c.b16 %v4750, %v4747
    %v5039 = vpack.c.b16 %v4751, %v4748
    %v5040 = vpack.c.b16 %v4755, %v4752
    %v5041 = vpack.c.b16 %v4756, %v4753
    %v5042 = vpack.c.b16 %v4757, %v4754
    %v5043 = vpack.c.b16 %v4761, %v4758
    %v5044 = vpack.c.b16 %v4762, %v4759
    %v5045 = vpack.c.b16 %v4763, %v4760
    %v5046 = vpack.c.b16 %v4767, %v4764
    %v5047 = vpack.c.b16 %v4768, %v4765
    %v5048 = vpack.c.b16 %v4769, %v4766
    %v5049 = vpack.c.b16 %v4773, %v4770
    %v5050 = vpack.c.b16 %v4774, %v4771
    %v5051 = vpack.c.b16 %v4775, %v4772
    %v5052 = vpack.c.b16 %v4779, %v4776
    %v5053 = vpack.c.b16 %v4780, %v4777
    %v5054 = vpack.c.b16 %v4781, %v4778
    %v5055 = vpack.c.b16 %v4785, %v4782
    %v5056 = vpack.c.b16 %v4786, %v4783
    %v5057 = vpack.c.b16 %v4787, %v4784
    %v5058 = vpack.c.b16 %v4791, %v4788
    %v5059 = vpack.c.b16 %v4792, %v4789
    %v5060 = vpack.c.b16 %v4793, %v4790
    %v5061 = vpack.c.b16 %v4797, %v4794
    %v5062 = vpack.c.b16 %v4798, %v4795
    %v5063 = vpack.c.b16 %v4799, %v4796
    %v5064 = vpack.c.b16 %v4803, %v4800
    %v5065 = vpack.c.b16 %v4804, %v4801
    %v5066 = vpack.c.b16 %v4805, %v4802
    %v5067 = vpack.c.b16 %v4809, %v4806
    %v5068 = vpack.c.b16 %v4810, %v4807
    %v5069 = vpack.c.b16 %v4811, %v4808
    %v5070 = vpack.c.b16 %v4815, %v4812
    %v5071 = vpack.c.b16 %v4816, %v4813
    %v5072 = vpack.c.b16 %v4817, %v4814
    %v5073 = vpack.c.b16 %v4821, %v4818
    %v5074 = vpack.c.b16 %v4822, %v4819
    %v5075 = vpack.c.b16 %v4823, %v4820
    %v5076 = vpack.c.b16 %v4827, %v4824
    %v5077 = vpack.c.b16 %v4828, %v4825
    %v5078 = vpack.c.b16 %v4829, %v4826
    %v5079 = vpack.c.b16 %v4833, %v4830
    %v5080 = vpack.c.b16 %v4834, %v4831
    %v5081 = vpack.c.b16 %v4835, %v4832
    %v5082 = vpack.c.b16 %v4839, %v4836
    %v5083 = vpack.c.b16 %v4840, %v4837
    %v5084 = vpack.c.b16 %v4841, %v4838
    %v5085 = vpack.c.b16 %v4845, %v4842
    %v5086 = vpack.c.b16 %v4846, %v4843
    %v5087 = vpack.c.b16 %v4847, %v4844
    %5328 = vmatpush.bf16.msra.mxu0 %v4869
    %5329 = vmatpush.bf16.msra.mxu0 %v4866
    %5330 = vmatpush.bf16.msra.mxu0 %v4863
    %5331 = vmatpush.bf16.msra.mxu0 %v4860
    %5332 = vmatpush.bf16.msra.mxu0 %v4857
    %5333 = vmatpush.bf16.msra.mxu0 %v4854
    %5334 = vmatpush.bf16.msra.mxu0 %v4851
    %5335 = vmatpush.bf16.msra.mxu0 %v4848
    %5336 = vmatmul.bf16.gmra.mxu0 %v3710
    %v5337 = vpop.f32.mrf.mxu0
    %v5338 = vadd.f32 %v4042, %v5337
    %v5339 = vpop.f32.mrf.mxu0
    %v5340 = vadd.f32 %v4042, %v5339
    %5341 = vdwg.mxu0
    %5342 = vmatpush.bf16.msra.mxu0 %v4893
    %5343 = vmatpush.bf16.msra.mxu0 %v4890
    %5344 = vmatpush.bf16.msra.mxu0 %v4887
    %5345 = vmatpush.bf16.msra.mxu0 %v4884
    %5346 = vmatpush.bf16.msra.mxu0 %v4881
    %5347 = vmatpush.bf16.msra.mxu0 %v4878
    %5348 = vmatpush.bf16.msra.mxu0 %v4875
    %5349 = vmatpush.bf16.msra.mxu0 %v4872
    %5350 = vmatmul.bf16.gmra.mxu0 %v3711
    %v5351 = vpop.f32.mrf.mxu0
    %v5352 = vadd.f32 %v5338, %v5351
    %v5353 = vpop.f32.mrf.mxu0
    %v5354 = vadd.f32 %v5340, %v5353
    %5355 = vdwg.mxu0
    %5356 = vmatpush.bf16.msra.mxu0 %v4917
    %5357 = vmatpush.bf16.msra.mxu0 %v4914
    %5358 = vmatpush.bf16.msra.mxu0 %v4911
    %5359 = vmatpush.bf16.msra.mxu0 %v4908
    %5360 = vmatpush.bf16.msra.mxu0 %v4905
    %5361 = vmatpush.bf16.msra.mxu0 %v4902
    %5362 = vmatpush.bf16.msra.mxu0 %v4899
    %5363 = vmatpush.bf16.msra.mxu0 %v4896
    %5364 = vmatmul.bf16.gmra.mxu0 %v3712
    %v5365 = vpop.f32.mrf.mxu0
    %v5366 = vadd.f32 %v5352, %v5365
    %v5367 = vpop.f32.mrf.mxu0
    %v5368 = vadd.f32 %v5354, %v5367
    %5369 = vdwg.mxu0
    %5370 = vmatpush.bf16.msra.mxu0 %v4941
    %5371 = vmatpush.bf16.msra.mxu0 %v4938
    %5372 = vmatpush.bf16.msra.mxu0 %v4935
    %5373 = vmatpush.bf16.msra.mxu0 %v4932
    %5374 = vmatpush.bf16.msra.mxu0 %v4929
    %5375 = vmatpush.bf16.msra.mxu0 %v4926
    %5376 = vmatpush.bf16.msra.mxu0 %v4923
    %5377 = vmatpush.bf16.msra.mxu0 %v4920
    %5378 = vmatmul.bf16.gmra.mxu0 %v3713
    %v5379 = vpop.f32.mrf.mxu0
    %v5380 = vadd.f32 %v5366, %v5379
    %v5381 = vpop.f32.mrf.mxu0
    %v5382 = vadd.f32 %v5368, %v5381
    %5383 = vdwg.mxu0
    %5384 = vmatpush.bf16.msra.mxu0 %v4965
    %5385 = vmatpush.bf16.msra.mxu0 %v4962
    %5386 = vmatpush.bf16.msra.mxu0 %v4959
    %5387 = vmatpush.bf16.msra.mxu0 %v4956
    %5388 = vmatpush.bf16.msra.mxu0 %v4953
    %5389 = vmatpush.bf16.msra.mxu0 %v4950
    %5390 = vmatpush.bf16.msra.mxu0 %v4947
    %5391 = vmatpush.bf16.msra.mxu0 %v4944
    %5392 = vmatmul.bf16.gmra.mxu0 %v3714
    %v5393 = vpop.f32.mrf.mxu0
    %v5394 = vadd.f32 %v5380, %v5393
    %v5395 = vpop.f32.mrf.mxu0
    %v5396 = vadd.f32 %v5382, %v5395
    %5397 = vdwg.mxu0
    %5398 = vmatpush.bf16.msra.mxu0 %v4989
    %5399 = vmatpush.bf16.msra.mxu0 %v4986
    %5400 = vmatpush.bf16.msra.mxu0 %v4983
    %5401 = vmatpush.bf16.msra.mxu0 %v4980
    %5402 = vmatpush.bf16.msra.mxu0 %v4977
    %5403 = vmatpush.bf16.msra.mxu0 %v4974
    %5404 = vmatpush.bf16.msra.mxu0 %v4971
    %5405 = vmatpush.bf16.msra.mxu0 %v4968
    %5406 = vmatmul.bf16.gmra.mxu0 %v3715
    %v5407 = vpop.f32.mrf.mxu0
    %v5408 = vadd.f32 %v5394, %v5407
    %v5409 = vpop.f32.mrf.mxu0
    %v5410 = vadd.f32 %v5396, %v5409
    %5411 = vdwg.mxu0
    %5412 = vmatpush.bf16.msra.mxu0 %v5013
    %5413 = vmatpush.bf16.msra.mxu0 %v5010
    %5414 = vmatpush.bf16.msra.mxu0 %v5007
    %5415 = vmatpush.bf16.msra.mxu0 %v5004
    %5416 = vmatpush.bf16.msra.mxu0 %v5001
    %5417 = vmatpush.bf16.msra.mxu0 %v4998
    %5418 = vmatpush.bf16.msra.mxu0 %v4995
    %5419 = vmatpush.bf16.msra.mxu0 %v4992
    %5420 = vmatmul.bf16.gmra.mxu0 %v3716
    %v5421 = vpop.f32.mrf.mxu0
    %v5422 = vadd.f32 %v5408, %v5421
    %v5423 = vpop.f32.mrf.mxu0
    %v5424 = vadd.f32 %v5410, %v5423
    %5425 = vdwg.mxu0
    %5426 = vmatpush.bf16.msra.mxu0 %v5037
    %5427 = vmatpush.bf16.msra.mxu0 %v5034
    %5428 = vmatpush.bf16.msra.mxu0 %v5031
    %5429 = vmatpush.bf16.msra.mxu0 %v5028
    %5430 = vmatpush.bf16.msra.mxu0 %v5025
    %5431 = vmatpush.bf16.msra.mxu0 %v5022
    %5432 = vmatpush.bf16.msra.mxu0 %v5019
    %5433 = vmatpush.bf16.msra.mxu0 %v5016
    %5434 = vmatmul.bf16.gmra.mxu0 %v3717
    %v5435 = vpop.f32.mrf.mxu0
    %v5436 = vadd.f32 %v5422, %v5435
    %v5437 = vpop.f32.mrf.mxu0
    %v5438 = vadd.f32 %v5424, %v5437
    %5439 = vdwg.mxu0
    %5440 = vmatpush.bf16.msra.mxu0 %v5061
    %5441 = vmatpush.bf16.msra.mxu0 %v5058
    %5442 = vmatpush.bf16.msra.mxu0 %v5055
    %5443 = vmatpush.bf16.msra.mxu0 %v5052
    %5444 = vmatpush.bf16.msra.mxu0 %v5049
    %5445 = vmatpush.bf16.msra.mxu0 %v5046
    %5446 = vmatpush.bf16.msra.mxu0 %v5043
    %5447 = vmatpush.bf16.msra.mxu0 %v5040
    %5448 = vmatmul.bf16.gmra.mxu0 %v3718
    %v5449 = vpop.f32.mrf.mxu0
    %v5450 = vadd.f32 %v5436, %v5449
    %v5451 = vpop.f32.mrf.mxu0
    %v5452 = vadd.f32 %v5438, %v5451
    %5453 = vdwg.mxu0
    %5454 = vmatpush.bf16.msra.mxu0 %v5085
    %5455 = vmatpush.bf16.msra.mxu0 %v5082
    %5456 = vmatpush.bf16.msra.mxu0 %v5079
    %5457 = vmatpush.bf16.msra.mxu0 %v5076
    %5458 = vmatpush.bf16.msra.mxu0 %v5073
    %5459 = vmatpush.bf16.msra.mxu0 %v5070
    %5460 = vmatpush.bf16.msra.mxu0 %v5067
    %5461 = vmatpush.bf16.msra.mxu0 %v5064
    %5462 = vmatmul.bf16.gmra.mxu0 %v3719
    %v5463 = vpop.f32.mrf.mxu0
    %v5464 = vadd.f32 %v5450, %v5463
    %v5465 = vpop.f32.mrf.mxu0
    %v5466 = vadd.f32 %v5452, %v5465
    %5467 = vdwg.mxu0
    %5468 = vmatpush.bf16.msra.mxu0 %v4870
    %5469 = vmatpush.bf16.msra.mxu0 %v4867
    %5470 = vmatpush.bf16.msra.mxu0 %v4864
    %5471 = vmatpush.bf16.msra.mxu0 %v4861
    %5472 = vmatpush.bf16.msra.mxu0 %v4858
    %5473 = vmatpush.bf16.msra.mxu0 %v4855
    %5474 = vmatpush.bf16.msra.mxu0 %v4852
    %5475 = vmatpush.bf16.msra.mxu0 %v4849
    %5476 = vmatmul.bf16.gmra.mxu0 %v3710
    %v5477 = vpop.f32.mrf.mxu0
    %v5478 = vadd.f32 %v4043, %v5477
    %v5479 = vpop.f32.mrf.mxu0
    %v5480 = vadd.f32 %v4043, %v5479
    %5481 = vdwg.mxu0
    %5482 = vmatpush.bf16.msra.mxu0 %v4894
    %5483 = vmatpush.bf16.msra.mxu0 %v4891
    %5484 = vmatpush.bf16.msra.mxu0 %v4888
    %5485 = vmatpush.bf16.msra.mxu0 %v4885
    %5486 = vmatpush.bf16.msra.mxu0 %v4882
    %5487 = vmatpush.bf16.msra.mxu0 %v4879
    %5488 = vmatpush.bf16.msra.mxu0 %v4876
    %5489 = vmatpush.bf16.msra.mxu0 %v4873
    %5490 = vmatmul.bf16.gmra.mxu0 %v3711
    %v5491 = vpop.f32.mrf.mxu0
    %v5492 = vadd.f32 %v5478, %v5491
    %v5493 = vpop.f32.mrf.mxu0
    %v5494 = vadd.f32 %v5480, %v5493
    %5495 = vdwg.mxu0
    %5496 = vmatpush.bf16.msra.mxu0 %v4918
    %5497 = vmatpush.bf16.msra.mxu0 %v4915
    %5498 = vmatpush.bf16.msra.mxu0 %v4912
    %5499 = vmatpush.bf16.msra.mxu0 %v4909
    %5500 = vmatpush.bf16.msra.mxu0 %v4906
    %5501 = vmatpush.bf16.msra.mxu0 %v4903
    %5502 = vmatpush.bf16.msra.mxu0 %v4900
    %5503 = vmatpush.bf16.msra.mxu0 %v4897
    %5504 = vmatmul.bf16.gmra.mxu0 %v3712
    %v5505 = vpop.f32.mrf.mxu0
    %v5506 = vadd.f32 %v5492, %v5505
    %v5507 = vpop.f32.mrf.mxu0
    %v5508 = vadd.f32 %v5494, %v5507
    %5509 = vdwg.mxu0
    %5510 = vmatpush.bf16.msra.mxu0 %v4942
    %5511 = vmatpush.bf16.msra.mxu0 %v4939
    %5512 = vmatpush.bf16.msra.mxu0 %v4936
    %5513 = vmatpush.bf16.msra.mxu0 %v4933
    %5514 = vmatpush.bf16.msra.mxu0 %v4930
    %5515 = vmatpush.bf16.msra.mxu0 %v4927
    %5516 = vmatpush.bf16.msra.mxu0 %v4924
    %5517 = vmatpush.bf16.msra.mxu0 %v4921
    %5518 = vmatmul.bf16.gmra.mxu0 %v3713
    %v5519 = vpop.f32.mrf.mxu0
    %v5520 = vadd.f32 %v5506, %v5519
    %v5521 = vpop.f32.mrf.mxu0
    %v5522 = vadd.f32 %v5508, %v5521
    %5523 = vdwg.mxu0
    %5524 = vmatpush.bf16.msra.mxu0 %v4966
    %5525 = vmatpush.bf16.msra.mxu0 %v4963
    %5526 = vmatpush.bf16.msra.mxu0 %v4960
    %5527 = vmatpush.bf16.msra.mxu0 %v4957
    %5528 = vmatpush.bf16.msra.mxu0 %v4954
    %5529 = vmatpush.bf16.msra.mxu0 %v4951
    %5530 = vmatpush.bf16.msra.mxu0 %v4948
    %5531 = vmatpush.bf16.msra.mxu0 %v4945
    %5532 = vmatmul.bf16.gmra.mxu0 %v3714
    %v5533 = vpop.f32.mrf.mxu0
    %v5534 = vadd.f32 %v5520, %v5533
    %v5535 = vpop.f32.mrf.mxu0
    %v5536 = vadd.f32 %v5522, %v5535
    %5537 = vdwg.mxu0
    %5538 = vmatpush.bf16.msra.mxu0 %v4990
    %5539 = vmatpush.bf16.msra.mxu0 %v4987
    %5540 = vmatpush.bf16.msra.mxu0 %v4984
    %5541 = vmatpush.bf16.msra.mxu0 %v4981
    %5542 = vmatpush.bf16.msra.mxu0 %v4978
    %5543 = vmatpush.bf16.msra.mxu0 %v4975
    %5544 = vmatpush.bf16.msra.mxu0 %v4972
    %5545 = vmatpush.bf16.msra.mxu0 %v4969
    %5546 = vmatmul.bf16.gmra.mxu0 %v3715
    %v5547 = vpop.f32.mrf.mxu0
    %v5548 = vadd.f32 %v5534, %v5547
    %v5549 = vpop.f32.mrf.mxu0
    %v5550 = vadd.f32 %v5536, %v5549
    %5551 = vdwg.mxu0
    %5552 = vmatpush.bf16.msra.mxu0 %v5014
    %5553 = vmatpush.bf16.msra.mxu0 %v5011
    %5554 = vmatpush.bf16.msra.mxu0 %v5008
    %5555 = vmatpush.bf16.msra.mxu0 %v5005
    %5556 = vmatpush.bf16.msra.mxu0 %v5002
    %5557 = vmatpush.bf16.msra.mxu0 %v4999
    %5558 = vmatpush.bf16.msra.mxu0 %v4996
    %5559 = vmatpush.bf16.msra.mxu0 %v4993
    %5560 = vmatmul.bf16.gmra.mxu0 %v3716
    %v5561 = vpop.f32.mrf.mxu0
    %v5562 = vadd.f32 %v5548, %v5561
    %v5563 = vpop.f32.mrf.mxu0
    %v5564 = vadd.f32 %v5550, %v5563
    %5565 = vdwg.mxu0
    %5566 = vmatpush.bf16.msra.mxu0 %v5038
    %5567 = vmatpush.bf16.msra.mxu0 %v5035
    %5568 = vmatpush.bf16.msra.mxu0 %v5032
    %5569 = vmatpush.bf16.msra.mxu0 %v5029
    %5570 = vmatpush.bf16.msra.mxu0 %v5026
    %5571 = vmatpush.bf16.msra.mxu0 %v5023
    %5572 = vmatpush.bf16.msra.mxu0 %v5020
    %5573 = vmatpush.bf16.msra.mxu0 %v5017
    %5574 = vmatmul.bf16.gmra.mxu0 %v3717
    %v5575 = vpop.f32.mrf.mxu0
    %v5576 = vadd.f32 %v5562, %v5575
    %v5577 = vpop.f32.mrf.mxu0
    %v5578 = vadd.f32 %v5564, %v5577
    %5579 = vdwg.mxu0
    %5580 = vmatpush.bf16.msra.mxu0 %v5062
    %5581 = vmatpush.bf16.msra.mxu0 %v5059
    %5582 = vmatpush.bf16.msra.mxu0 %v5056
    %5583 = vmatpush.bf16.msra.mxu0 %v5053
    %5584 = vmatpush.bf16.msra.mxu0 %v5050
    %5585 = vmatpush.bf16.msra.mxu0 %v5047
    %5586 = vmatpush.bf16.msra.mxu0 %v5044
    %5587 = vmatpush.bf16.msra.mxu0 %v5041
    %5588 = vmatmul.bf16.gmra.mxu0 %v3718
    %v5589 = vpop.f32.mrf.mxu0
    %v5590 = vadd.f32 %v5576, %v5589
    %v5591 = vpop.f32.mrf.mxu0
    %v5592 = vadd.f32 %v5578, %v5591
    %5593 = vdwg.mxu0
    %5594 = vmatpush.bf16.msra.mxu0 %v5086
    %5595 = vmatpush.bf16.msra.mxu0 %v5083
    %5596 = vmatpush.bf16.msra.mxu0 %v5080
    %5597 = vmatpush.bf16.msra.mxu0 %v5077
    %5598 = vmatpush.bf16.msra.mxu0 %v5074
    %5599 = vmatpush.bf16.msra.mxu0 %v5071
    %5600 = vmatpush.bf16.msra.mxu0 %v5068
    %5601 = vmatpush.bf16.msra.mxu0 %v5065
    %5602 = vmatmul.bf16.gmra.mxu0 %v3719
    %v5603 = vpop.f32.mrf.mxu0
    %v5604 = vadd.f32 %v5590, %v5603
    %v5605 = vpop.f32.mrf.mxu0
    %v5606 = vadd.f32 %v5592, %v5605
    %5607 = vdwg.mxu0
    %5608 = vmatpush.bf16.msra.mxu0 %v4871
    %5609 = vmatpush.bf16.msra.mxu0 %v4868
    %5610 = vmatpush.bf16.msra.mxu0 %v4865
    %5611 = vmatpush.bf16.msra.mxu0 %v4862
    %5612 = vmatpush.bf16.msra.mxu0 %v4859
    %5613 = vmatpush.bf16.msra.mxu0 %v4856
    %5614 = vmatpush.bf16.msra.mxu0 %v4853
    %5615 = vmatpush.bf16.msra.mxu0 %v4850
    %5616 = vmatmul.bf16.gmra.mxu0 %v3710
    %v5617 = vpop.f32.mrf.mxu0
    %v5618 = vadd.f32 %v4044, %v5617
    %v5619 = vpop.f32.mrf.mxu0
    %v5620 = vadd.f32 %v4044, %v5619
    %5621 = vdwg.mxu0
    %5622 = vmatpush.bf16.msra.mxu0 %v4895
    %5623 = vmatpush.bf16.msra.mxu0 %v4892
    %5624 = vmatpush.bf16.msra.mxu0 %v4889
    %5625 = vmatpush.bf16.msra.mxu0 %v4886
    %5626 = vmatpush.bf16.msra.mxu0 %v4883
    %5627 = vmatpush.bf16.msra.mxu0 %v4880
    %5628 = vmatpush.bf16.msra.mxu0 %v4877
    %5629 = vmatpush.bf16.msra.mxu0 %v4874
    %5630 = vmatmul.bf16.gmra.mxu0 %v3711
    %v5631 = vpop.f32.mrf.mxu0
    %v5632 = vadd.f32 %v5618, %v5631
    %v5633 = vpop.f32.mrf.mxu0
    %v5634 = vadd.f32 %v5620, %v5633
    %5635 = vdwg.mxu0
    %5636 = vmatpush.bf16.msra.mxu0 %v4919
    %5637 = vmatpush.bf16.msra.mxu0 %v4916
    %5638 = vmatpush.bf16.msra.mxu0 %v4913
    %5639 = vmatpush.bf16.msra.mxu0 %v4910
    %5640 = vmatpush.bf16.msra.mxu0 %v4907
    %5641 = vmatpush.bf16.msra.mxu0 %v4904
    %5642 = vmatpush.bf16.msra.mxu0 %v4901
    %5643 = vmatpush.bf16.msra.mxu0 %v4898
    %5644 = vmatmul.bf16.gmra.mxu0 %v3712
    %v5645 = vpop.f32.mrf.mxu0
    %v5646 = vadd.f32 %v5632, %v5645
    %v5647 = vpop.f32.mrf.mxu0
    %v5648 = vadd.f32 %v5634, %v5647
    %5649 = vdwg.mxu0
    %5650 = vmatpush.bf16.msra.mxu0 %v4943
    %5651 = vmatpush.bf16.msra.mxu0 %v4940
    %5652 = vmatpush.bf16.msra.mxu0 %v4937
    %5653 = vmatpush.bf16.msra.mxu0 %v4934
    %5654 = vmatpush.bf16.msra.mxu0 %v4931
    %5655 = vmatpush.bf16.msra.mxu0 %v4928
    %5656 = vmatpush.bf16.msra.mxu0 %v4925
    %5657 = vmatpush.bf16.msra.mxu0 %v4922
    %5658 = vmatmul.bf16.gmra.mxu0 %v3713
    %v5659 = vpop.f32.mrf.mxu0
    %v5660 = vadd.f32 %v5646, %v5659
    %v5661 = vpop.f32.mrf.mxu0
    %v5662 = vadd.f32 %v5648, %v5661
    %5663 = vdwg.mxu0
    %5664 = vmatpush.bf16.msra.mxu0 %v4967
    %5665 = vmatpush.bf16.msra.mxu0 %v4964
    %5666 = vmatpush.bf16.msra.mxu0 %v4961
    %5667 = vmatpush.bf16.msra.mxu0 %v4958
    %5668 = vmatpush.bf16.msra.mxu0 %v4955
    %5669 = vmatpush.bf16.msra.mxu0 %v4952
    %5670 = vmatpush.bf16.msra.mxu0 %v4949
    %5671 = vmatpush.bf16.msra.mxu0 %v4946
    %5672 = vmatmul.bf16.gmra.mxu0 %v3714
    %v5673 = vpop.f32.mrf.mxu0
    %v5674 = vadd.f32 %v5660, %v5673
    %v5675 = vpop.f32.mrf.mxu0
    %v5676 = vadd.f32 %v5662, %v5675
    %5677 = vdwg.mxu0
    %5678 = vmatpush.bf16.msra.mxu0 %v4991
    %5679 = vmatpush.bf16.msra.mxu0 %v4988
    %5680 = vmatpush.bf16.msra.mxu0 %v4985
    %5681 = vmatpush.bf16.msra.mxu0 %v4982
    %5682 = vmatpush.bf16.msra.mxu0 %v4979
    %5683 = vmatpush.bf16.msra.mxu0 %v4976
    %5684 = vmatpush.bf16.msra.mxu0 %v4973
    %5685 = vmatpush.bf16.msra.mxu0 %v4970
    %5686 = vmatmul.bf16.gmra.mxu0 %v3715
    %v5687 = vpop.f32.mrf.mxu0
    %v5688 = vadd.f32 %v5674, %v5687
    %v5689 = vpop.f32.mrf.mxu0
    %v5690 = vadd.f32 %v5676, %v5689
    %5691 = vdwg.mxu0
    %5692 = vmatpush.bf16.msra.mxu0 %v5015
    %5693 = vmatpush.bf16.msra.mxu0 %v5012
    %5694 = vmatpush.bf16.msra.mxu0 %v5009
    %5695 = vmatpush.bf16.msra.mxu0 %v5006
    %5696 = vmatpush.bf16.msra.mxu0 %v5003
    %5697 = vmatpush.bf16.msra.mxu0 %v5000
    %5698 = vmatpush.bf16.msra.mxu0 %v4997
    %5699 = vmatpush.bf16.msra.mxu0 %v4994
    %5700 = vmatmul.bf16.gmra.mxu0 %v3716
    %v5701 = vpop.f32.mrf.mxu0
    %v5702 = vadd.f32 %v5688, %v5701
    %v5703 = vpop.f32.mrf.mxu0
    %v5704 = vadd.f32 %v5690, %v5703
    %5705 = vdwg.mxu0
    %5706 = vmatpush.bf16.msra.mxu0 %v5039
    %5707 = vmatpush.bf16.msra.mxu0 %v5036
    %5708 = vmatpush.bf16.msra.mxu0 %v5033
    %5709 = vmatpush.bf16.msra.mxu0 %v5030
    %5710 = vmatpush.bf16.msra.mxu0 %v5027
    %5711 = vmatpush.bf16.msra.mxu0 %v5024
    %5712 = vmatpush.bf16.msra.mxu0 %v5021
    %5713 = vmatpush.bf16.msra.mxu0 %v5018
    %5714 = vmatmul.bf16.gmra.mxu0 %v3717
    %v5715 = vpop.f32.mrf.mxu0
    %v5716 = vadd.f32 %v5702, %v5715
    %v5717 = vpop.f32.mrf.mxu0
    %v5718 = vadd.f32 %v5704, %v5717
    %5719 = vdwg.mxu0
    %5720 = vmatpush.bf16.msra.mxu0 %v5063
    %5721 = vmatpush.bf16.msra.mxu0 %v5060
    %5722 = vmatpush.bf16.msra.mxu0 %v5057
    %5723 = vmatpush.bf16.msra.mxu0 %v5054
    %5724 = vmatpush.bf16.msra.mxu0 %v5051
    %5725 = vmatpush.bf16.msra.mxu0 %v5048
    %5726 = vmatpush.bf16.msra.mxu0 %v5045
    %5727 = vmatpush.bf16.msra.mxu0 %v5042
    %5728 = vmatmul.bf16.gmra.mxu0 %v3718
    %v5729 = vpop.f32.mrf.mxu0
    %v5730 = vadd.f32 %v5716, %v5729
    %v5731 = vpop.f32.mrf.mxu0
    %v5732 = vadd.f32 %v5718, %v5731
    %5733 = vdwg.mxu0
    %5734 = vmatpush.bf16.msra.mxu0 %v5087
    %5735 = vmatpush.bf16.msra.mxu0 %v5084
    %5736 = vmatpush.bf16.msra.mxu0 %v5081
    %5737 = vmatpush.bf16.msra.mxu0 %v5078
    %5738 = vmatpush.bf16.msra.mxu0 %v5075
    %5739 = vmatpush.bf16.msra.mxu0 %v5072
    %5740 = vmatpush.bf16.msra.mxu0 %v5069
    %5741 = vmatpush.bf16.msra.mxu0 %v5066
    %5742 = vmatmul.bf16.gmra.mxu0 %v3719
    %v5743 = vpop.f32.mrf.mxu0
    %v5744 = vadd.f32 %v5730, %v5743
    %v5745 = vpop.f32.mrf.mxu0
    %v5746 = vadd.f32 %v5732, %v5745
    %5747 = vdwg.mxu0
    %v5748 = vld [vmem:[%s14] sm:$0x7]
    %v5749 = vld [vmem:[%s15] sm:$0x7]
    %v5750 = vadd.f32 %v5464, %v5604
    %v5751 = vsel %vm899, %v5744, 0.0
    %v5752 = vadd.f32 %v5750, %v5751
    %5753 = vadd.xlane.f32.xlu0 %v5752
    %v5754 = vpop.xlane.xlu0 %5753
    %v5755 = vadd.f32 %v5466, %v5606
    %v5756 = vsel %vm899, %v5746, 0.0
    %v5757 = vadd.f32 %v5755, %v5756
    %5758 = vadd.xlane.f32.xlu0 %v5757
    %v5759 = vpop.xlane.xlu0 %5758
    %v5760 = vmul.f32 %v5754, %v1047
    %v5761 = vmul.f32 %v5759, %v1047
    %v5762 = vsub.f32 %v5464, %v5760
    %v5763 = vsub.f32 %v5604, %v5760
    %v5764 = vsub.f32 %v5744, %v5760
    %v5765 = vsub.f32 %v5466, %v5761
    %v5766 = vsub.f32 %v5606, %v5761
    %v5767 = vsub.f32 %v5746, %v5761
    %v5768 = vmul.f32 %v5762, %v5762
    %v5769 = vmul.f32 %v5763, %v5763
    %v5770 = vmul.f32 %v5764, %v5764
    %v5771 = vmul.f32 %v5765, %v5765
    %v5772 = vmul.f32 %v5766, %v5766
    %v5773 = vmul.f32 %v5767, %v5767
    %v5774 = vadd.f32 %v5768, %v5769
    %v5775 = vsel %vm899, %v5770, 0.0
    %v5776 = vadd.f32 %v5774, %v5775
    %5777 = vadd.xlane.f32.xlu0 %v5776
    %v5778 = vpop.xlane.xlu0 %5777
    %v5779 = vadd.f32 %v5771, %v5772
    %v5780 = vsel %vm899, %v5773, 0.0
    %v5781 = vadd.f32 %v5779, %v5780
    %5782 = vadd.xlane.f32.xlu0 %v5781
    %v5783 = vpop.xlane.xlu0 %5782
    %v5784 = vmul.f32 %v5778, %v1047
    %v5785 = vmul.f32 %v5783, %v1047
    %v5786 = vadd.f32 %v5784, 1e-05
    %v5787 = vadd.f32 %v5785, 1e-05
    %v5788 = vrsqrt.pop %v5786
    %v5789 = vmul.f32 %v5788, %v5786
    %v5790 = vmul.f32 %v5789, %v5788
    %v5791 = vmul.f32 0.5, %v5790
    %v5792 = vsub.f32 1.5, %v5791
    %v5793 = vmul.f32 %v5788, %v5792
    %vm5794 = vweird.f32 %v5786
    %vm5795 = vweird.f32 %v5788
    %vm5796 = vmor %vm5794, %vm5795
    %v5797 = vsel %vm5796, %v5788, %v5793
    %v5798 = vrsqrt.pop %v5787
    %v5799 = vmul.f32 %v5798, %v5787
    %v5800 = vmul.f32 %v5799, %v5798
    %v5801 = vmul.f32 0.5, %v5800
    %v5802 = vsub.f32 1.5, %v5801
    %v5803 = vmul.f32 %v5798, %v5802
    %vm5804 = vweird.f32 %v5787
    %vm5805 = vweird.f32 %v5798
    %vm5806 = vmor %vm5804, %vm5805
    %v5807 = vsel %vm5806, %v5798, %v5803
    %v5808 = vmul.f32 %v5762, %v5797
    %v5809 = vmul.f32 %v5763, %v5797
    %v5810 = vmul.f32 %v5764, %v5797
    %v5811 = vmul.f32 %v5765, %v5807
    %v5812 = vmul.f32 %v5766, %v5807
    %v5813 = vmul.f32 %v5767, %v5807
    %v5815 = vperm.slane %v5748, 0
    %v5816 = vperm.slane %v5748, 1
    %v5817 = vperm.slane %v5748, 2
    %v5821 = vmul.f32 %v5808, %v5815
    %v5822 = vmul.f32 %v5809, %v5816
    %v5823 = vmul.f32 %v5810, %v5817
    %v5824 = vmul.f32 %v5811, %v5815
    %v5825 = vmul.f32 %v5812, %v5816
    %v5826 = vmul.f32 %v5813, %v5817
    %v5828 = vperm.slane %v5749, 0
    %v5829 = vperm.slane %v5749, 1
    %v5830 = vperm.slane %v5749, 2
    %v5834 = vadd.f32 %v5821, %v5828
    %v5835 = vadd.f32 %v5822, %v5829
    %v5836 = vadd.f32 %v5823, %v5830
    %v5837 = vadd.f32 %v5824, %v5828
    %v5838 = vadd.f32 %v5825, %v5829
    %v5839 = vadd.f32 %v5826, %v5830
    %v5840 = vmul.f32 %v5834, %v5834
    %v5841 = vmul.f32 %v5835, %v5835
    %v5842 = vmul.f32 %v5836, %v5836
    %v5843 = vmul.f32 %v5837, %v5837
    %v5844 = vmul.f32 %v5838, %v5838
    %v5845 = vmul.f32 %v5839, %v5839
    %v5846 = vpack.c.bf16 %v5843, %v5840
    %v5847 = vpack.c.bf16 %v5844, %v5841
    %v5848 = vpack.c.bf16 %v5845, %v5842
    %v5849 = vld [vmem:[%s16] sm:$0xf]
    %v5850 = vld [vmem:[%s16 + $0x4] sm:$0xf]
    %v5851 = vld [vmem:[%s16 + $0x8] sm:$0xf]
    %v5852 = vld [vmem:[%s16 + $0xc] sm:$0xf]
    %v5853 = vld [vmem:[%s16 + $0x10] sm:$0xf]
    %v5854 = vld [vmem:[%s16 + $0x14] sm:$0xf]
    %v5855 = vld [vmem:[%s16 + $0x18] sm:$0xf]
    %v5856 = vld [vmem:[%s16 + $0x1c] sm:$0xf]
    %v5857 = vld [vmem:[%s16 + $0x20] sm:$0xf]
    %v5858 = vld [vmem:[%s16 + $0x24] sm:$0xf]
    %v5859 = vld [vmem:[%s16 + $0x28] sm:$0xf]
    %v5860 = vld [vmem:[%s16 + $0x2c] sm:$0xf]
    %v5861 = vld [vmem:[%s16 + $0x30] sm:$0xf]
    %v5862 = vld [vmem:[%s16 + $0x34] sm:$0xf]
    %v5863 = vld [vmem:[%s16 + $0x38] sm:$0xf]
    %v5864 = vld [vmem:[%s16 + $0x3c] sm:$0xf]
    %v5865 = vld [vmem:[%s16 + $0x40] sm:$0xf]
    %v5866 = vld [vmem:[%s16 + $0x44] sm:$0xf]
    %v5867 = vld [vmem:[%s16 + $0x48] sm:$0xf]
    %v5868 = vld [vmem:[%s16 + $0x4c] sm:$0xf]
    %v5869 = vld [vmem:[%s16 + $0x50] sm:$0xf]
    %v5870 = vld [vmem:[%s16 + $0x54] sm:$0xf]
    %v5871 = vld [vmem:[%s16 + $0x58] sm:$0xf]
    %v5872 = vld [vmem:[%s16 + $0x5c] sm:$0xf]
    %v5873 = vld [vmem:[%s16 + $0x60] sm:$0xf]
    %v5874 = vld [vmem:[%s16 + $0x64] sm:$0xf]
    %v5875 = vld [vmem:[%s16 + $0x68] sm:$0xf]
    %v5876 = vld [vmem:[%s16 + $0x6c] sm:$0xf]
    %v5877 = vld [vmem:[%s16 + $0x70] sm:$0xf]
    %v5878 = vld [vmem:[%s16 + $0x74] sm:$0xf]
    %v5879 = vld [vmem:[%s16 + $0x78] sm:$0xf]
    %v5880 = vld [vmem:[%s16 + $0x7c] sm:$0xf]
    %v5881 = vld [vmem:[%s16 + $0x80] sm:$0xf]
    %v5882 = vld [vmem:[%s16 + $0x84] sm:$0xf]
    %v5883 = vld [vmem:[%s16 + $0x88] sm:$0xf]
    %v5884 = vld [vmem:[%s16 + $0x8c] sm:$0xf]
    %v5885 = vld [vmem:[%s16 + $0x90] sm:$0xf]
    %v5886 = vld [vmem:[%s16 + $0x94] sm:$0xf]
    %v5887 = vld [vmem:[%s16 + $0x98] sm:$0xf]
    %v5888 = vld [vmem:[%s16 + $0x9c] sm:$0xf]
    %v5889 = vld [vmem:[%s17] sm:$0x1]
    %v5891 = vperm.slane %v5889, 0
    %v5933 = vunpack.c.l.b16 %v5849
    %v5934 = vunpack.c.l.b16 %v5850
    %v5935 = vunpack.c.l.b16 %v5851
    %v5936 = vunpack.c.l.b16 %v5852
    %v5937 = vunpack.c.l.b16 %v5853
    %v5938 = vunpack.c.l.b16 %v5854
    %v5939 = vunpack.c.l.b16 %v5855
    %v5940 = vunpack.c.l.b16 %v5856
    %v5941 = vunpack.c.l.b16 %v5857
    %v5942 = vunpack.c.l.b16 %v5858
    %v5943 = vunpack.c.l.b16 %v5859
    %v5944 = vunpack.c.l.b16 %v5860
    %v5945 = vunpack.c.l.b16 %v5861
    %v5946 = vunpack.c.l.b16 %v5862
    %v5947 = vunpack.c.l.b16 %v5863
    %v5948 = vunpack.c.l.b16 %v5864
    %v5949 = vunpack.c.l.b16 %v5865
    %v5950 = vunpack.c.l.b16 %v5866
    %v5951 = vunpack.c.l.b16 %v5867
    %v5952 = vunpack.c.l.b16 %v5868
    %v5953 = vunpack.c.l.b16 %v5869
    %v5954 = vunpack.c.l.b16 %v5870
    %v5955 = vunpack.c.l.b16 %v5871
    %v5956 = vunpack.c.l.b16 %v5872
    %v5957 = vunpack.c.l.b16 %v5873
    %v5958 = vunpack.c.l.b16 %v5874
    %v5959 = vunpack.c.l.b16 %v5875
    %v5960 = vunpack.c.l.b16 %v5876
    %v5961 = vunpack.c.l.b16 %v5877
    %v5962 = vunpack.c.l.b16 %v5878
    %v5963 = vunpack.c.l.b16 %v5879
    %v5964 = vunpack.c.l.b16 %v5880
    %v5965 = vunpack.c.l.b16 %v5881
    %v5966 = vunpack.c.l.b16 %v5882
    %v5967 = vunpack.c.l.b16 %v5883
    %v5968 = vunpack.c.l.b16 %v5884
    %v5969 = vunpack.c.l.b16 %v5885
    %v5970 = vunpack.c.l.b16 %v5886
    %v5971 = vunpack.c.l.b16 %v5887
    %v5972 = vunpack.c.l.b16 %v5888
    %v5973 = vpack.c.b16 %v5934, %v5933
    %v5974 = vpack.c.b16 %v5936, %v5935
    %v5975 = vpack.c.b16 %v5938, %v5937
    %v5976 = vpack.c.b16 %v5940, %v5939
    %v5977 = vpack.c.b16 %v5942, %v5941
    %v5978 = vpack.c.b16 %v5944, %v5943
    %v5979 = vpack.c.b16 %v5946, %v5945
    %v5980 = vpack.c.b16 %v5948, %v5947
    %v5981 = vpack.c.b16 %v5950, %v5949
    %v5982 = vpack.c.b16 %v5952, %v5951
    %v5983 = vpack.c.b16 %v5954, %v5953
    %v5984 = vpack.c.b16 %v5956, %v5955
    %v5985 = vpack.c.b16 %v5958, %v5957
    %v5986 = vpack.c.b16 %v5960, %v5959
    %v5987 = vpack.c.b16 %v5962, %v5961
    %v5988 = vpack.c.b16 %v5964, %v5963
    %v5989 = vpack.c.b16 %v5966, %v5965
    %v5990 = vpack.c.b16 %v5968, %v5967
    %v5991 = vpack.c.b16 %v5970, %v5969
    %v5992 = vpack.c.b16 %v5972, %v5971
    %v6014 = vsel %vm899, %v5848, 0
    %6016 = vmatpush.bf16.msra.mxu0 %v5980
    %6017 = vmatpush.bf16.msra.mxu0 %v5979
    %6018 = vmatpush.bf16.msra.mxu0 %v5978
    %6019 = vmatpush.bf16.msra.mxu0 %v5977
    %6020 = vmatpush.bf16.msra.mxu0 %v5976
    %6021 = vmatpush.bf16.msra.mxu0 %v5975
    %6022 = vmatpush.bf16.msra.mxu0 %v5974
    %6023 = vmatpush.bf16.msra.mxu0 %v5973
    %6024 = vmatmul.bf16.gmra.mxu0 %v5846
    %v6025 = vpop.f32.mrf.mxu0
    %v6026 = vadd.f32 %v5891, %v6025
    %v6027 = vpop.f32.mrf.mxu0
    %v6028 = vadd.f32 %v5891, %v6027
    %6029 = vdwg.mxu0
    %6030 = vmatpush.bf16.msra.mxu0 %v5988
    %6031 = vmatpush.bf16.msra.mxu0 %v5987
    %6032 = vmatpush.bf16.msra.mxu0 %v5986
    %6033 = vmatpush.bf16.msra.mxu0 %v5985
    %6034 = vmatpush.bf16.msra.mxu0 %v5984
    %6035 = vmatpush.bf16.msra.mxu0 %v5983
    %6036 = vmatpush.bf16.msra.mxu0 %v5982
    %6037 = vmatpush.bf16.msra.mxu0 %v5981
    %6038 = vmatmul.bf16.gmra.mxu0 %v5847
    %v6039 = vpop.f32.mrf.mxu0
    %v6040 = vadd.f32 %v6026, %v6039
    %v6041 = vpop.f32.mrf.mxu0
    %v6042 = vadd.f32 %v6028, %v6041
    %6043 = vdwg.mxu0
    %6044 = vmatpush.bf16.msra.mxu0 0
    %6045 = vmatpush.bf16.msra.mxu0 0
    %6046 = vmatpush.bf16.msra.mxu0 0
    %6047 = vmatpush.bf16.msra.mxu0 0
    %6048 = vmatpush.bf16.msra.mxu0 %v5992
    %6049 = vmatpush.bf16.msra.mxu0 %v5991
    %6050 = vmatpush.bf16.msra.mxu0 %v5990
    %6051 = vmatpush.bf16.msra.mxu0 %v5989
    %6052 = vmatmul.bf16.gmra.mxu0 %v6014
    %v6053 = vpop.f32.mrf.mxu0
    %v6054 = vadd.f32 %v6040, %v6053
    %v6055 = vpop.f32.mrf.mxu0
    %v6056 = vadd.f32 %v6042, %v6055
    %6057 = vdwg.mxu0
    %v6058 = vld [vmem:[%s18] sm:$0x1]
    %v6060 = vperm.slane %v6058, 0
    %v6062 = vmul.f32 %v6054, %v6060
    %v6063 = vmul.f32 %v6056, %v6060
    %v6064 = vmax.f32 %v6062, 0.0
    %v6065 = vmax.f32 %v6063, 0.0
    %v6066 = vtanh.pop %v6064
    %v6067 = vtanh.pop %v6065
    %6068 = vst [vmem:[#allocation2] sm:$0xff] %v6066
    %6069 = vst [vmem:[#allocation2 + $0x8] sm:$0xff] %v6067
    // Predicated region
    $region78: #{tpu_custom_call.1} parent=1 // pred_check
      _
    $region79: #{tpu_custom_call.1} parent=1 // pred_check_branch
      %6071 = sbr.rel (0) target = $region81
    $region80: #{tpu_custom_call.1} parent=1 // pred_region
      %6073 = vsyncadd [#allocation3], 0
      %s6074 = sshll.u32 [#allocation2], 4
      %s6075 = int_to_ptr.vmem [resolvable:$true] %s6074
      %s6076 = sshll.u32 %s19, 4
      %s6077 = int_to_ptr.hbm [resolvable:$true] %s6076
      %6082 = dma.vmem_to_hbm [thread:$0]  %s6075, 256, %s6077, [#allocation3], 128, 128, 8
    $region81: #{tpu_custom_call.1} parent=1 // pred_fallthru
      _
    // Predicated region
    $region82: #{tpu_custom_call.1} parent=1 // pred_check
      _
    $region83: #{tpu_custom_call.1} parent=1 // pred_check_branch
      %6084 = sbr.rel (0) target = $region85
    $region84: #{tpu_custom_call.1} parent=1 // pred_region
      %6086 = dma.done [#allocation3], 256
    $region85: #{tpu_custom_call.1} parent=1 // pred_fallthru
      _
    %6087 = vsyncpa [#allocation3], 1

</llo_original>
